<compile_context>
chip_gen: v7x
topology: tpu7x:2x2x1
jax: 0.10.0
libtpu: 0.0.40
codegen_flags: <defaults>
</compile_context>

<pallas_src>
import jax
import jax.numpy as jnp
from jax.experimental import pallas as pl
from jax.experimental.pallas import tpu as pltpu


def _layer_norm(h, gamma, beta, eps=1e-5):
    # torch.nn.LayerNorm over last dim, eps=1e-5, elementwise affine
    mu = jnp.mean(h, axis=-1, keepdims=True)
    var = jnp.mean((h - mu) * (h - mu), axis=-1, keepdims=True)
    return (h - mu) * jax.lax.rsqrt(var + eps) * gamma + beta


def _leaky_relu(h, slope=0.01):
    return jnp.where(h >= 0, h, slope * h)


def gcn_kernel(x_ref, adj_ref, dinv_ref, w1_ref, w2_ref, p_ref, o_ref):
    x = x_ref[...]        # (Bblk, N, C) f32  node features
    adj = adj_ref[...]    # (Bblk, N, N) bf16 (A + I) integer counts (exact)
    d = dinv_ref[...]     # (Bblk, N, 1) f32  D^{-1/2}
    bblk, n, c = x.shape

    b1, b2 = p_ref[0:1, :], p_ref[1:2, :]
    g1, be1 = p_ref[2:3, :], p_ref[3:4, :]
    g2, be2 = p_ref[4:5, :], p_ref[5:6, :]

    # Hoist the D^{-1/2} broadcast once; reused at all four scaling sites.
    db = jnp.broadcast_to(d, (bblk, n, c))

    residual = x

    # ---- GCNConv 1:  D^-1/2 (A+I) D^-1/2 @ (X @ W1) + b1 ----
    # Fused feature matmul across the in-block batch: (Bblk*N, C) @ (C, C).
    xw = jnp.dot(x.reshape(bblk * n, c).astype(jnp.bfloat16), w1_ref[...],
                 preferred_element_type=jnp.float32).reshape(bblk, n, c)
    h = jnp.einsum('bnm,bmc->bnc', adj, (db * xw).astype(jnp.bfloat16),
                   preferred_element_type=jnp.float32)
    h = db * h + b1
    h = _leaky_relu(h)
    h = _layer_norm(h + residual, g1, be1)

    # ---- GCNConv 2 ----
    hw = jnp.dot(h.reshape(bblk * n, c).astype(jnp.bfloat16), w2_ref[...],
                 preferred_element_type=jnp.float32).reshape(bblk, n, c)
    h2 = jnp.einsum('bnm,bmc->bnc', adj, (db * hw).astype(jnp.bfloat16),
                    preferred_element_type=jnp.float32)
    h2 = db * h2 + b2
    out = _layer_norm(h2 + residual, g2, be2)
    out = _leaky_relu(out)

    o_ref[...] = out.astype(o_ref.dtype)


def _default_graphs_per_step(batch):
    """Whole batch per step on 1-TC chips (v5e/v6e); half per step on v7x so
    each of the two TensorCores takes half via the 'parallel' grid axis."""
    try:
        kind = jax.devices()[0].device_kind.lower()
        if ("v7" in kind or "7x" in kind) and batch % 2 == 0:
            return batch // 2
    except Exception:
        pass
    return batch


def gcn_forward(x, adj, d_inv_sqrt, w1, w2, params, graphs_per_step=None):
    """x: (B,N,C) f32, adj: (B,N,N) bf16, d_inv_sqrt: (B,N,1) f32,
    w1/w2: (C,C) bf16, params: (8,C) f32 rows=[b1,b2,g1,be1,g2,be2,pad,pad]."""
    B, N, C = x.shape
    assert adj.shape == (B, N, N) and d_inv_sqrt.shape == (B, N, 1)
    assert w1.shape == (C, C) and w2.shape == (C, C)
    assert params.shape == (8, C)

    bblk = graphs_per_step or _default_graphs_per_step(B)
    assert B % bblk == 0
    steps = B // bblk

    return pl.pallas_call(
        gcn_kernel,
        out_shape=jax.ShapeDtypeStruct((B, N, C), jnp.float32),
        grid=(steps,),
        in_specs=[
            pl.BlockSpec((bblk, N, C), lambda g: (g, 0, 0)),   # x
            pl.BlockSpec((bblk, N, N), lambda g: (g, 0, 0)),   # adj (A+I)
            pl.BlockSpec((bblk, N, 1), lambda g: (g, 0, 0)),   # D^-1/2
            pl.BlockSpec((C, C), lambda g: (0, 0)),            # W1 (resident, bf16)
            pl.BlockSpec((C, C), lambda g: (0, 0)),            # W2 (resident, bf16)
            pl.BlockSpec((8, C), lambda g: (0, 0)),            # packed params
        ],
        out_specs=pl.BlockSpec((bblk, N, C), lambda g: (g, 0, 0)),
        compiler_params=pltpu.CompilerParams(
            dimension_semantics=("parallel",)),   # splits steps across TCs on v7x
    )(x, adj, d_inv_sqrt, w1, w2, params)


def build_graph_operators(edge_index, num_nodes):
    """PyG gcn_norm-compatible operators (plain-JAX glue).

    Returns (adj_bf16, d_inv_sqrt_f32) where adj = A + I with duplicate edges
    accumulated and exactly one self-loop of weight 1 per node, and
    d_inv_sqrt = deg^{-1/2} with deg = row-sum of adj.
    """
    src, dst = edge_index[0], edge_index[1]
    a = jnp.zeros((num_nodes, num_nodes), jnp.float32).at[dst, src].add(1.0)
    eye = jnp.eye(num_nodes, dtype=jnp.float32)
    a = a * (1.0 - eye) + eye            # replace existing self-loops with weight 1
    deg = jnp.sum(a, axis=1)
    d_inv_sqrt = jnp.where(deg > 0.0, jax.lax.rsqrt(deg), 0.0)
    # integer counts <= 256 are exact in bf16
    return a.astype(jnp.bfloat16), d_inv_sqrt.astype(jnp.float32)


def gcn_reference(x, adj, d_inv_sqrt, w1, w2, params):
    """Pure-JAX reference with identical math (for sanity checking)."""
    b1, b2 = params[0:1], params[1:2]
    g1, be1 = params[2:3], params[3:4]
    g2, be2 = params[4:5], params[5:6]
    d = d_inv_sqrt
    residual = x

    h = jnp.einsum('bnc,cd->bnd', x.astype(jnp.bfloat16), w1,
                   preferred_element_type=jnp.float32)
    h = jnp.einsum('bnm,bmc->bnc', adj, (d * h).astype(jnp.bfloat16),
                   preferred_element_type=jnp.float32)
    h = d * h + b1
    h = _leaky_relu(h)
    h = _layer_norm(h + residual, g1, be1)

    h2 = jnp.einsum('bnc,cd->bnd', h.astype(jnp.bfloat16), w2,
                    preferred_element_type=jnp.float32)
    h2 = jnp.einsum('bnm,bmc->bnc', adj, (d * h2).astype(jnp.bfloat16),
                    preferred_element_type=jnp.float32)
    h2 = d * h2 + b2
    out = _layer_norm(h2 + residual, g2, be2)
    return _leaky_relu(out)


if __name__ == "__main__":
    B, N, C = 8, 64, 32        # graphs per call, nodes, channels (in==hidden==out)
    NUM_EDGES = 256

    key = jax.random.PRNGKey(0)
    kx, ke, k1, k2 = jax.random.split(key, 4)

    x = jax.random.normal(kx, (B, N, C), jnp.float32)

    adjs, dinvs = [], []
    for kb in jax.random.split(ke, B):
        ks, kd = jax.random.split(kb)
        src = jax.random.randint(ks, (NUM_EDGES,), 0, N)
        dst = jax.random.randint(kd, (NUM_EDGES,), 0, N)
        a, dv = build_graph_operators(jnp.stack([src, dst], axis=0), N)
        adjs.append(a)
        dinvs.append(dv)
    adj = jnp.stack(adjs)                        # (B, N, N) bf16
    d_inv_sqrt = jnp.stack(dinvs)[..., None]     # (B, N, 1) f32

    # Deterministic init: glorot-uniform weights (PyG-style) shipped in bf16,
    # zero biases, LayerNorm gamma=1 / beta=0, packed into one (8, C) slab.
    def glorot(k, shape):
        limit = (6.0 / (shape[0] + shape[1])) ** 0.5
        return jax.random.uniform(k, shape, jnp.float32, -limit, limit)

    w1 = glorot(k1, (C, C)).astype(jnp.bfloat16)
    w2 = glorot(k2, (C, C)).astype(jnp.bfloat16)
    params = jnp.zeros((8, C), jnp.float32)
    params = params.at[2].set(1.0)   # gamma1
    params = params.at[4].set(1.0)   # gamma2
    # rows: 0=b1, 1=b2, 2=gamma1, 3=beta1, 4=gamma2, 5=beta2, 6/7=pad

    out = gcn_forward(x, adj, d_inv_sqrt, w1, w2, params)
    jax.block_until_ready(out)

    assert out.shape == (B, N, C) and out.dtype == jnp.float32
    ref = gcn_reference(x, adj, d_inv_sqrt, w1, w2, params)
    assert jnp.allclose(out, ref, atol=2e-2, rtol=2e-2), \
        float(jnp.max(jnp.abs(out - ref)))
    print("KERNEL_OK")
</pallas_src>

<mosaic_0001>
module attributes {stable_mosaic.version = 11 : i64} {
  func.func @gcn_kernel(%arg0: i32, %arg1: memref<8x64x32xf32, #tpu.memory_space<vmem>>, %arg2: memref<8x64x64xbf16, #tpu.memory_space<vmem>>, %arg3: memref<8x64x1xf32, #tpu.memory_space<vmem>>, %arg4: memref<32x32xbf16, #tpu.memory_space<vmem>>, %arg5: memref<32x32xbf16, #tpu.memory_space<vmem>>, %arg6: memref<8x32xf32, #tpu.memory_space<vmem>>, %arg7: memref<8x64x32xf32, #tpu.memory_space<vmem>>) attributes {dimension_semantics = [#tpu.dimension_semantics<parallel>], iteration_bounds = array<i64: 1>, scalar_prefetch = 0 : i64, scratch_operands = 0 : i64, tpu.core_type = #tpu.core_type<tc>, window_params = [{transform_indices = @transform_0, window_bounds = array<i64: 8, 64, 32>}, {transform_indices = @transform_1, window_bounds = array<i64: 8, 64, 64>}, {transform_indices = @transform_2, window_bounds = array<i64: 8, 64, 1>}, {pipeline_mode = #tpu.pipeline_mode<synchronous>, transform_indices = @transform_3, window_bounds = array<i64: 32, 32>}, {pipeline_mode = #tpu.pipeline_mode<synchronous>, transform_indices = @transform_4, window_bounds = array<i64: 32, 32>}, {pipeline_mode = #tpu.pipeline_mode<synchronous>, transform_indices = @transform_5, window_bounds = array<i64: 8, 32>}, {transform_indices = @transform_6, window_bounds = array<i64: 8, 64, 32>}]} {
    %c0 = arith.constant 0 : index
    %c0_0 = arith.constant 0 : index
    %c0_1 = arith.constant 0 : index
    %0 = vector.load %arg1[%c0, %c0_0, %c0_1] : memref<8x64x32xf32, #tpu.memory_space<vmem>>, vector<8x64x32xf32>
    %c0_2 = arith.constant 0 : index
    %c0_3 = arith.constant 0 : index
    %c0_4 = arith.constant 0 : index
    %1 = vector.load %arg2[%c0_2, %c0_3, %c0_4] : memref<8x64x64xbf16, #tpu.memory_space<vmem>>, vector<8x64x64xbf16>
    %c0_5 = arith.constant 0 : index
    %c0_6 = arith.constant 0 : index
    %c0_7 = arith.constant 0 : index
    %2 = vector.load %arg3[%c0_5, %c0_6, %c0_7] : memref<8x64x1xf32, #tpu.memory_space<vmem>>, vector<8x64x1xf32>
    %c0_8 = arith.constant 0 : index
    %c0_9 = arith.constant 0 : index
    %3 = vector.load %arg6[%c0_8, %c0_9] : memref<8x32xf32, #tpu.memory_space<vmem>>, vector<1x32xf32>
    %c1 = arith.constant 1 : index
    %c0_10 = arith.constant 0 : index
    %4 = vector.load %arg6[%c1, %c0_10] : memref<8x32xf32, #tpu.memory_space<vmem>>, vector<1x32xf32>
    %c2 = arith.constant 2 : index
    %c0_11 = arith.constant 0 : index
    %5 = vector.load %arg6[%c2, %c0_11] : memref<8x32xf32, #tpu.memory_space<vmem>>, vector<1x32xf32>
    %c3 = arith.constant 3 : index
    %c0_12 = arith.constant 0 : index
    %6 = vector.load %arg6[%c3, %c0_12] : memref<8x32xf32, #tpu.memory_space<vmem>>, vector<1x32xf32>
    %c4 = arith.constant 4 : index
    %c0_13 = arith.constant 0 : index
    %7 = vector.load %arg6[%c4, %c0_13] : memref<8x32xf32, #tpu.memory_space<vmem>>, vector<1x32xf32>
    %c5 = arith.constant 5 : index
    %c0_14 = arith.constant 0 : index
    %8 = vector.load %arg6[%c5, %c0_14] : memref<8x32xf32, #tpu.memory_space<vmem>>, vector<1x32xf32>
    %9 = vector.shape_cast %2 : vector<8x64x1xf32> to vector<8x64x1xf32>
    %10 = vector.broadcast %9 : vector<8x64x1xf32> to vector<8x64x32xf32>
    %11 = vector.shape_cast %0 : vector<8x64x32xf32> to vector<512x32xf32>
    %12 = arith.truncf %11 : vector<512x32xf32> to vector<512x32xbf16>
    %c0_15 = arith.constant 0 : index
    %c0_16 = arith.constant 0 : index
    %13 = vector.load %arg4[%c0_15, %c0_16] : memref<32x32xbf16, #tpu.memory_space<vmem>>, vector<32x32xbf16>
    %cst = arith.constant dense<0.000000e+00> : vector<512x32xf32>
    %14 = tpu.matmul %12, %13, %cst {dimension_numbers = #tpu.dot_dimension_numbers<[1], [0], [0], [1], [0, 0, 1, 1], [], []>} : vector<512x32xbf16>, vector<32x32xbf16>, vector<512x32xf32> -> vector<512x32xf32>
    %15 = vector.shape_cast %14 : vector<512x32xf32> to vector<8x64x32xf32>
    %16 = arith.mulf %10, %15 : vector<8x64x32xf32>
    %17 = arith.truncf %16 : vector<8x64x32xf32> to vector<8x64x32xbf16>
    "tpu.trace_start"() <{level = 10 : i32, message = "bnm,bmc->bnc"}> : () -> ()
    %cst_17 = arith.constant dense<0.000000e+00> : vector<8x64x32xf32>
    %18 = tpu.matmul %1, %17, %cst_17 {dimension_numbers = #tpu.dot_dimension_numbers<[2], [1], [1], [2], [0, 0, 0, 1, 1, 2], [0], [0]>} : vector<8x64x64xbf16>, vector<8x64x32xbf16>, vector<8x64x32xf32> -> vector<8x64x32xf32>
    "tpu.trace_stop"() : () -> ()
    %19 = arith.mulf %10, %18 : vector<8x64x32xf32>
    %20 = vector.shape_cast %3 : vector<1x32xf32> to vector<1x1x32xf32>
    %21 = vector.broadcast %20 : vector<1x1x32xf32> to vector<8x64x32xf32>
    %22 = arith.addf %19, %21 : vector<8x64x32xf32>
    %cst_18 = arith.constant 0.000000e+00 : f32
    %23 = vector.broadcast %cst_18 : f32 to vector<8x64x32xf32>
    %24 = arith.cmpf oge, %22, %23 : vector<8x64x32xf32>
    %cst_19 = arith.constant 0.00999999977 : f32
    %25 = vector.broadcast %cst_19 : f32 to vector<8x64x32xf32>
    %26 = arith.mulf %25, %22 : vector<8x64x32xf32>
    %27 = arith.select %24, %22, %26 : vector<8x64x32xi1>, vector<8x64x32xf32>
    %28 = arith.addf %27, %0 : vector<8x64x32xf32>
    %cst_20 = arith.constant dense<0.000000e+00> : vector<8x64xf32>
    %29 = vector.multi_reduction <add>, %28, %cst_20 [2] : vector<8x64x32xf32> to vector<8x64xf32>
    %30 = vector.shape_cast %29 : vector<8x64xf32> to vector<8x64x1xf32>
    %cst_21 = arith.constant 3.200000e+01 : f32
    %31 = vector.broadcast %cst_21 : f32 to vector<8x64x1xf32>
    %32 = arith.divf %30, %31 : vector<8x64x1xf32>
    %33 = vector.broadcast %32 : vector<8x64x1xf32> to vector<8x64x32xf32>
    %34 = arith.subf %28, %33 : vector<8x64x32xf32>
    %35 = vector.broadcast %32 : vector<8x64x1xf32> to vector<8x64x32xf32>
    %36 = arith.subf %28, %35 : vector<8x64x32xf32>
    %37 = arith.mulf %34, %36 : vector<8x64x32xf32>
    %cst_22 = arith.constant dense<0.000000e+00> : vector<8x64xf32>
    %38 = vector.multi_reduction <add>, %37, %cst_22 [2] : vector<8x64x32xf32> to vector<8x64xf32>
    %39 = vector.shape_cast %38 : vector<8x64xf32> to vector<8x64x1xf32>
    %cst_23 = arith.constant 3.200000e+01 : f32
    %40 = vector.broadcast %cst_23 : f32 to vector<8x64x1xf32>
    %41 = arith.divf %39, %40 : vector<8x64x1xf32>
    %42 = vector.broadcast %32 : vector<8x64x1xf32> to vector<8x64x32xf32>
    %43 = arith.subf %28, %42 : vector<8x64x32xf32>
    %cst_24 = arith.constant 9.99999974E-6 : f32
    %44 = vector.broadcast %cst_24 : f32 to vector<8x64x1xf32>
    %45 = arith.addf %41, %44 : vector<8x64x1xf32>
    %46 = math.rsqrt %45 : vector<8x64x1xf32>
    %47 = vector.broadcast %46 : vector<8x64x1xf32> to vector<8x64x32xf32>
    %48 = arith.mulf %43, %47 : vector<8x64x32xf32>
    %49 = vector.shape_cast %5 : vector<1x32xf32> to vector<1x1x32xf32>
    %50 = vector.broadcast %49 : vector<1x1x32xf32> to vector<8x64x32xf32>
    %51 = arith.mulf %48, %50 : vector<8x64x32xf32>
    %52 = vector.shape_cast %6 : vector<1x32xf32> to vector<1x1x32xf32>
    %53 = vector.broadcast %52 : vector<1x1x32xf32> to vector<8x64x32xf32>
    %54 = arith.addf %51, %53 : vector<8x64x32xf32>
    %55 = vector.shape_cast %54 : vector<8x64x32xf32> to vector<512x32xf32>
    %56 = arith.truncf %55 : vector<512x32xf32> to vector<512x32xbf16>
    %c0_25 = arith.constant 0 : index
    %c0_26 = arith.constant 0 : index
    %57 = vector.load %arg5[%c0_25, %c0_26] : memref<32x32xbf16, #tpu.memory_space<vmem>>, vector<32x32xbf16>
    %cst_27 = arith.constant dense<0.000000e+00> : vector<512x32xf32>
    %58 = tpu.matmul %56, %57, %cst_27 {dimension_numbers = #tpu.dot_dimension_numbers<[1], [0], [0], [1], [0, 0, 1, 1], [], []>} : vector<512x32xbf16>, vector<32x32xbf16>, vector<512x32xf32> -> vector<512x32xf32>
    %59 = vector.shape_cast %58 : vector<512x32xf32> to vector<8x64x32xf32>
    %60 = arith.mulf %10, %59 : vector<8x64x32xf32>
    %61 = arith.truncf %60 : vector<8x64x32xf32> to vector<8x64x32xbf16>
    "tpu.trace_start"() <{level = 10 : i32, message = "bnm,bmc->bnc"}> : () -> ()
    %cst_28 = arith.constant dense<0.000000e+00> : vector<8x64x32xf32>
    %62 = tpu.matmul %1, %61, %cst_28 {dimension_numbers = #tpu.dot_dimension_numbers<[2], [1], [1], [2], [0, 0, 0, 1, 1, 2], [0], [0]>} : vector<8x64x64xbf16>, vector<8x64x32xbf16>, vector<8x64x32xf32> -> vector<8x64x32xf32>
    "tpu.trace_stop"() : () -> ()
    %63 = arith.mulf %10, %62 : vector<8x64x32xf32>
    %64 = vector.shape_cast %4 : vector<1x32xf32> to vector<1x1x32xf32>
    %65 = vector.broadcast %64 : vector<1x1x32xf32> to vector<8x64x32xf32>
    %66 = arith.addf %63, %65 : vector<8x64x32xf32>
    %67 = arith.addf %66, %0 : vector<8x64x32xf32>
    %cst_29 = arith.constant dense<0.000000e+00> : vector<8x64xf32>
    %68 = vector.multi_reduction <add>, %67, %cst_29 [2] : vector<8x64x32xf32> to vector<8x64xf32>
    %69 = vector.shape_cast %68 : vector<8x64xf32> to vector<8x64x1xf32>
    %cst_30 = arith.constant 3.200000e+01 : f32
    %70 = vector.broadcast %cst_30 : f32 to vector<8x64x1xf32>
    %71 = arith.divf %69, %70 : vector<8x64x1xf32>
    %72 = vector.broadcast %71 : vector<8x64x1xf32> to vector<8x64x32xf32>
    %73 = arith.subf %67, %72 : vector<8x64x32xf32>
    %74 = vector.broadcast %71 : vector<8x64x1xf32> to vector<8x64x32xf32>
    %75 = arith.subf %67, %74 : vector<8x64x32xf32>
    %76 = arith.mulf %73, %75 : vector<8x64x32xf32>
    %cst_31 = arith.constant dense<0.000000e+00> : vector<8x64xf32>
    %77 = vector.multi_reduction <add>, %76, %cst_31 [2] : vector<8x64x32xf32> to vector<8x64xf32>
    %78 = vector.shape_cast %77 : vector<8x64xf32> to vector<8x64x1xf32>
    %cst_32 = arith.constant 3.200000e+01 : f32
    %79 = vector.broadcast %cst_32 : f32 to vector<8x64x1xf32>
    %80 = arith.divf %78, %79 : vector<8x64x1xf32>
    %81 = vector.broadcast %71 : vector<8x64x1xf32> to vector<8x64x32xf32>
    %82 = arith.subf %67, %81 : vector<8x64x32xf32>
    %cst_33 = arith.constant 9.99999974E-6 : f32
    %83 = vector.broadcast %cst_33 : f32 to vector<8x64x1xf32>
    %84 = arith.addf %80, %83 : vector<8x64x1xf32>
    %85 = math.rsqrt %84 : vector<8x64x1xf32>
    %86 = vector.broadcast %85 : vector<8x64x1xf32> to vector<8x64x32xf32>
    %87 = arith.mulf %82, %86 : vector<8x64x32xf32>
    %88 = vector.shape_cast %7 : vector<1x32xf32> to vector<1x1x32xf32>
    %89 = vector.broadcast %88 : vector<1x1x32xf32> to vector<8x64x32xf32>
    %90 = arith.mulf %87, %89 : vector<8x64x32xf32>
    %91 = vector.shape_cast %8 : vector<1x32xf32> to vector<1x1x32xf32>
    %92 = vector.broadcast %91 : vector<1x1x32xf32> to vector<8x64x32xf32>
    %93 = arith.addf %90, %92 : vector<8x64x32xf32>
    %cst_34 = arith.constant 0.000000e+00 : f32
    %94 = vector.broadcast %cst_34 : f32 to vector<8x64x32xf32>
    %95 = arith.cmpf oge, %93, %94 : vector<8x64x32xf32>
    %cst_35 = arith.constant 0.00999999977 : f32
    %96 = vector.broadcast %cst_35 : f32 to vector<8x64x32xf32>
    %97 = arith.mulf %96, %93 : vector<8x64x32xf32>
    %98 = arith.select %95, %93, %97 : vector<8x64x32xi1>, vector<8x64x32xf32>
    %c0_36 = arith.constant 0 : index
    %c0_37 = arith.constant 0 : index
    %c0_38 = arith.constant 0 : index
    %99 = vector.load %arg7[%c0_36, %c0_37, %c0_38] : memref<8x64x32xf32, #tpu.memory_space<vmem>>, vector<8x64x32xf32>
    tpu.vector_store %arg7[%c0_36, %c0_37, %c0_38], %98 {strides = array<i32>} : memref<8x64x32xf32, #tpu.memory_space<vmem>>, vector<8x64x32xf32>,
    return
  }
  func.func @transform_0(%arg0: i32) -> (i32, i32, i32) {
    %c0_i32 = arith.constant 0 : i32
    %c0_i32_0 = arith.constant 0 : i32
    %c0_i32_1 = arith.constant 0 : i32
    return %arg0, %c0_i32, %c0_i32_0 : i32, i32, i32
  }
  func.func @transform_1(%arg0: i32) -> (i32, i32, i32) {
    %c0_i32 = arith.constant 0 : i32
    %c0_i32_0 = arith.constant 0 : i32
    %c0_i32_1 = arith.constant 0 : i32
    return %arg0, %c0_i32, %c0_i32_0 : i32, i32, i32
  }
  func.func @transform_2(%arg0: i32) -> (i32, i32, i32) {
    %c0_i32 = arith.constant 0 : i32
    %c0_i32_0 = arith.constant 0 : i32
    %c0_i32_1 = arith.constant 0 : i32
    return %arg0, %c0_i32, %c0_i32_0 : i32, i32, i32
  }
  func.func @transform_3(%arg0: i32) -> (i32, i32) {
    %c0_i32 = arith.constant 0 : i32
    %c0_i32_0 = arith.constant 0 : i32
    %c0_i32_1 = arith.constant 0 : i32
    return %c0_i32, %c0_i32_0 : i32, i32
  }
  func.func @transform_4(%arg0: i32) -> (i32, i32) {
    %c0_i32 = arith.constant 0 : i32
    %c0_i32_0 = arith.constant 0 : i32
    %c0_i32_1 = arith.constant 0 : i32
    return %c0_i32, %c0_i32_0 : i32, i32
  }
  func.func @transform_5(%arg0: i32) -> (i32, i32) {
    %c0_i32 = arith.constant 0 : i32
    %c0_i32_0 = arith.constant 0 : i32
    %c0_i32_1 = arith.constant 0 : i32
    return %c0_i32, %c0_i32_0 : i32, i32
  }
  func.func @transform_6(%arg0: i32) -> (i32, i32, i32) {
    %c0_i32 = arith.constant 0 : i32
    %c0_i32_0 = arith.constant 0 : i32
    %c0_i32_1 = arith.constant 0 : i32
    return %arg0, %c0_i32, %c0_i32_0 : i32, i32, i32
  }
}

</mosaic_0001>

<llo_original>
// kernel: tpu_custom_call.1
$region0: #{tpu_custom_call.1}
  #allocation0 [shape = 'u32[]', space=smem, size = 0x4, offset = 0x4, fixed_abs, tag = 'smem constant byte address 0x4 - core index']
  #allocation1 [shape = 'u32[144,128]{1,0:T(1,128)}', space=vmem, size = 0x12000, scoped, tag = 'internal scratch']
  %s0 = inlined_call_operand.vmem [shape: f32[8,64,32], index: 0, kind: input, shape index: {}]
  %s1 = inlined_call_operand.vmem [shape: bf16[8,64,64], index: 1, kind: input, shape index: {}]
  %s2 = inlined_call_operand.vmem [shape: f32[8,64,1], index: 2, kind: input, shape index: {}]
  %s3 = inlined_call_operand.vmem [shape: bf16[32,32], index: 3, kind: input, shape index: {}]
  %s4 = inlined_call_operand.vmem [shape: bf16[32,32], index: 4, kind: input, shape index: {}]
  %s5 = inlined_call_operand.vmem [shape: f32[8,32], index: 5, kind: input, shape index: {}]
  %s6 = inlined_call_operand.vmem [shape: f32[8,64,32], index: 6, kind: output, shape index: {}]
  %s7 = sld [smem:[#allocation0]]
  $region34: #{tpu_custom_call.1} parent=0
    _
  %s9 = ssub.s32 1, %s7
  %s10 = scalar_select 0, %s9, %s7
  // Predicated region
  $region2: #{tpu_custom_call.1} parent=0 // pred_check
    _
  $region3: #{tpu_custom_call.1} parent=0 // pred_check_branch
    %12 = sbr.rel (0) target = $region5
  $region4: #{tpu_custom_call.1} parent=0 // pred_region
    _
  $region5: #{tpu_custom_call.1} parent=0 // pred_fallthru
    _
  // Predicated region
  $region6: #{tpu_custom_call.1} parent=0 // pred_check
    _
  $region7: #{tpu_custom_call.1} parent=0 // pred_check_branch
    %14 = sbr.rel (0) target = $region9
  $region8: #{tpu_custom_call.1} parent=0 // pred_region
    _
  $region9: #{tpu_custom_call.1} parent=0 // pred_fallthru
    _
  // Predicated region
  $region10: #{tpu_custom_call.1} parent=0 // pred_check
    _
  $region11: #{tpu_custom_call.1} parent=0 // pred_check_branch
    %16 = sbr.rel (0) target = $region13
  $region12: #{tpu_custom_call.1} parent=0 // pred_region
    _
  $region13: #{tpu_custom_call.1} parent=0 // pred_fallthru
    _
  // Predicated region
  $region14: #{tpu_custom_call.1} parent=0 // pred_check
    _
  $region15: #{tpu_custom_call.1} parent=0 // pred_check_branch
    %18 = sbr.rel (0) target = $region17
  $region16: #{tpu_custom_call.1} parent=0 // pred_region
    _
  $region17: #{tpu_custom_call.1} parent=0 // pred_fallthru
    _
  // Predicated region
  $region18: #{tpu_custom_call.1} parent=0 // pred_check
    _
  $region19: #{tpu_custom_call.1} parent=0 // pred_check_branch
    %20 = sbr.rel (0) target = $region21
  $region20: #{tpu_custom_call.1} parent=0 // pred_region
    _
  $region21: #{tpu_custom_call.1} parent=0 // pred_fallthru
    _
  // Predicated region
  $region22: #{tpu_custom_call.1} parent=0 // pred_check
    _
  $region23: #{tpu_custom_call.1} parent=0 // pred_check_branch
    %22 = sbr.rel (0) target = $region25
  $region24: #{tpu_custom_call.1} parent=0 // pred_region
    _
  $region25: #{tpu_custom_call.1} parent=0 // pred_fallthru
    _
  %v24 = vld [vmem:[%s0] sm:$0xff]
  %v25 = vld [vmem:[%s0 + $0x8] sm:$0xff]
  %v26 = vld [vmem:[%s0 + $0x10] sm:$0xff]
  %v27 = vld [vmem:[%s0 + $0x18] sm:$0xff]
  %v28 = vld [vmem:[%s0 + $0x20] sm:$0xff]
  %v29 = vld [vmem:[%s0 + $0x28] sm:$0xff]
  %v30 = vld [vmem:[%s0 + $0x30] sm:$0xff]
  %v31 = vld [vmem:[%s0 + $0x38] sm:$0xff]
  %v32 = vld [vmem:[%s0 + $0x40] sm:$0xff]
  %v33 = vld [vmem:[%s0 + $0x48] sm:$0xff]
  %v34 = vld [vmem:[%s0 + $0x50] sm:$0xff]
  %v35 = vld [vmem:[%s0 + $0x58] sm:$0xff]
  %v36 = vld [vmem:[%s0 + $0x60] sm:$0xff]
  %v37 = vld [vmem:[%s0 + $0x68] sm:$0xff]
  %v38 = vld [vmem:[%s0 + $0x70] sm:$0xff]
  %v39 = vld [vmem:[%s0 + $0x78] sm:$0xff]
  %v40 = vld [vmem:[%s0 + $0x80] sm:$0xff]
  %v41 = vld [vmem:[%s0 + $0x88] sm:$0xff]
  %v42 = vld [vmem:[%s0 + $0x90] sm:$0xff]
  %v43 = vld [vmem:[%s0 + $0x98] sm:$0xff]
  %v44 = vld [vmem:[%s0 + $0xa0] sm:$0xff]
  %v45 = vld [vmem:[%s0 + $0xa8] sm:$0xff]
  %v46 = vld [vmem:[%s0 + $0xb0] sm:$0xff]
  %v47 = vld [vmem:[%s0 + $0xb8] sm:$0xff]
  %v48 = vld [vmem:[%s0 + $0xc0] sm:$0xff]
  %v49 = vld [vmem:[%s0 + $0xc8] sm:$0xff]
  %v50 = vld [vmem:[%s0 + $0xd0] sm:$0xff]
  %v51 = vld [vmem:[%s0 + $0xd8] sm:$0xff]
  %v52 = vld [vmem:[%s0 + $0xe0] sm:$0xff]
  %v53 = vld [vmem:[%s0 + $0xe8] sm:$0xff]
  %v54 = vld [vmem:[%s0 + $0xf0] sm:$0xff]
  %v55 = vld [vmem:[%s0 + $0xf8] sm:$0xff]
  %v56 = vld [vmem:[%s0 + $0x100] sm:$0xff]
  %v57 = vld [vmem:[%s0 + $0x108] sm:$0xff]
  %v58 = vld [vmem:[%s0 + $0x110] sm:$0xff]
  %v59 = vld [vmem:[%s0 + $0x118] sm:$0xff]
  %v60 = vld [vmem:[%s0 + $0x120] sm:$0xff]
  %v61 = vld [vmem:[%s0 + $0x128] sm:$0xff]
  %v62 = vld [vmem:[%s0 + $0x130] sm:$0xff]
  %v63 = vld [vmem:[%s0 + $0x138] sm:$0xff]
  %v64 = vld [vmem:[%s0 + $0x140] sm:$0xff]
  %v65 = vld [vmem:[%s0 + $0x148] sm:$0xff]
  %v66 = vld [vmem:[%s0 + $0x150] sm:$0xff]
  %v67 = vld [vmem:[%s0 + $0x158] sm:$0xff]
  %v68 = vld [vmem:[%s0 + $0x160] sm:$0xff]
  %v69 = vld [vmem:[%s0 + $0x168] sm:$0xff]
  %v70 = vld [vmem:[%s0 + $0x170] sm:$0xff]
  %v71 = vld [vmem:[%s0 + $0x178] sm:$0xff]
  %v72 = vld [vmem:[%s0 + $0x180] sm:$0xff]
  %v73 = vld [vmem:[%s0 + $0x188] sm:$0xff]
  %v74 = vld [vmem:[%s0 + $0x190] sm:$0xff]
  %v75 = vld [vmem:[%s0 + $0x198] sm:$0xff]
  %v76 = vld [vmem:[%s0 + $0x1a0] sm:$0xff]
  %v77 = vld [vmem:[%s0 + $0x1a8] sm:$0xff]
  %v78 = vld [vmem:[%s0 + $0x1b0] sm:$0xff]
  %v79 = vld [vmem:[%s0 + $0x1b8] sm:$0xff]
  %v80 = vld [vmem:[%s0 + $0x1c0] sm:$0xff]
  %v81 = vld [vmem:[%s0 + $0x1c8] sm:$0xff]
  %v82 = vld [vmem:[%s0 + $0x1d0] sm:$0xff]
  %v83 = vld [vmem:[%s0 + $0x1d8] sm:$0xff]
  %v84 = vld [vmem:[%s0 + $0x1e0] sm:$0xff]
  %v85 = vld [vmem:[%s0 + $0x1e8] sm:$0xff]
  %v86 = vld [vmem:[%s0 + $0x1f0] sm:$0xff]
  %v87 = vld [vmem:[%s0 + $0x1f8] sm:$0xff]
  %v88 = vld [vmem:[%s1] sm:$0xf]
  %v89 = vld [vmem:[%s1 + $0x4] sm:$0xf]
  %v90 = vld [vmem:[%s1 + $0x8] sm:$0xf]
  %v91 = vld [vmem:[%s1 + $0xc] sm:$0xf]
  %v92 = vld [vmem:[%s1 + $0x10] sm:$0xf]
  %v93 = vld [vmem:[%s1 + $0x14] sm:$0xf]
  %v94 = vld [vmem:[%s1 + $0x18] sm:$0xf]
  %v95 = vld [vmem:[%s1 + $0x1c] sm:$0xf]
  %v96 = vld [vmem:[%s1 + $0x20] sm:$0xf]
  %v97 = vld [vmem:[%s1 + $0x24] sm:$0xf]
  %v98 = vld [vmem:[%s1 + $0x28] sm:$0xf]
  %v99 = vld [vmem:[%s1 + $0x2c] sm:$0xf]
  %v100 = vld [vmem:[%s1 + $0x30] sm:$0xf]
  %v101 = vld [vmem:[%s1 + $0x34] sm:$0xf]
  %v102 = vld [vmem:[%s1 + $0x38] sm:$0xf]
  %v103 = vld [vmem:[%s1 + $0x3c] sm:$0xf]
  %v104 = vld [vmem:[%s1 + $0x40] sm:$0xf]
  %v105 = vld [vmem:[%s1 + $0x44] sm:$0xf]
  %v106 = vld [vmem:[%s1 + $0x48] sm:$0xf]
  %v107 = vld [vmem:[%s1 + $0x4c] sm:$0xf]
  %v108 = vld [vmem:[%s1 + $0x50] sm:$0xf]
  %v109 = vld [vmem:[%s1 + $0x54] sm:$0xf]
  %v110 = vld [vmem:[%s1 + $0x58] sm:$0xf]
  %v111 = vld [vmem:[%s1 + $0x5c] sm:$0xf]
  %v112 = vld [vmem:[%s1 + $0x60] sm:$0xf]
  %v113 = vld [vmem:[%s1 + $0x64] sm:$0xf]
  %v114 = vld [vmem:[%s1 + $0x68] sm:$0xf]
  %v115 = vld [vmem:[%s1 + $0x6c] sm:$0xf]
  %v116 = vld [vmem:[%s1 + $0x70] sm:$0xf]
  %v117 = vld [vmem:[%s1 + $0x74] sm:$0xf]
  %v118 = vld [vmem:[%s1 + $0x78] sm:$0xf]
  %v119 = vld [vmem:[%s1 + $0x7c] sm:$0xf]
  %v120 = vld [vmem:[%s1 + $0x80] sm:$0xf]
  %v121 = vld [vmem:[%s1 + $0x84] sm:$0xf]
  %v122 = vld [vmem:[%s1 + $0x88] sm:$0xf]
  %v123 = vld [vmem:[%s1 + $0x8c] sm:$0xf]
  %v124 = vld [vmem:[%s1 + $0x90] sm:$0xf]
  %v125 = vld [vmem:[%s1 + $0x94] sm:$0xf]
  %v126 = vld [vmem:[%s1 + $0x98] sm:$0xf]
  %v127 = vld [vmem:[%s1 + $0x9c] sm:$0xf]
  %v128 = vld [vmem:[%s1 + $0xa0] sm:$0xf]
  %v129 = vld [vmem:[%s1 + $0xa4] sm:$0xf]
  %v130 = vld [vmem:[%s1 + $0xa8] sm:$0xf]
  %v131 = vld [vmem:[%s1 + $0xac] sm:$0xf]
  %v132 = vld [vmem:[%s1 + $0xb0] sm:$0xf]
  %v133 = vld [vmem:[%s1 + $0xb4] sm:$0xf]
  %v134 = vld [vmem:[%s1 + $0xb8] sm:$0xf]
  %v135 = vld [vmem:[%s1 + $0xbc] sm:$0xf]
  %v136 = vld [vmem:[%s1 + $0xc0] sm:$0xf]
  %v137 = vld [vmem:[%s1 + $0xc4] sm:$0xf]
  %v138 = vld [vmem:[%s1 + $0xc8] sm:$0xf]
  %v139 = vld [vmem:[%s1 + $0xcc] sm:$0xf]
  %v140 = vld [vmem:[%s1 + $0xd0] sm:$0xf]
  %v141 = vld [vmem:[%s1 + $0xd4] sm:$0xf]
  %v142 = vld [vmem:[%s1 + $0xd8] sm:$0xf]
  %v143 = vld [vmem:[%s1 + $0xdc] sm:$0xf]
  %v144 = vld [vmem:[%s1 + $0xe0] sm:$0xf]
  %v145 = vld [vmem:[%s1 + $0xe4] sm:$0xf]
  %v146 = vld [vmem:[%s1 + $0xe8] sm:$0xf]
  %v147 = vld [vmem:[%s1 + $0xec] sm:$0xf]
  %v148 = vld [vmem:[%s1 + $0xf0] sm:$0xf]
  %v149 = vld [vmem:[%s1 + $0xf4] sm:$0xf]
  %v150 = vld [vmem:[%s1 + $0xf8] sm:$0xf]
  %v151 = vld [vmem:[%s1 + $0xfc] sm:$0xf]
  %v152 = vld [vmem:[%s2] sm:$0xff]
  %v153 = vld [vmem:[%s2 + $0x8] sm:$0xff]
  %v154 = vld [vmem:[%s2 + $0x10] sm:$0xff]
  %v155 = vld [vmem:[%s2 + $0x18] sm:$0xff]
  %v156 = vld [vmem:[%s2 + $0x20] sm:$0xff]
  %v157 = vld [vmem:[%s2 + $0x28] sm:$0xff]
  %v158 = vld [vmem:[%s2 + $0x30] sm:$0xff]
  %v159 = vld [vmem:[%s2 + $0x38] sm:$0xff]
  %v160 = vld [vmem:[%s2 + $0x40] sm:$0xff]
  %v161 = vld [vmem:[%s2 + $0x48] sm:$0xff]
  %v162 = vld [vmem:[%s2 + $0x50] sm:$0xff]
  %v163 = vld [vmem:[%s2 + $0x58] sm:$0xff]
  %v164 = vld [vmem:[%s2 + $0x60] sm:$0xff]
  %v165 = vld [vmem:[%s2 + $0x68] sm:$0xff]
  %v166 = vld [vmem:[%s2 + $0x70] sm:$0xff]
  %v167 = vld [vmem:[%s2 + $0x78] sm:$0xff]
  %v168 = vld [vmem:[%s2 + $0x80] sm:$0xff]
  %v169 = vld [vmem:[%s2 + $0x88] sm:$0xff]
  %v170 = vld [vmem:[%s2 + $0x90] sm:$0xff]
  %v171 = vld [vmem:[%s2 + $0x98] sm:$0xff]
  %v172 = vld [vmem:[%s2 + $0xa0] sm:$0xff]
  %v173 = vld [vmem:[%s2 + $0xa8] sm:$0xff]
  %v174 = vld [vmem:[%s2 + $0xb0] sm:$0xff]
  %v175 = vld [vmem:[%s2 + $0xb8] sm:$0xff]
  %v176 = vld [vmem:[%s2 + $0xc0] sm:$0xff]
  %v177 = vld [vmem:[%s2 + $0xc8] sm:$0xff]
  %v178 = vld [vmem:[%s2 + $0xd0] sm:$0xff]
  %v179 = vld [vmem:[%s2 + $0xd8] sm:$0xff]
  %v180 = vld [vmem:[%s2 + $0xe0] sm:$0xff]
  %v181 = vld [vmem:[%s2 + $0xe8] sm:$0xff]
  %v182 = vld [vmem:[%s2 + $0xf0] sm:$0xff]
  %v183 = vld [vmem:[%s2 + $0xf8] sm:$0xff]
  %v184 = vld [vmem:[%s2 + $0x100] sm:$0xff]
  %v185 = vld [vmem:[%s2 + $0x108] sm:$0xff]
  %v186 = vld [vmem:[%s2 + $0x110] sm:$0xff]
  %v187 = vld [vmem:[%s2 + $0x118] sm:$0xff]
  %v188 = vld [vmem:[%s2 + $0x120] sm:$0xff]
  %v189 = vld [vmem:[%s2 + $0x128] sm:$0xff]
  %v190 = vld [vmem:[%s2 + $0x130] sm:$0xff]
  %v191 = vld [vmem:[%s2 + $0x138] sm:$0xff]
  %v192 = vld [vmem:[%s2 + $0x140] sm:$0xff]
  %v193 = vld [vmem:[%s2 + $0x148] sm:$0xff]
  %v194 = vld [vmem:[%s2 + $0x150] sm:$0xff]
  %v195 = vld [vmem:[%s2 + $0x158] sm:$0xff]
  %v196 = vld [vmem:[%s2 + $0x160] sm:$0xff]
  %v197 = vld [vmem:[%s2 + $0x168] sm:$0xff]
  %v198 = vld [vmem:[%s2 + $0x170] sm:$0xff]
  %v199 = vld [vmem:[%s2 + $0x178] sm:$0xff]
  %v200 = vld [vmem:[%s2 + $0x180] sm:$0xff]
  %v201 = vld [vmem:[%s2 + $0x188] sm:$0xff]
  %v202 = vld [vmem:[%s2 + $0x190] sm:$0xff]
  %v203 = vld [vmem:[%s2 + $0x198] sm:$0xff]
  %v204 = vld [vmem:[%s2 + $0x1a0] sm:$0xff]
  %v205 = vld [vmem:[%s2 + $0x1a8] sm:$0xff]
  %v206 = vld [vmem:[%s2 + $0x1b0] sm:$0xff]
  %v207 = vld [vmem:[%s2 + $0x1b8] sm:$0xff]
  %v208 = vld [vmem:[%s2 + $0x1c0] sm:$0xff]
  %v209 = vld [vmem:[%s2 + $0x1c8] sm:$0xff]
  %v210 = vld [vmem:[%s2 + $0x1d0] sm:$0xff]
  %v211 = vld [vmem:[%s2 + $0x1d8] sm:$0xff]
  %v212 = vld [vmem:[%s2 + $0x1e0] sm:$0xff]
  %v213 = vld [vmem:[%s2 + $0x1e8] sm:$0xff]
  %v214 = vld [vmem:[%s2 + $0x1f0] sm:$0xff]
  %v215 = vld [vmem:[%s2 + $0x1f8] sm:$0xff]
  %v216 = vld [vmem:[%s5] sm:$0x1]
  %v217 = vld [vmem:[%s5 + $0x1] sm:$0x1]
  %v218 = vld [vmem:[%s5 + $0x2] sm:$0x1]
  %v219 = vld [vmem:[%s5 + $0x3] sm:$0x1]
  %v220 = vld [vmem:[%s5 + $0x4] sm:$0x1]
  %v221 = vld [vmem:[%s5 + $0x5] sm:$0x1]
  %223 = vset.pattern.permute.xlu0 0
  %224 = vperm.xlu0 %223, %v152
  %v225 = vpop.permute.xlu0 %224
  %228 = vset.pattern.permute.xlu0 0
  %229 = vperm.xlu0 %228, %v153
  %v230 = vpop.permute.xlu0 %229
  %233 = vset.pattern.permute.xlu0 0
  %234 = vperm.xlu0 %233, %v154
  %v235 = vpop.permute.xlu0 %234
  %238 = vset.pattern.permute.xlu0 0
  %239 = vperm.xlu0 %238, %v155
  %v240 = vpop.permute.xlu0 %239
  %243 = vset.pattern.permute.xlu0 0
  %244 = vperm.xlu0 %243, %v156
  %v245 = vpop.permute.xlu0 %244
  %248 = vset.pattern.permute.xlu0 0
  %249 = vperm.xlu0 %248, %v157
  %v250 = vpop.permute.xlu0 %249
  %253 = vset.pattern.permute.xlu0 0
  %254 = vperm.xlu0 %253, %v158
  %v255 = vpop.permute.xlu0 %254
  %258 = vset.pattern.permute.xlu0 0
  %259 = vperm.xlu0 %258, %v159
  %v260 = vpop.permute.xlu0 %259
  %263 = vset.pattern.permute.xlu0 0
  %264 = vperm.xlu0 %263, %v160
  %v265 = vpop.permute.xlu0 %264
  %268 = vset.pattern.permute.xlu0 0
  %269 = vperm.xlu0 %268, %v161
  %v270 = vpop.permute.xlu0 %269
  %273 = vset.pattern.permute.xlu0 0
  %274 = vperm.xlu0 %273, %v162
  %v275 = vpop.permute.xlu0 %274
  %278 = vset.pattern.permute.xlu0 0
  %279 = vperm.xlu0 %278, %v163
  %v280 = vpop.permute.xlu0 %279
  %283 = vset.pattern.permute.xlu0 0
  %284 = vperm.xlu0 %283, %v164
  %v285 = vpop.permute.xlu0 %284
  %288 = vset.pattern.permute.xlu0 0
  %289 = vperm.xlu0 %288, %v165
  %v290 = vpop.permute.xlu0 %289
  %293 = vset.pattern.permute.xlu0 0
  %294 = vperm.xlu0 %293, %v166
  %v295 = vpop.permute.xlu0 %294
  %298 = vset.pattern.permute.xlu0 0
  %299 = vperm.xlu0 %298, %v167
  %v300 = vpop.permute.xlu0 %299
  %303 = vset.pattern.permute.xlu0 0
  %304 = vperm.xlu0 %303, %v168
  %v305 = vpop.permute.xlu0 %304
  %308 = vset.pattern.permute.xlu0 0
  %309 = vperm.xlu0 %308, %v169
  %v310 = vpop.permute.xlu0 %309
  %313 = vset.pattern.permute.xlu0 0
  %314 = vperm.xlu0 %313, %v170
  %v315 = vpop.permute.xlu0 %314
  %318 = vset.pattern.permute.xlu0 0
  %319 = vperm.xlu0 %318, %v171
  %v320 = vpop.permute.xlu0 %319
  %323 = vset.pattern.permute.xlu0 0
  %324 = vperm.xlu0 %323, %v172
  %v325 = vpop.permute.xlu0 %324
  %328 = vset.pattern.permute.xlu0 0
  %329 = vperm.xlu0 %328, %v173
  %v330 = vpop.permute.xlu0 %329
  %333 = vset.pattern.permute.xlu0 0
  %334 = vperm.xlu0 %333, %v174
  %v335 = vpop.permute.xlu0 %334
  %338 = vset.pattern.permute.xlu0 0
  %339 = vperm.xlu0 %338, %v175
  %v340 = vpop.permute.xlu0 %339
  %343 = vset.pattern.permute.xlu0 0
  %344 = vperm.xlu0 %343, %v176
  %v345 = vpop.permute.xlu0 %344
  %348 = vset.pattern.permute.xlu0 0
  %349 = vperm.xlu0 %348, %v177
  %v350 = vpop.permute.xlu0 %349
  %353 = vset.pattern.permute.xlu0 0
  %354 = vperm.xlu0 %353, %v178
  %v355 = vpop.permute.xlu0 %354
  %358 = vset.pattern.permute.xlu0 0
  %359 = vperm.xlu0 %358, %v179
  %v360 = vpop.permute.xlu0 %359
  %363 = vset.pattern.permute.xlu0 0
  %364 = vperm.xlu0 %363, %v180
  %v365 = vpop.permute.xlu0 %364
  %368 = vset.pattern.permute.xlu0 0
  %369 = vperm.xlu0 %368, %v181
  %v370 = vpop.permute.xlu0 %369
  %373 = vset.pattern.permute.xlu0 0
  %374 = vperm.xlu0 %373, %v182
  %v375 = vpop.permute.xlu0 %374
  %378 = vset.pattern.permute.xlu0 0
  %379 = vperm.xlu0 %378, %v183
  %v380 = vpop.permute.xlu0 %379
  %383 = vset.pattern.permute.xlu0 0
  %384 = vperm.xlu0 %383, %v184
  %v385 = vpop.permute.xlu0 %384
  %388 = vset.pattern.permute.xlu0 0
  %389 = vperm.xlu0 %388, %v185
  %v390 = vpop.permute.xlu0 %389
  %393 = vset.pattern.permute.xlu0 0
  %394 = vperm.xlu0 %393, %v186
  %v395 = vpop.permute.xlu0 %394
  %398 = vset.pattern.permute.xlu0 0
  %399 = vperm.xlu0 %398, %v187
  %v400 = vpop.permute.xlu0 %399
  %403 = vset.pattern.permute.xlu0 0
  %404 = vperm.xlu0 %403, %v188
  %v405 = vpop.permute.xlu0 %404
  %408 = vset.pattern.permute.xlu0 0
  %409 = vperm.xlu0 %408, %v189
  %v410 = vpop.permute.xlu0 %409
  %413 = vset.pattern.permute.xlu0 0
  %414 = vperm.xlu0 %413, %v190
  %v415 = vpop.permute.xlu0 %414
  %418 = vset.pattern.permute.xlu0 0
  %419 = vperm.xlu0 %418, %v191
  %v420 = vpop.permute.xlu0 %419
  %423 = vset.pattern.permute.xlu0 0
  %424 = vperm.xlu0 %423, %v192
  %v425 = vpop.permute.xlu0 %424
  %428 = vset.pattern.permute.xlu0 0
  %429 = vperm.xlu0 %428, %v193
  %v430 = vpop.permute.xlu0 %429
  %433 = vset.pattern.permute.xlu0 0
  %434 = vperm.xlu0 %433, %v194
  %v435 = vpop.permute.xlu0 %434
  %438 = vset.pattern.permute.xlu0 0
  %439 = vperm.xlu0 %438, %v195
  %v440 = vpop.permute.xlu0 %439
  %443 = vset.pattern.permute.xlu0 0
  %444 = vperm.xlu0 %443, %v196
  %v445 = vpop.permute.xlu0 %444
  %448 = vset.pattern.permute.xlu0 0
  %449 = vperm.xlu0 %448, %v197
  %v450 = vpop.permute.xlu0 %449
  %453 = vset.pattern.permute.xlu0 0
  %454 = vperm.xlu0 %453, %v198
  %v455 = vpop.permute.xlu0 %454
  %458 = vset.pattern.permute.xlu0 0
  %459 = vperm.xlu0 %458, %v199
  %v460 = vpop.permute.xlu0 %459
  %463 = vset.pattern.permute.xlu0 0
  %464 = vperm.xlu0 %463, %v200
  %v465 = vpop.permute.xlu0 %464
  %468 = vset.pattern.permute.xlu0 0
  %469 = vperm.xlu0 %468, %v201
  %v470 = vpop.permute.xlu0 %469
  %473 = vset.pattern.permute.xlu0 0
  %474 = vperm.xlu0 %473, %v202
  %v475 = vpop.permute.xlu0 %474
  %478 = vset.pattern.permute.xlu0 0
  %479 = vperm.xlu0 %478, %v203
  %v480 = vpop.permute.xlu0 %479
  %483 = vset.pattern.permute.xlu0 0
  %484 = vperm.xlu0 %483, %v204
  %v485 = vpop.permute.xlu0 %484
  %488 = vset.pattern.permute.xlu0 0
  %489 = vperm.xlu0 %488, %v205
  %v490 = vpop.permute.xlu0 %489
  %493 = vset.pattern.permute.xlu0 0
  %494 = vperm.xlu0 %493, %v206
  %v495 = vpop.permute.xlu0 %494
  %498 = vset.pattern.permute.xlu0 0
  %499 = vperm.xlu0 %498, %v207
  %v500 = vpop.permute.xlu0 %499
  %503 = vset.pattern.permute.xlu0 0
  %504 = vperm.xlu0 %503, %v208
  %v505 = vpop.permute.xlu0 %504
  %508 = vset.pattern.permute.xlu0 0
  %509 = vperm.xlu0 %508, %v209
  %v510 = vpop.permute.xlu0 %509
  %513 = vset.pattern.permute.xlu0 0
  %514 = vperm.xlu0 %513, %v210
  %v515 = vpop.permute.xlu0 %514
  %518 = vset.pattern.permute.xlu0 0
  %519 = vperm.xlu0 %518, %v211
  %v520 = vpop.permute.xlu0 %519
  %523 = vset.pattern.permute.xlu0 0
  %524 = vperm.xlu0 %523, %v212
  %v525 = vpop.permute.xlu0 %524
  %528 = vset.pattern.permute.xlu0 0
  %529 = vperm.xlu0 %528, %v213
  %v530 = vpop.permute.xlu0 %529
  %533 = vset.pattern.permute.xlu0 0
  %534 = vperm.xlu0 %533, %v214
  %v535 = vpop.permute.xlu0 %534
  %538 = vset.pattern.permute.xlu0 0
  %539 = vperm.xlu0 %538, %v215
  %v540 = vpop.permute.xlu0 %539
  %v542 = vpack.c.bf16 %v25, %v24
  %v543 = vpack.c.bf16 %v27, %v26
  %v544 = vpack.c.bf16 %v29, %v28
  %v545 = vpack.c.bf16 %v31, %v30
  %v546 = vpack.c.bf16 %v33, %v32
  %v547 = vpack.c.bf16 %v35, %v34
  %v548 = vpack.c.bf16 %v37, %v36
  %v549 = vpack.c.bf16 %v39, %v38
  %v550 = vpack.c.bf16 %v41, %v40
  %v551 = vpack.c.bf16 %v43, %v42
  %v552 = vpack.c.bf16 %v45, %v44
  %v553 = vpack.c.bf16 %v47, %v46
  %v554 = vpack.c.bf16 %v49, %v48
  %v555 = vpack.c.bf16 %v51, %v50
  %v556 = vpack.c.bf16 %v53, %v52
  %v557 = vpack.c.bf16 %v55, %v54
  %v558 = vpack.c.bf16 %v57, %v56
  %v559 = vpack.c.bf16 %v59, %v58
  %v560 = vpack.c.bf16 %v61, %v60
  %v561 = vpack.c.bf16 %v63, %v62
  %v562 = vpack.c.bf16 %v65, %v64
  %v563 = vpack.c.bf16 %v67, %v66
  %v564 = vpack.c.bf16 %v69, %v68
  %v565 = vpack.c.bf16 %v71, %v70
  %v566 = vpack.c.bf16 %v73, %v72
  %v567 = vpack.c.bf16 %v75, %v74
  %v568 = vpack.c.bf16 %v77, %v76
  %v569 = vpack.c.bf16 %v79, %v78
  %v570 = vpack.c.bf16 %v81, %v80
  %v571 = vpack.c.bf16 %v83, %v82
  %v572 = vpack.c.bf16 %v85, %v84
  %v573 = vpack.c.bf16 %v87, %v86
  %v574 = vld [vmem:[%s3] sm:$0xf]
  %v575 = vld [vmem:[%s3 + $0x4] sm:$0xf]
  %v576 = vld [vmem:[%s3 + $0x8] sm:$0xf]
  %v577 = vld [vmem:[%s3 + $0xc] sm:$0xf]
  %v582 = vunpack.c.l.b16 %v574
  %v583 = vunpack.c.l.b16 %v575
  %v584 = vunpack.c.l.b16 %v576
  %v585 = vunpack.c.l.b16 %v577
  %v586 = vpack.c.b16 %v583, %v582
  %v587 = vpack.c.b16 %v585, %v584
  %vm590 = vcmask 261120
  %v592 = vsel %vm590, %v542, 0
  %v595 = vsel %vm590, %v543, 0
  %v598 = vsel %vm590, %v544, 0
  %v601 = vsel %vm590, %v545, 0
  %v604 = vsel %vm590, %v546, 0
  %v607 = vsel %vm590, %v547, 0
  %v610 = vsel %vm590, %v548, 0
  %v613 = vsel %vm590, %v549, 0
  %v616 = vsel %vm590, %v550, 0
  %v619 = vsel %vm590, %v551, 0
  %v622 = vsel %vm590, %v552, 0
  %v625 = vsel %vm590, %v553, 0
  %v628 = vsel %vm590, %v554, 0
  %v631 = vsel %vm590, %v555, 0
  %v634 = vsel %vm590, %v556, 0
  %v637 = vsel %vm590, %v557, 0
  %v640 = vsel %vm590, %v558, 0
  %v643 = vsel %vm590, %v559, 0
  %v646 = vsel %vm590, %v560, 0
  %v649 = vsel %vm590, %v561, 0
  %v652 = vsel %vm590, %v562, 0
  %v655 = vsel %vm590, %v563, 0
  %v658 = vsel %vm590, %v564, 0
  %v661 = vsel %vm590, %v565, 0
  %v664 = vsel %vm590, %v566, 0
  %v667 = vsel %vm590, %v567, 0
  %v670 = vsel %vm590, %v568, 0
  %v673 = vsel %vm590, %v569, 0
  %v676 = vsel %vm590, %v570, 0
  %v679 = vsel %vm590, %v571, 0
  %v682 = vsel %vm590, %v572, 0
  %v685 = vsel %vm590, %v573, 0
  %687 = vmatprep.subr.bf16.mxu0 0
  %688 = vmatpush1.bf16.msra.mxu0 %v586
  %689 = vmatprep.subr.bf16.mxu0 0
  %690 = vmatpush1.bf16.msra.mxu0 %v587
  %691 = vmatprep.subr.bf16.mxu0 0
  %692 = vmatpush1.bf16.msra.mxu0 0
  %693 = vmatprep.subr.bf16.mxu0 0
  %694 = vmatpush1.bf16.msra.mxu0 0
  %695 = vmatprep.subr.bf16.mxu0 0
  %696 = vmatpush1.bf16.msra.mxu0 0
  %697 = vmatprep.subr.bf16.mxu0 0
  %698 = vmatpush1.bf16.msra.mxu0 0
  %699 = vmatprep.subr.bf16.mxu0 0
  %700 = vmatpush1.bf16.msra.mxu0 0
  %701 = vmatprep.subr.bf16.mxu0 0
  %702 = vmatpush1.bf16.msra.mxu0 0
  %703 = vmatprep.subr.bf16.mxu0 0
  %704 = vmatpush1.bf16.msra.mxu0 0
  %705 = vmatprep.subr.bf16.mxu0 0
  %706 = vmatpush1.bf16.msra.mxu0 0
  %707 = vmatprep.subr.bf16.mxu0 0
  %708 = vmatpush1.bf16.msra.mxu0 0
  %709 = vmatprep.subr.bf16.mxu0 0
  %710 = vmatpush1.bf16.msra.mxu0 0
  %711 = vmatprep.subr.bf16.mxu0 0
  %712 = vmatpush1.bf16.msra.mxu0 0
  %713 = vmatprep.subr.bf16.mxu0 0
  %714 = vmatpush1.bf16.msra.mxu0 0
  %715 = vmatprep.subr.bf16.mxu0 0
  %716 = vmatpush1.bf16.msra.mxu0 0
  %717 = vmatprep.subr.bf16.mxu0 0
  %718 = vmatpush1.bf16.msra.mxu0 0
  %719 = vmatprep.mubr.bf16.mxu0 0
  %720 = vmatmul.mubr.bf16.gmra.mrb[0].mxu0 %v592
  %v721 = vpop.f32.mrb[0].mxu0
  %v722 = vadd.f32 0.0, %v721
  %v723 = vpop.f32.mrb[0].mxu0
  %v724 = vpop.f32.mrb[0].mxu0
  %v725 = vadd.f32 0.0, %v724
  %v726 = vpop.f32.mrb[0].mxu0
  %727 = vmatprep.mubr.bf16.mxu0 0
  %728 = vmatmul.mubr.bf16.gmra.mrb[0].mxu0 %v595
  %v729 = vpop.f32.mrb[0].mxu0
  %v730 = vadd.f32 0.0, %v729
  %v731 = vpop.f32.mrb[0].mxu0
  %v732 = vpop.f32.mrb[0].mxu0
  %v733 = vadd.f32 0.0, %v732
  %v734 = vpop.f32.mrb[0].mxu0
  %735 = vmatprep.mubr.bf16.mxu0 0
  %736 = vmatmul.mubr.bf16.gmra.mrb[0].mxu0 %v598
  %v737 = vpop.f32.mrb[0].mxu0
  %v738 = vadd.f32 0.0, %v737
  %v739 = vpop.f32.mrb[0].mxu0
  %v740 = vpop.f32.mrb[0].mxu0
  %v741 = vadd.f32 0.0, %v740
  %v742 = vpop.f32.mrb[0].mxu0
  %743 = vmatprep.mubr.bf16.mxu0 0
  %744 = vmatmul.mubr.bf16.gmra.mrb[0].mxu0 %v601
  %v745 = vpop.f32.mrb[0].mxu0
  %v746 = vadd.f32 0.0, %v745
  %v747 = vpop.f32.mrb[0].mxu0
  %v748 = vpop.f32.mrb[0].mxu0
  %v749 = vadd.f32 0.0, %v748
  %v750 = vpop.f32.mrb[0].mxu0
  %751 = vmatprep.mubr.bf16.mxu0 0
  %752 = vmatmul.mubr.bf16.gmra.mrb[0].mxu0 %v604
  %v753 = vpop.f32.mrb[0].mxu0
  %v754 = vadd.f32 0.0, %v753
  %v755 = vpop.f32.mrb[0].mxu0
  %v756 = vpop.f32.mrb[0].mxu0
  %v757 = vadd.f32 0.0, %v756
  %v758 = vpop.f32.mrb[0].mxu0
  %759 = vmatprep.mubr.bf16.mxu0 0
  %760 = vmatmul.mubr.bf16.gmra.mrb[0].mxu0 %v607
  %v761 = vpop.f32.mrb[0].mxu0
  %v762 = vadd.f32 0.0, %v761
  %v763 = vpop.f32.mrb[0].mxu0
  %v764 = vpop.f32.mrb[0].mxu0
  %v765 = vadd.f32 0.0, %v764
  %v766 = vpop.f32.mrb[0].mxu0
  %767 = vmatprep.mubr.bf16.mxu0 0
  %768 = vmatmul.mubr.bf16.gmra.mrb[0].mxu0 %v610
  %v769 = vpop.f32.mrb[0].mxu0
  %v770 = vadd.f32 0.0, %v769
  %v771 = vpop.f32.mrb[0].mxu0
  %v772 = vpop.f32.mrb[0].mxu0
  %v773 = vadd.f32 0.0, %v772
  %v774 = vpop.f32.mrb[0].mxu0
  %775 = vmatprep.mubr.bf16.mxu0 0
  %776 = vmatmul.mubr.bf16.gmra.mrb[0].mxu0 %v613
  %v777 = vpop.f32.mrb[0].mxu0
  %v778 = vadd.f32 0.0, %v777
  %v779 = vpop.f32.mrb[0].mxu0
  %v780 = vpop.f32.mrb[0].mxu0
  %v781 = vadd.f32 0.0, %v780
  %v782 = vpop.f32.mrb[0].mxu0
  %783 = vmatprep.mubr.bf16.mxu0 0
  %784 = vmatmul.mubr.bf16.gmra.mrb[0].mxu0 %v616
  %v785 = vpop.f32.mrb[0].mxu0
  %v786 = vadd.f32 0.0, %v785
  %v787 = vpop.f32.mrb[0].mxu0
  %v788 = vpop.f32.mrb[0].mxu0
  %v789 = vadd.f32 0.0, %v788
  %v790 = vpop.f32.mrb[0].mxu0
  %791 = vmatprep.mubr.bf16.mxu0 0
  %792 = vmatmul.mubr.bf16.gmra.mrb[0].mxu0 %v619
  %v793 = vpop.f32.mrb[0].mxu0
  %v794 = vadd.f32 0.0, %v793
  %v795 = vpop.f32.mrb[0].mxu0
  %v796 = vpop.f32.mrb[0].mxu0
  %v797 = vadd.f32 0.0, %v796
  %v798 = vpop.f32.mrb[0].mxu0
  %799 = vmatprep.mubr.bf16.mxu0 0
  %800 = vmatmul.mubr.bf16.gmra.mrb[0].mxu0 %v622
  %v801 = vpop.f32.mrb[0].mxu0
  %v802 = vadd.f32 0.0, %v801
  %v803 = vpop.f32.mrb[0].mxu0
  %v804 = vpop.f32.mrb[0].mxu0
  %v805 = vadd.f32 0.0, %v804
  %v806 = vpop.f32.mrb[0].mxu0
  %807 = vmatprep.mubr.bf16.mxu0 0
  %808 = vmatmul.mubr.bf16.gmra.mrb[0].mxu0 %v625
  %v809 = vpop.f32.mrb[0].mxu0
  %v810 = vadd.f32 0.0, %v809
  %v811 = vpop.f32.mrb[0].mxu0
  %v812 = vpop.f32.mrb[0].mxu0
  %v813 = vadd.f32 0.0, %v812
  %v814 = vpop.f32.mrb[0].mxu0
  %815 = vmatprep.mubr.bf16.mxu0 0
  %816 = vmatmul.mubr.bf16.gmra.mrb[0].mxu0 %v628
  %v817 = vpop.f32.mrb[0].mxu0
  %v818 = vadd.f32 0.0, %v817
  %v819 = vpop.f32.mrb[0].mxu0
  %v820 = vpop.f32.mrb[0].mxu0
  %v821 = vadd.f32 0.0, %v820
  %v822 = vpop.f32.mrb[0].mxu0
  %823 = vmatprep.mubr.bf16.mxu0 0
  %824 = vmatmul.mubr.bf16.gmra.mrb[0].mxu0 %v631
  %v825 = vpop.f32.mrb[0].mxu0
  %v826 = vadd.f32 0.0, %v825
  %v827 = vpop.f32.mrb[0].mxu0
  %v828 = vpop.f32.mrb[0].mxu0
  %v829 = vadd.f32 0.0, %v828
  %v830 = vpop.f32.mrb[0].mxu0
  %831 = vmatprep.mubr.bf16.mxu0 0
  %832 = vmatmul.mubr.bf16.gmra.mrb[0].mxu0 %v634
  %v833 = vpop.f32.mrb[0].mxu0
  %v834 = vadd.f32 0.0, %v833
  %v835 = vpop.f32.mrb[0].mxu0
  %v836 = vpop.f32.mrb[0].mxu0
  %v837 = vadd.f32 0.0, %v836
  %v838 = vpop.f32.mrb[0].mxu0
  %839 = vmatprep.mubr.bf16.mxu0 0
  %840 = vmatmul.mubr.bf16.gmra.mrb[0].mxu0 %v637
  %v841 = vpop.f32.mrb[0].mxu0
  %v842 = vadd.f32 0.0, %v841
  %v843 = vpop.f32.mrb[0].mxu0
  %v844 = vpop.f32.mrb[0].mxu0
  %v845 = vadd.f32 0.0, %v844
  %v846 = vpop.f32.mrb[0].mxu0
  %847 = vmatprep.mubr.bf16.mxu0 0
  %848 = vmatmul.mubr.bf16.gmra.mrb[0].mxu0 %v640
  %v849 = vpop.f32.mrb[0].mxu0
  %v850 = vadd.f32 0.0, %v849
  %v851 = vpop.f32.mrb[0].mxu0
  %v852 = vpop.f32.mrb[0].mxu0
  %v853 = vadd.f32 0.0, %v852
  %v854 = vpop.f32.mrb[0].mxu0
  %855 = vmatprep.mubr.bf16.mxu0 0
  %856 = vmatmul.mubr.bf16.gmra.mrb[0].mxu0 %v643
  %v857 = vpop.f32.mrb[0].mxu0
  %v858 = vadd.f32 0.0, %v857
  %v859 = vpop.f32.mrb[0].mxu0
  %v860 = vpop.f32.mrb[0].mxu0
  %v861 = vadd.f32 0.0, %v860
  %v862 = vpop.f32.mrb[0].mxu0
  %863 = vmatprep.mubr.bf16.mxu0 0
  %864 = vmatmul.mubr.bf16.gmra.mrb[0].mxu0 %v646
  %v865 = vpop.f32.mrb[0].mxu0
  %v866 = vadd.f32 0.0, %v865
  %v867 = vpop.f32.mrb[0].mxu0
  %v868 = vpop.f32.mrb[0].mxu0
  %v869 = vadd.f32 0.0, %v868
  %v870 = vpop.f32.mrb[0].mxu0
  %871 = vmatprep.mubr.bf16.mxu0 0
  %872 = vmatmul.mubr.bf16.gmra.mrb[0].mxu0 %v649
  %v873 = vpop.f32.mrb[0].mxu0
  %v874 = vadd.f32 0.0, %v873
  %v875 = vpop.f32.mrb[0].mxu0
  %v876 = vpop.f32.mrb[0].mxu0
  %v877 = vadd.f32 0.0, %v876
  %v878 = vpop.f32.mrb[0].mxu0
  %879 = vmatprep.mubr.bf16.mxu0 0
  %880 = vmatmul.mubr.bf16.gmra.mrb[0].mxu0 %v652
  %v881 = vpop.f32.mrb[0].mxu0
  %v882 = vadd.f32 0.0, %v881
  %v883 = vpop.f32.mrb[0].mxu0
  %v884 = vpop.f32.mrb[0].mxu0
  %v885 = vadd.f32 0.0, %v884
  %v886 = vpop.f32.mrb[0].mxu0
  %887 = vmatprep.mubr.bf16.mxu0 0
  %888 = vmatmul.mubr.bf16.gmra.mrb[0].mxu0 %v655
  %v889 = vpop.f32.mrb[0].mxu0
  %v890 = vadd.f32 0.0, %v889
  %v891 = vpop.f32.mrb[0].mxu0
  %v892 = vpop.f32.mrb[0].mxu0
  %v893 = vadd.f32 0.0, %v892
  %v894 = vpop.f32.mrb[0].mxu0
  %895 = vmatprep.mubr.bf16.mxu0 0
  %896 = vmatmul.mubr.bf16.gmra.mrb[0].mxu0 %v658
  %v897 = vpop.f32.mrb[0].mxu0
  %v898 = vadd.f32 0.0, %v897
  %v899 = vpop.f32.mrb[0].mxu0
  %v900 = vpop.f32.mrb[0].mxu0
  %v901 = vadd.f32 0.0, %v900
  %v902 = vpop.f32.mrb[0].mxu0
  %903 = vmatprep.mubr.bf16.mxu0 0
  %904 = vmatmul.mubr.bf16.gmra.mrb[0].mxu0 %v661
  %v905 = vpop.f32.mrb[0].mxu0
  %v906 = vadd.f32 0.0, %v905
  %v907 = vpop.f32.mrb[0].mxu0
  %v908 = vpop.f32.mrb[0].mxu0
  %v909 = vadd.f32 0.0, %v908
  %v910 = vpop.f32.mrb[0].mxu0
  %911 = vmatprep.mubr.bf16.mxu0 0
  %912 = vmatmul.mubr.bf16.gmra.mrb[0].mxu0 %v664
  %v913 = vpop.f32.mrb[0].mxu0
  %v914 = vadd.f32 0.0, %v913
  %v915 = vpop.f32.mrb[0].mxu0
  %v916 = vpop.f32.mrb[0].mxu0
  %v917 = vadd.f32 0.0, %v916
  %v918 = vpop.f32.mrb[0].mxu0
  %919 = vmatprep.mubr.bf16.mxu0 0
  %920 = vmatmul.mubr.bf16.gmra.mrb[0].mxu0 %v667
  %v921 = vpop.f32.mrb[0].mxu0
  %v922 = vadd.f32 0.0, %v921
  %v923 = vpop.f32.mrb[0].mxu0
  %v924 = vpop.f32.mrb[0].mxu0
  %v925 = vadd.f32 0.0, %v924
  %v926 = vpop.f32.mrb[0].mxu0
  %927 = vmatprep.mubr.bf16.mxu0 0
  %928 = vmatmul.mubr.bf16.gmra.mrb[0].mxu0 %v670
  %v929 = vpop.f32.mrb[0].mxu0
  %v930 = vadd.f32 0.0, %v929
  %v931 = vpop.f32.mrb[0].mxu0
  %v932 = vpop.f32.mrb[0].mxu0
  %v933 = vadd.f32 0.0, %v932
  %v934 = vpop.f32.mrb[0].mxu0
  %935 = vmatprep.mubr.bf16.mxu0 0
  %936 = vmatmul.mubr.bf16.gmra.mrb[0].mxu0 %v673
  %v937 = vpop.f32.mrb[0].mxu0
  %v938 = vadd.f32 0.0, %v937
  %v939 = vpop.f32.mrb[0].mxu0
  %v940 = vpop.f32.mrb[0].mxu0
  %v941 = vadd.f32 0.0, %v940
  %v942 = vpop.f32.mrb[0].mxu0
  %943 = vmatprep.mubr.bf16.mxu0 0
  %944 = vmatmul.mubr.bf16.gmra.mrb[0].mxu0 %v676
  %v945 = vpop.f32.mrb[0].mxu0
  %v946 = vadd.f32 0.0, %v945
  %v947 = vpop.f32.mrb[0].mxu0
  %v948 = vpop.f32.mrb[0].mxu0
  %v949 = vadd.f32 0.0, %v948
  %v950 = vpop.f32.mrb[0].mxu0
  %951 = vmatprep.mubr.bf16.mxu0 0
  %952 = vmatmul.mubr.bf16.gmra.mrb[0].mxu0 %v679
  %v953 = vpop.f32.mrb[0].mxu0
  %v954 = vadd.f32 0.0, %v953
  %v955 = vpop.f32.mrb[0].mxu0
  %v956 = vpop.f32.mrb[0].mxu0
  %v957 = vadd.f32 0.0, %v956
  %v958 = vpop.f32.mrb[0].mxu0
  %959 = vmatprep.mubr.bf16.mxu0 0
  %960 = vmatmul.mubr.bf16.gmra.mrb[0].mxu0 %v682
  %v961 = vpop.f32.mrb[0].mxu0
  %v962 = vadd.f32 0.0, %v961
  %v963 = vpop.f32.mrb[0].mxu0
  %v964 = vpop.f32.mrb[0].mxu0
  %v965 = vadd.f32 0.0, %v964
  %v966 = vpop.f32.mrb[0].mxu0
  %967 = vmatprep.mubr.bf16.mxu0 0
  %968 = vmatmul.mubr.bf16.gmra.mrb[0].mxu0 %v685
  %v969 = vpop.f32.mrb[0].mxu0
  %v970 = vadd.f32 0.0, %v969
  %v971 = vpop.f32.mrb[0].mxu0
  %v972 = vpop.f32.mrb[0].mxu0
  %v973 = vadd.f32 0.0, %v972
  %v974 = vpop.f32.mrb[0].mxu0
  %975 = vdwg.mxu0
  %v976 = vmul.f32 %v225, %v722
  %v977 = vmul.f32 %v230, %v725
  %v978 = vmul.f32 %v235, %v730
  %v979 = vmul.f32 %v240, %v733
  %v980 = vmul.f32 %v245, %v738
  %v981 = vmul.f32 %v250, %v741
  %v982 = vmul.f32 %v255, %v746
  %v983 = vmul.f32 %v260, %v749
  %v984 = vmul.f32 %v265, %v754
  %v985 = vmul.f32 %v270, %v757
  %v986 = vmul.f32 %v275, %v762
  %v987 = vmul.f32 %v280, %v765
  %v988 = vmul.f32 %v285, %v770
  %v989 = vmul.f32 %v290, %v773
  %v990 = vmul.f32 %v295, %v778
  %v991 = vmul.f32 %v300, %v781
  %v992 = vmul.f32 %v305, %v786
  %v993 = vmul.f32 %v310, %v789
  %v994 = vmul.f32 %v315, %v794
  %v995 = vmul.f32 %v320, %v797
  %v996 = vmul.f32 %v325, %v802
  %v997 = vmul.f32 %v330, %v805
  %v998 = vmul.f32 %v335, %v810
  %v999 = vmul.f32 %v340, %v813
  %v1000 = vmul.f32 %v345, %v818
  %v1001 = vmul.f32 %v350, %v821
  %v1002 = vmul.f32 %v355, %v826
  %v1003 = vmul.f32 %v360, %v829
  %v1004 = vmul.f32 %v365, %v834
  %v1005 = vmul.f32 %v370, %v837
  %v1006 = vmul.f32 %v375, %v842
  %v1007 = vmul.f32 %v380, %v845
  %v1008 = vmul.f32 %v385, %v850
  %v1009 = vmul.f32 %v390, %v853
  %v1010 = vmul.f32 %v395, %v858
  %v1011 = vmul.f32 %v400, %v861
  %v1012 = vmul.f32 %v405, %v866
  %v1013 = vmul.f32 %v410, %v869
  %v1014 = vmul.f32 %v415, %v874
  %v1015 = vmul.f32 %v420, %v877
  %v1016 = vmul.f32 %v425, %v882
  %v1017 = vmul.f32 %v430, %v885
  %v1018 = vmul.f32 %v435, %v890
  %v1019 = vmul.f32 %v440, %v893
  %v1020 = vmul.f32 %v445, %v898
  %v1021 = vmul.f32 %v450, %v901
  %v1022 = vmul.f32 %v455, %v906
  %v1023 = vmul.f32 %v460, %v909
  %v1024 = vmul.f32 %v465, %v914
  %v1025 = vmul.f32 %v470, %v917
  %v1026 = vmul.f32 %v475, %v922
  %v1027 = vmul.f32 %v480, %v925
  %v1028 = vmul.f32 %v485, %v930
  %v1029 = vmul.f32 %v490, %v933
  %v1030 = vmul.f32 %v495, %v938
  %v1031 = vmul.f32 %v500, %v941
  %v1032 = vmul.f32 %v505, %v946
  %v1033 = vmul.f32 %v510, %v949
  %v1034 = vmul.f32 %v515, %v954
  %v1035 = vmul.f32 %v520, %v957
  %v1036 = vmul.f32 %v525, %v962
  %v1037 = vmul.f32 %v530, %v965
  %v1038 = vmul.f32 %v535, %v970
  %v1039 = vmul.f32 %v540, %v973
  %v1040 = vpack.c.bf16 %v977, %v976
  %v1041 = vpack.c.bf16 %v979, %v978
  %v1042 = vpack.c.bf16 %v981, %v980
  %v1043 = vpack.c.bf16 %v983, %v982
  %v1044 = vpack.c.bf16 %v985, %v984
  %v1045 = vpack.c.bf16 %v987, %v986
  %v1046 = vpack.c.bf16 %v989, %v988
  %v1047 = vpack.c.bf16 %v991, %v990
  %v1048 = vpack.c.bf16 %v993, %v992
  %v1049 = vpack.c.bf16 %v995, %v994
  %v1050 = vpack.c.bf16 %v997, %v996
  %v1051 = vpack.c.bf16 %v999, %v998
  %v1052 = vpack.c.bf16 %v1001, %v1000
  %v1053 = vpack.c.bf16 %v1003, %v1002
  %v1054 = vpack.c.bf16 %v1005, %v1004
  %v1055 = vpack.c.bf16 %v1007, %v1006
  %v1056 = vpack.c.bf16 %v1009, %v1008
  %v1057 = vpack.c.bf16 %v1011, %v1010
  %v1058 = vpack.c.bf16 %v1013, %v1012
  %v1059 = vpack.c.bf16 %v1015, %v1014
  %v1060 = vpack.c.bf16 %v1017, %v1016
  %v1061 = vpack.c.bf16 %v1019, %v1018
  %v1062 = vpack.c.bf16 %v1021, %v1020
  %v1063 = vpack.c.bf16 %v1023, %v1022
  %v1064 = vpack.c.bf16 %v1025, %v1024
  %v1065 = vpack.c.bf16 %v1027, %v1026
  %v1066 = vpack.c.bf16 %v1029, %v1028
  %v1067 = vpack.c.bf16 %v1031, %v1030
  %v1068 = vpack.c.bf16 %v1033, %v1032
  %v1069 = vpack.c.bf16 %v1035, %v1034
  %v1070 = vpack.c.bf16 %v1037, %v1036
  %v1071 = vpack.c.bf16 %v1039, %v1038
  %v1080 = vunpack.c.l.b16 %v88
  %v1081 = vunpack.c.l.b16 %v89
  %v1082 = vunpack.c.l.b16 %v90
  %v1083 = vunpack.c.l.b16 %v91
  %v1084 = vunpack.c.l.b16 %v92
  %v1085 = vunpack.c.l.b16 %v93
  %v1086 = vunpack.c.l.b16 %v94
  %v1087 = vunpack.c.l.b16 %v95
  %v1088 = vpack.c.b16 %v1081, %v1080
  %v1089 = vpack.c.b16 %v1083, %v1082
  %v1090 = vpack.c.b16 %v1085, %v1084
  %v1091 = vpack.c.b16 %v1087, %v1086
  %vm1092 = vcmask 523264
  %v1094 = vsel %vm1092, %v1088, 0
  %v1097 = vsel %vm1092, %v1089, 0
  %v1100 = vsel %vm1092, %v1090, 0
  %v1103 = vsel %vm1092, %v1091, 0
  %1105 = vmatprep.subr.bf16.mxu0 0
  %1106 = vmatpush1.bf16.msra.mxu0 %v1040
  %1107 = vmatprep.subr.bf16.mxu0 0
  %1108 = vmatpush1.bf16.msra.mxu0 %v1041
  %1109 = vmatprep.subr.bf16.mxu0 0
  %1110 = vmatpush1.bf16.msra.mxu0 %v1042
  %1111 = vmatprep.subr.bf16.mxu0 0
  %1112 = vmatpush1.bf16.msra.mxu0 %v1043
  %1113 = vmatprep.subr.bf16.mxu0 0
  %1114 = vmatpush1.bf16.msra.mxu0 0
  %1115 = vmatprep.subr.bf16.mxu0 0
  %1116 = vmatpush1.bf16.msra.mxu0 0
  %1117 = vmatprep.subr.bf16.mxu0 0
  %1118 = vmatpush1.bf16.msra.mxu0 0
  %1119 = vmatprep.subr.bf16.mxu0 0
  %1120 = vmatpush1.bf16.msra.mxu0 0
  %1121 = vmatprep.subr.bf16.mxu0 0
  %1122 = vmatpush1.bf16.msra.mxu0 0
  %1123 = vmatprep.subr.bf16.mxu0 0
  %1124 = vmatpush1.bf16.msra.mxu0 0
  %1125 = vmatprep.subr.bf16.mxu0 0
  %1126 = vmatpush1.bf16.msra.mxu0 0
  %1127 = vmatprep.subr.bf16.mxu0 0
  %1128 = vmatpush1.bf16.msra.mxu0 0
  %1129 = vmatprep.subr.bf16.mxu0 0
  %1130 = vmatpush1.bf16.msra.mxu0 0
  %1131 = vmatprep.subr.bf16.mxu0 0
  %1132 = vmatpush1.bf16.msra.mxu0 0
  %1133 = vmatprep.subr.bf16.mxu0 0
  %1134 = vmatpush1.bf16.msra.mxu0 0
  %1135 = vmatprep.subr.bf16.mxu0 0
  %1136 = vmatpush1.bf16.msra.mxu0 0
  %1137 = vmatprep.mubr.bf16.mxu0 0
  %1138 = vmatmul.mubr.bf16.gmra.mrb[0].mxu0 %v1094
  %v1139 = vpop.f32.mrb[0].mxu0
  %v1140 = vadd.f32 0.0, %v1139
  %v1141 = vpop.f32.mrb[0].mxu0
  %v1142 = vpop.f32.mrb[0].mxu0
  %v1143 = vadd.f32 0.0, %v1142
  %v1144 = vpop.f32.mrb[0].mxu0
  %1145 = vmatprep.mubr.bf16.mxu0 0
  %1146 = vmatmul.mubr.bf16.gmra.mrb[0].mxu0 %v1097
  %v1147 = vpop.f32.mrb[0].mxu0
  %v1148 = vadd.f32 0.0, %v1147
  %v1149 = vpop.f32.mrb[0].mxu0
  %v1150 = vpop.f32.mrb[0].mxu0
  %v1151 = vadd.f32 0.0, %v1150
  %v1152 = vpop.f32.mrb[0].mxu0
  %1153 = vmatprep.mubr.bf16.mxu0 0
  %1154 = vmatmul.mubr.bf16.gmra.mrb[0].mxu0 %v1100
  %v1155 = vpop.f32.mrb[0].mxu0
  %v1156 = vadd.f32 0.0, %v1155
  %v1157 = vpop.f32.mrb[0].mxu0
  %v1158 = vpop.f32.mrb[0].mxu0
  %v1159 = vadd.f32 0.0, %v1158
  %v1160 = vpop.f32.mrb[0].mxu0
  %1161 = vmatprep.mubr.bf16.mxu0 0
  %1162 = vmatmul.mubr.bf16.gmra.mrb[0].mxu0 %v1103
  %v1163 = vpop.f32.mrb[0].mxu0
  %v1164 = vadd.f32 0.0, %v1163
  %v1165 = vpop.f32.mrb[0].mxu0
  %v1166 = vpop.f32.mrb[0].mxu0
  %v1167 = vadd.f32 0.0, %v1166
  %v1168 = vpop.f32.mrb[0].mxu0
  %1169 = vdwg.mxu0
  %v1178 = vunpack.c.l.b16 %v96
  %v1179 = vunpack.c.l.b16 %v97
  %v1180 = vunpack.c.l.b16 %v98
  %v1181 = vunpack.c.l.b16 %v99
  %v1182 = vunpack.c.l.b16 %v100
  %v1183 = vunpack.c.l.b16 %v101
  %v1184 = vunpack.c.l.b16 %v102
  %v1185 = vunpack.c.l.b16 %v103
  %v1186 = vpack.c.b16 %v1179, %v1178
  %v1187 = vpack.c.b16 %v1181, %v1180
  %v1188 = vpack.c.b16 %v1183, %v1182
  %v1189 = vpack.c.b16 %v1185, %v1184
  %v1191 = vsel %vm1092, %v1186, 0
  %v1194 = vsel %vm1092, %v1187, 0
  %v1197 = vsel %vm1092, %v1188, 0
  %v1200 = vsel %vm1092, %v1189, 0
  %1202 = vmatprep.subr.bf16.mxu0 0
  %1203 = vmatpush1.bf16.msra.mxu0 %v1044
  %1204 = vmatprep.subr.bf16.mxu0 0
  %1205 = vmatpush1.bf16.msra.mxu0 %v1045
  %1206 = vmatprep.subr.bf16.mxu0 0
  %1207 = vmatpush1.bf16.msra.mxu0 %v1046
  %1208 = vmatprep.subr.bf16.mxu0 0
  %1209 = vmatpush1.bf16.msra.mxu0 %v1047
  %1210 = vmatprep.subr.bf16.mxu0 0
  %1211 = vmatpush1.bf16.msra.mxu0 0
  %1212 = vmatprep.subr.bf16.mxu0 0
  %1213 = vmatpush1.bf16.msra.mxu0 0
  %1214 = vmatprep.subr.bf16.mxu0 0
  %1215 = vmatpush1.bf16.msra.mxu0 0
  %1216 = vmatprep.subr.bf16.mxu0 0
  %1217 = vmatpush1.bf16.msra.mxu0 0
  %1218 = vmatprep.subr.bf16.mxu0 0
  %1219 = vmatpush1.bf16.msra.mxu0 0
  %1220 = vmatprep.subr.bf16.mxu0 0
  %1221 = vmatpush1.bf16.msra.mxu0 0
  %1222 = vmatprep.subr.bf16.mxu0 0
  %1223 = vmatpush1.bf16.msra.mxu0 0
  %1224 = vmatprep.subr.bf16.mxu0 0
  %1225 = vmatpush1.bf16.msra.mxu0 0
  %1226 = vmatprep.subr.bf16.mxu0 0
  %1227 = vmatpush1.bf16.msra.mxu0 0
  %1228 = vmatprep.subr.bf16.mxu0 0
  %1229 = vmatpush1.bf16.msra.mxu0 0
  %1230 = vmatprep.subr.bf16.mxu0 0
  %1231 = vmatpush1.bf16.msra.mxu0 0
  %1232 = vmatprep.subr.bf16.mxu0 0
  %1233 = vmatpush1.bf16.msra.mxu0 0
  %1234 = vmatprep.mubr.bf16.mxu0 0
  %1235 = vmatmul.mubr.bf16.gmra.mrb[0].mxu0 %v1191
  %v1236 = vpop.f32.mrb[0].mxu0
  %v1237 = vadd.f32 0.0, %v1236
  %v1238 = vpop.f32.mrb[0].mxu0
  %v1239 = vpop.f32.mrb[0].mxu0
  %v1240 = vadd.f32 0.0, %v1239
  %v1241 = vpop.f32.mrb[0].mxu0
  %1242 = vmatprep.mubr.bf16.mxu0 0
  %1243 = vmatmul.mubr.bf16.gmra.mrb[0].mxu0 %v1194
  %v1244 = vpop.f32.mrb[0].mxu0
  %v1245 = vadd.f32 0.0, %v1244
  %v1246 = vpop.f32.mrb[0].mxu0
  %v1247 = vpop.f32.mrb[0].mxu0
  %v1248 = vadd.f32 0.0, %v1247
  %v1249 = vpop.f32.mrb[0].mxu0
  %1250 = vmatprep.mubr.bf16.mxu0 0
  %1251 = vmatmul.mubr.bf16.gmra.mrb[0].mxu0 %v1197
  %v1252 = vpop.f32.mrb[0].mxu0
  %v1253 = vadd.f32 0.0, %v1252
  %v1254 = vpop.f32.mrb[0].mxu0
  %v1255 = vpop.f32.mrb[0].mxu0
  %v1256 = vadd.f32 0.0, %v1255
  %v1257 = vpop.f32.mrb[0].mxu0
  %1258 = vmatprep.mubr.bf16.mxu0 0
  %1259 = vmatmul.mubr.bf16.gmra.mrb[0].mxu0 %v1200
  %v1260 = vpop.f32.mrb[0].mxu0
  %v1261 = vadd.f32 0.0, %v1260
  %v1262 = vpop.f32.mrb[0].mxu0
  %v1263 = vpop.f32.mrb[0].mxu0
  %v1264 = vadd.f32 0.0, %v1263
  %v1265 = vpop.f32.mrb[0].mxu0
  %1266 = vdwg.mxu0
  %v1275 = vunpack.c.l.b16 %v104
  %v1276 = vunpack.c.l.b16 %v105
  %v1277 = vunpack.c.l.b16 %v106
  %v1278 = vunpack.c.l.b16 %v107
  %v1279 = vunpack.c.l.b16 %v108
  %v1280 = vunpack.c.l.b16 %v109
  %v1281 = vunpack.c.l.b16 %v110
  %v1282 = vunpack.c.l.b16 %v111
  %v1283 = vpack.c.b16 %v1276, %v1275
  %v1284 = vpack.c.b16 %v1278, %v1277
  %v1285 = vpack.c.b16 %v1280, %v1279
  %v1286 = vpack.c.b16 %v1282, %v1281
  %v1288 = vsel %vm1092, %v1283, 0
  %v1291 = vsel %vm1092, %v1284, 0
  %v1294 = vsel %vm1092, %v1285, 0
  %v1297 = vsel %vm1092, %v1286, 0
  %1299 = vmatprep.subr.bf16.mxu0 0
  %1300 = vmatpush1.bf16.msra.mxu0 %v1048
  %1301 = vmatprep.subr.bf16.mxu0 0
  %1302 = vmatpush1.bf16.msra.mxu0 %v1049
  %1303 = vmatprep.subr.bf16.mxu0 0
  %1304 = vmatpush1.bf16.msra.mxu0 %v1050
  %1305 = vmatprep.subr.bf16.mxu0 0
  %1306 = vmatpush1.bf16.msra.mxu0 %v1051
  %1307 = vmatprep.subr.bf16.mxu0 0
  %1308 = vmatpush1.bf16.msra.mxu0 0
  %1309 = vmatprep.subr.bf16.mxu0 0
  %1310 = vmatpush1.bf16.msra.mxu0 0
  %1311 = vmatprep.subr.bf16.mxu0 0
  %1312 = vmatpush1.bf16.msra.mxu0 0
  %1313 = vmatprep.subr.bf16.mxu0 0
  %1314 = vmatpush1.bf16.msra.mxu0 0
  %1315 = vmatprep.subr.bf16.mxu0 0
  %1316 = vmatpush1.bf16.msra.mxu0 0
  %1317 = vmatprep.subr.bf16.mxu0 0
  %1318 = vmatpush1.bf16.msra.mxu0 0
  %1319 = vmatprep.subr.bf16.mxu0 0
  %1320 = vmatpush1.bf16.msra.mxu0 0
  %1321 = vmatprep.subr.bf16.mxu0 0
  %1322 = vmatpush1.bf16.msra.mxu0 0
  %1323 = vmatprep.subr.bf16.mxu0 0
  %1324 = vmatpush1.bf16.msra.mxu0 0
  %1325 = vmatprep.subr.bf16.mxu0 0
  %1326 = vmatpush1.bf16.msra.mxu0 0
  %1327 = vmatprep.subr.bf16.mxu0 0
  %1328 = vmatpush1.bf16.msra.mxu0 0
  %1329 = vmatprep.subr.bf16.mxu0 0
  %1330 = vmatpush1.bf16.msra.mxu0 0
  %1331 = vmatprep.mubr.bf16.mxu0 0
  %1332 = vmatmul.mubr.bf16.gmra.mrb[0].mxu0 %v1288
  %v1333 = vpop.f32.mrb[0].mxu0
  %v1334 = vadd.f32 0.0, %v1333
  %v1335 = vpop.f32.mrb[0].mxu0
  %v1336 = vpop.f32.mrb[0].mxu0
  %v1337 = vadd.f32 0.0, %v1336
  %v1338 = vpop.f32.mrb[0].mxu0
  %1339 = vmatprep.mubr.bf16.mxu0 0
  %1340 = vmatmul.mubr.bf16.gmra.mrb[0].mxu0 %v1291
  %v1341 = vpop.f32.mrb[0].mxu0
  %v1342 = vadd.f32 0.0, %v1341
  %v1343 = vpop.f32.mrb[0].mxu0
  %v1344 = vpop.f32.mrb[0].mxu0
  %v1345 = vadd.f32 0.0, %v1344
  %v1346 = vpop.f32.mrb[0].mxu0
  %1347 = vmatprep.mubr.bf16.mxu0 0
  %1348 = vmatmul.mubr.bf16.gmra.mrb[0].mxu0 %v1294
  %v1349 = vpop.f32.mrb[0].mxu0
  %v1350 = vadd.f32 0.0, %v1349
  %v1351 = vpop.f32.mrb[0].mxu0
  %v1352 = vpop.f32.mrb[0].mxu0
  %v1353 = vadd.f32 0.0, %v1352
  %v1354 = vpop.f32.mrb[0].mxu0
  %1355 = vmatprep.mubr.bf16.mxu0 0
  %1356 = vmatmul.mubr.bf16.gmra.mrb[0].mxu0 %v1297
  %v1357 = vpop.f32.mrb[0].mxu0
  %v1358 = vadd.f32 0.0, %v1357
  %v1359 = vpop.f32.mrb[0].mxu0
  %v1360 = vpop.f32.mrb[0].mxu0
  %v1361 = vadd.f32 0.0, %v1360
  %v1362 = vpop.f32.mrb[0].mxu0
  %1363 = vdwg.mxu0
  %v1372 = vunpack.c.l.b16 %v112
  %v1373 = vunpack.c.l.b16 %v113
  %v1374 = vunpack.c.l.b16 %v114
  %v1375 = vunpack.c.l.b16 %v115
  %v1376 = vunpack.c.l.b16 %v116
  %v1377 = vunpack.c.l.b16 %v117
  %v1378 = vunpack.c.l.b16 %v118
  %v1379 = vunpack.c.l.b16 %v119
  %v1380 = vpack.c.b16 %v1373, %v1372
  %v1381 = vpack.c.b16 %v1375, %v1374
  %v1382 = vpack.c.b16 %v1377, %v1376
  %v1383 = vpack.c.b16 %v1379, %v1378
  %v1385 = vsel %vm1092, %v1380, 0
  %v1388 = vsel %vm1092, %v1381, 0
  %v1391 = vsel %vm1092, %v1382, 0
  %v1394 = vsel %vm1092, %v1383, 0
  %1396 = vmatprep.subr.bf16.mxu0 0
  %1397 = vmatpush1.bf16.msra.mxu0 %v1052
  %1398 = vmatprep.subr.bf16.mxu0 0
  %1399 = vmatpush1.bf16.msra.mxu0 %v1053
  %1400 = vmatprep.subr.bf16.mxu0 0
  %1401 = vmatpush1.bf16.msra.mxu0 %v1054
  %1402 = vmatprep.subr.bf16.mxu0 0
  %1403 = vmatpush1.bf16.msra.mxu0 %v1055
  %1404 = vmatprep.subr.bf16.mxu0 0
  %1405 = vmatpush1.bf16.msra.mxu0 0
  %1406 = vmatprep.subr.bf16.mxu0 0
  %1407 = vmatpush1.bf16.msra.mxu0 0
  %1408 = vmatprep.subr.bf16.mxu0 0
  %1409 = vmatpush1.bf16.msra.mxu0 0
  %1410 = vmatprep.subr.bf16.mxu0 0
  %1411 = vmatpush1.bf16.msra.mxu0 0
  %1412 = vmatprep.subr.bf16.mxu0 0
  %1413 = vmatpush1.bf16.msra.mxu0 0
  %1414 = vmatprep.subr.bf16.mxu0 0
  %1415 = vmatpush1.bf16.msra.mxu0 0
  %1416 = vmatprep.subr.bf16.mxu0 0
  %1417 = vmatpush1.bf16.msra.mxu0 0
  %1418 = vmatprep.subr.bf16.mxu0 0
  %1419 = vmatpush1.bf16.msra.mxu0 0
  %1420 = vmatprep.subr.bf16.mxu0 0
  %1421 = vmatpush1.bf16.msra.mxu0 0
  %1422 = vmatprep.subr.bf16.mxu0 0
  %1423 = vmatpush1.bf16.msra.mxu0 0
  %1424 = vmatprep.subr.bf16.mxu0 0
  %1425 = vmatpush1.bf16.msra.mxu0 0
  %1426 = vmatprep.subr.bf16.mxu0 0
  %1427 = vmatpush1.bf16.msra.mxu0 0
  %1428 = vmatprep.mubr.bf16.mxu0 0
  %1429 = vmatmul.mubr.bf16.gmra.mrb[0].mxu0 %v1385
  %v1430 = vpop.f32.mrb[0].mxu0
  %v1431 = vadd.f32 0.0, %v1430
  %v1432 = vpop.f32.mrb[0].mxu0
  %v1433 = vpop.f32.mrb[0].mxu0
  %v1434 = vadd.f32 0.0, %v1433
  %v1435 = vpop.f32.mrb[0].mxu0
  %1436 = vmatprep.mubr.bf16.mxu0 0
  %1437 = vmatmul.mubr.bf16.gmra.mrb[0].mxu0 %v1388
  %v1438 = vpop.f32.mrb[0].mxu0
  %v1439 = vadd.f32 0.0, %v1438
  %v1440 = vpop.f32.mrb[0].mxu0
  %v1441 = vpop.f32.mrb[0].mxu0
  %v1442 = vadd.f32 0.0, %v1441
  %v1443 = vpop.f32.mrb[0].mxu0
  %1444 = vmatprep.mubr.bf16.mxu0 0
  %1445 = vmatmul.mubr.bf16.gmra.mrb[0].mxu0 %v1391
  %v1446 = vpop.f32.mrb[0].mxu0
  %v1447 = vadd.f32 0.0, %v1446
  %v1448 = vpop.f32.mrb[0].mxu0
  %v1449 = vpop.f32.mrb[0].mxu0
  %v1450 = vadd.f32 0.0, %v1449
  %v1451 = vpop.f32.mrb[0].mxu0
  %1452 = vmatprep.mubr.bf16.mxu0 0
  %1453 = vmatmul.mubr.bf16.gmra.mrb[0].mxu0 %v1394
  %v1454 = vpop.f32.mrb[0].mxu0
  %v1455 = vadd.f32 0.0, %v1454
  %v1456 = vpop.f32.mrb[0].mxu0
  %v1457 = vpop.f32.mrb[0].mxu0
  %v1458 = vadd.f32 0.0, %v1457
  %v1459 = vpop.f32.mrb[0].mxu0
  %1460 = vdwg.mxu0
  %v1469 = vunpack.c.l.b16 %v120
  %v1470 = vunpack.c.l.b16 %v121
  %v1471 = vunpack.c.l.b16 %v122
  %v1472 = vunpack.c.l.b16 %v123
  %v1473 = vunpack.c.l.b16 %v124
  %v1474 = vunpack.c.l.b16 %v125
  %v1475 = vunpack.c.l.b16 %v126
  %v1476 = vunpack.c.l.b16 %v127
  %v1477 = vpack.c.b16 %v1470, %v1469
  %v1478 = vpack.c.b16 %v1472, %v1471
  %v1479 = vpack.c.b16 %v1474, %v1473
  %v1480 = vpack.c.b16 %v1476, %v1475
  %v1482 = vsel %vm1092, %v1477, 0
  %v1485 = vsel %vm1092, %v1478, 0
  %v1488 = vsel %vm1092, %v1479, 0
  %v1491 = vsel %vm1092, %v1480, 0
  %1493 = vmatprep.subr.bf16.mxu0 0
  %1494 = vmatpush1.bf16.msra.mxu0 %v1056
  %1495 = vmatprep.subr.bf16.mxu0 0
  %1496 = vmatpush1.bf16.msra.mxu0 %v1057
  %1497 = vmatprep.subr.bf16.mxu0 0
  %1498 = vmatpush1.bf16.msra.mxu0 %v1058
  %1499 = vmatprep.subr.bf16.mxu0 0
  %1500 = vmatpush1.bf16.msra.mxu0 %v1059
  %1501 = vmatprep.subr.bf16.mxu0 0
  %1502 = vmatpush1.bf16.msra.mxu0 0
  %1503 = vmatprep.subr.bf16.mxu0 0
  %1504 = vmatpush1.bf16.msra.mxu0 0
  %1505 = vmatprep.subr.bf16.mxu0 0
  %1506 = vmatpush1.bf16.msra.mxu0 0
  %1507 = vmatprep.subr.bf16.mxu0 0
  %1508 = vmatpush1.bf16.msra.mxu0 0
  %1509 = vmatprep.subr.bf16.mxu0 0
  %1510 = vmatpush1.bf16.msra.mxu0 0
  %1511 = vmatprep.subr.bf16.mxu0 0
  %1512 = vmatpush1.bf16.msra.mxu0 0
  %1513 = vmatprep.subr.bf16.mxu0 0
  %1514 = vmatpush1.bf16.msra.mxu0 0
  %1515 = vmatprep.subr.bf16.mxu0 0
  %1516 = vmatpush1.bf16.msra.mxu0 0
  %1517 = vmatprep.subr.bf16.mxu0 0
  %1518 = vmatpush1.bf16.msra.mxu0 0
  %1519 = vmatprep.subr.bf16.mxu0 0
  %1520 = vmatpush1.bf16.msra.mxu0 0
  %1521 = vmatprep.subr.bf16.mxu0 0
  %1522 = vmatpush1.bf16.msra.mxu0 0
  %1523 = vmatprep.subr.bf16.mxu0 0
  %1524 = vmatpush1.bf16.msra.mxu0 0
  %1525 = vmatprep.mubr.bf16.mxu0 0
  %1526 = vmatmul.mubr.bf16.gmra.mrb[0].mxu0 %v1482
  %v1527 = vpop.f32.mrb[0].mxu0
  %v1528 = vadd.f32 0.0, %v1527
  %v1529 = vpop.f32.mrb[0].mxu0
  %v1530 = vpop.f32.mrb[0].mxu0
  %v1531 = vadd.f32 0.0, %v1530
  %v1532 = vpop.f32.mrb[0].mxu0
  %1533 = vmatprep.mubr.bf16.mxu0 0
  %1534 = vmatmul.mubr.bf16.gmra.mrb[0].mxu0 %v1485
  %v1535 = vpop.f32.mrb[0].mxu0
  %v1536 = vadd.f32 0.0, %v1535
  %v1537 = vpop.f32.mrb[0].mxu0
  %v1538 = vpop.f32.mrb[0].mxu0
  %v1539 = vadd.f32 0.0, %v1538
  %v1540 = vpop.f32.mrb[0].mxu0
  %1541 = vmatprep.mubr.bf16.mxu0 0
  %1542 = vmatmul.mubr.bf16.gmra.mrb[0].mxu0 %v1488
  %v1543 = vpop.f32.mrb[0].mxu0
  %v1544 = vadd.f32 0.0, %v1543
  %v1545 = vpop.f32.mrb[0].mxu0
  %v1546 = vpop.f32.mrb[0].mxu0
  %v1547 = vadd.f32 0.0, %v1546
  %v1548 = vpop.f32.mrb[0].mxu0
  %1549 = vmatprep.mubr.bf16.mxu0 0
  %1550 = vmatmul.mubr.bf16.gmra.mrb[0].mxu0 %v1491
  %v1551 = vpop.f32.mrb[0].mxu0
  %v1552 = vadd.f32 0.0, %v1551
  %v1553 = vpop.f32.mrb[0].mxu0
  %v1554 = vpop.f32.mrb[0].mxu0
  %v1555 = vadd.f32 0.0, %v1554
  %v1556 = vpop.f32.mrb[0].mxu0
  %1557 = vdwg.mxu0
  %v1566 = vunpack.c.l.b16 %v128
  %v1567 = vunpack.c.l.b16 %v129
  %v1568 = vunpack.c.l.b16 %v130
  %v1569 = vunpack.c.l.b16 %v131
  %v1570 = vunpack.c.l.b16 %v132
  %v1571 = vunpack.c.l.b16 %v133
  %v1572 = vunpack.c.l.b16 %v134
  %v1573 = vunpack.c.l.b16 %v135
  %v1574 = vpack.c.b16 %v1567, %v1566
  %v1575 = vpack.c.b16 %v1569, %v1568
  %v1576 = vpack.c.b16 %v1571, %v1570
  %v1577 = vpack.c.b16 %v1573, %v1572
  %v1579 = vsel %vm1092, %v1574, 0
  %v1582 = vsel %vm1092, %v1575, 0
  %v1585 = vsel %vm1092, %v1576, 0
  %v1588 = vsel %vm1092, %v1577, 0
  %1590 = vmatprep.subr.bf16.mxu0 0
  %1591 = vmatpush1.bf16.msra.mxu0 %v1060
  %1592 = vmatprep.subr.bf16.mxu0 0
  %1593 = vmatpush1.bf16.msra.mxu0 %v1061
  %1594 = vmatprep.subr.bf16.mxu0 0
  %1595 = vmatpush1.bf16.msra.mxu0 %v1062
  %1596 = vmatprep.subr.bf16.mxu0 0
  %1597 = vmatpush1.bf16.msra.mxu0 %v1063
  %1598 = vmatprep.subr.bf16.mxu0 0
  %1599 = vmatpush1.bf16.msra.mxu0 0
  %1600 = vmatprep.subr.bf16.mxu0 0
  %1601 = vmatpush1.bf16.msra.mxu0 0
  %1602 = vmatprep.subr.bf16.mxu0 0
  %1603 = vmatpush1.bf16.msra.mxu0 0
  %1604 = vmatprep.subr.bf16.mxu0 0
  %1605 = vmatpush1.bf16.msra.mxu0 0
  %1606 = vmatprep.subr.bf16.mxu0 0
  %1607 = vmatpush1.bf16.msra.mxu0 0
  %1608 = vmatprep.subr.bf16.mxu0 0
  %1609 = vmatpush1.bf16.msra.mxu0 0
  %1610 = vmatprep.subr.bf16.mxu0 0
  %1611 = vmatpush1.bf16.msra.mxu0 0
  %1612 = vmatprep.subr.bf16.mxu0 0
  %1613 = vmatpush1.bf16.msra.mxu0 0
  %1614 = vmatprep.subr.bf16.mxu0 0
  %1615 = vmatpush1.bf16.msra.mxu0 0
  %1616 = vmatprep.subr.bf16.mxu0 0
  %1617 = vmatpush1.bf16.msra.mxu0 0
  %1618 = vmatprep.subr.bf16.mxu0 0
  %1619 = vmatpush1.bf16.msra.mxu0 0
  %1620 = vmatprep.subr.bf16.mxu0 0
  %1621 = vmatpush1.bf16.msra.mxu0 0
  %1622 = vmatprep.mubr.bf16.mxu0 0
  %1623 = vmatmul.mubr.bf16.gmra.mrb[0].mxu0 %v1579
  %v1624 = vpop.f32.mrb[0].mxu0
  %v1625 = vadd.f32 0.0, %v1624
  %v1626 = vpop.f32.mrb[0].mxu0
  %v1627 = vpop.f32.mrb[0].mxu0
  %v1628 = vadd.f32 0.0, %v1627
  %v1629 = vpop.f32.mrb[0].mxu0
  %1630 = vmatprep.mubr.bf16.mxu0 0
  %1631 = vmatmul.mubr.bf16.gmra.mrb[0].mxu0 %v1582
  %v1632 = vpop.f32.mrb[0].mxu0
  %v1633 = vadd.f32 0.0, %v1632
  %v1634 = vpop.f32.mrb[0].mxu0
  %v1635 = vpop.f32.mrb[0].mxu0
  %v1636 = vadd.f32 0.0, %v1635
  %v1637 = vpop.f32.mrb[0].mxu0
  %1638 = vmatprep.mubr.bf16.mxu0 0
  %1639 = vmatmul.mubr.bf16.gmra.mrb[0].mxu0 %v1585
  %v1640 = vpop.f32.mrb[0].mxu0
  %v1641 = vadd.f32 0.0, %v1640
  %v1642 = vpop.f32.mrb[0].mxu0
  %v1643 = vpop.f32.mrb[0].mxu0
  %v1644 = vadd.f32 0.0, %v1643
  %v1645 = vpop.f32.mrb[0].mxu0
  %1646 = vmatprep.mubr.bf16.mxu0 0
  %1647 = vmatmul.mubr.bf16.gmra.mrb[0].mxu0 %v1588
  %v1648 = vpop.f32.mrb[0].mxu0
  %v1649 = vadd.f32 0.0, %v1648
  %v1650 = vpop.f32.mrb[0].mxu0
  %v1651 = vpop.f32.mrb[0].mxu0
  %v1652 = vadd.f32 0.0, %v1651
  %v1653 = vpop.f32.mrb[0].mxu0
  %1654 = vdwg.mxu0
  %v1663 = vunpack.c.l.b16 %v136
  %v1664 = vunpack.c.l.b16 %v137
  %v1665 = vunpack.c.l.b16 %v138
  %v1666 = vunpack.c.l.b16 %v139
  %v1667 = vunpack.c.l.b16 %v140
  %v1668 = vunpack.c.l.b16 %v141
  %v1669 = vunpack.c.l.b16 %v142
  %v1670 = vunpack.c.l.b16 %v143
  %v1671 = vpack.c.b16 %v1664, %v1663
  %v1672 = vpack.c.b16 %v1666, %v1665
  %v1673 = vpack.c.b16 %v1668, %v1667
  %v1674 = vpack.c.b16 %v1670, %v1669
  %v1676 = vsel %vm1092, %v1671, 0
  %v1679 = vsel %vm1092, %v1672, 0
  %v1682 = vsel %vm1092, %v1673, 0
  %v1685 = vsel %vm1092, %v1674, 0
  %1687 = vmatprep.subr.bf16.mxu0 0
  %1688 = vmatpush1.bf16.msra.mxu0 %v1064
  %1689 = vmatprep.subr.bf16.mxu0 0
  %1690 = vmatpush1.bf16.msra.mxu0 %v1065
  %1691 = vmatprep.subr.bf16.mxu0 0
  %1692 = vmatpush1.bf16.msra.mxu0 %v1066
  %1693 = vmatprep.subr.bf16.mxu0 0
  %1694 = vmatpush1.bf16.msra.mxu0 %v1067
  %1695 = vmatprep.subr.bf16.mxu0 0
  %1696 = vmatpush1.bf16.msra.mxu0 0
  %1697 = vmatprep.subr.bf16.mxu0 0
  %1698 = vmatpush1.bf16.msra.mxu0 0
  %1699 = vmatprep.subr.bf16.mxu0 0
  %1700 = vmatpush1.bf16.msra.mxu0 0
  %1701 = vmatprep.subr.bf16.mxu0 0
  %1702 = vmatpush1.bf16.msra.mxu0 0
  %1703 = vmatprep.subr.bf16.mxu0 0
  %1704 = vmatpush1.bf16.msra.mxu0 0
  %1705 = vmatprep.subr.bf16.mxu0 0
  %1706 = vmatpush1.bf16.msra.mxu0 0
  %1707 = vmatprep.subr.bf16.mxu0 0
  %1708 = vmatpush1.bf16.msra.mxu0 0
  %1709 = vmatprep.subr.bf16.mxu0 0
  %1710 = vmatpush1.bf16.msra.mxu0 0
  %1711 = vmatprep.subr.bf16.mxu0 0
  %1712 = vmatpush1.bf16.msra.mxu0 0
  %1713 = vmatprep.subr.bf16.mxu0 0
  %1714 = vmatpush1.bf16.msra.mxu0 0
  %1715 = vmatprep.subr.bf16.mxu0 0
  %1716 = vmatpush1.bf16.msra.mxu0 0
  %1717 = vmatprep.subr.bf16.mxu0 0
  %1718 = vmatpush1.bf16.msra.mxu0 0
  %1719 = vmatprep.mubr.bf16.mxu0 0
  %1720 = vmatmul.mubr.bf16.gmra.mrb[0].mxu0 %v1676
  %v1721 = vpop.f32.mrb[0].mxu0
  %v1722 = vadd.f32 0.0, %v1721
  %v1723 = vpop.f32.mrb[0].mxu0
  %v1724 = vpop.f32.mrb[0].mxu0
  %v1725 = vadd.f32 0.0, %v1724
  %v1726 = vpop.f32.mrb[0].mxu0
  %1727 = vmatprep.mubr.bf16.mxu0 0
  %1728 = vmatmul.mubr.bf16.gmra.mrb[0].mxu0 %v1679
  %v1729 = vpop.f32.mrb[0].mxu0
  %v1730 = vadd.f32 0.0, %v1729
  %v1731 = vpop.f32.mrb[0].mxu0
  %v1732 = vpop.f32.mrb[0].mxu0
  %v1733 = vadd.f32 0.0, %v1732
  %v1734 = vpop.f32.mrb[0].mxu0
  %1735 = vmatprep.mubr.bf16.mxu0 0
  %1736 = vmatmul.mubr.bf16.gmra.mrb[0].mxu0 %v1682
  %v1737 = vpop.f32.mrb[0].mxu0
  %v1738 = vadd.f32 0.0, %v1737
  %v1739 = vpop.f32.mrb[0].mxu0
  %v1740 = vpop.f32.mrb[0].mxu0
  %v1741 = vadd.f32 0.0, %v1740
  %v1742 = vpop.f32.mrb[0].mxu0
  %1743 = vmatprep.mubr.bf16.mxu0 0
  %1744 = vmatmul.mubr.bf16.gmra.mrb[0].mxu0 %v1685
  %v1745 = vpop.f32.mrb[0].mxu0
  %v1746 = vadd.f32 0.0, %v1745
  %v1747 = vpop.f32.mrb[0].mxu0
  %v1748 = vpop.f32.mrb[0].mxu0
  %v1749 = vadd.f32 0.0, %v1748
  %v1750 = vpop.f32.mrb[0].mxu0
  %1751 = vdwg.mxu0
  %v1760 = vunpack.c.l.b16 %v144
  %v1761 = vunpack.c.l.b16 %v145
  %v1762 = vunpack.c.l.b16 %v146
  %v1763 = vunpack.c.l.b16 %v147
  %v1764 = vunpack.c.l.b16 %v148
  %v1765 = vunpack.c.l.b16 %v149
  %v1766 = vunpack.c.l.b16 %v150
  %v1767 = vunpack.c.l.b16 %v151
  %v1768 = vpack.c.b16 %v1761, %v1760
  %v1769 = vpack.c.b16 %v1763, %v1762
  %v1770 = vpack.c.b16 %v1765, %v1764
  %v1771 = vpack.c.b16 %v1767, %v1766
  %v1773 = vsel %vm1092, %v1768, 0
  %v1776 = vsel %vm1092, %v1769, 0
  %v1779 = vsel %vm1092, %v1770, 0
  %v1782 = vsel %vm1092, %v1771, 0
  %1784 = vmatprep.subr.bf16.mxu0 0
  %1785 = vmatpush1.bf16.msra.mxu0 %v1068
  %1786 = vmatprep.subr.bf16.mxu0 0
  %1787 = vmatpush1.bf16.msra.mxu0 %v1069
  %1788 = vmatprep.subr.bf16.mxu0 0
  %1789 = vmatpush1.bf16.msra.mxu0 %v1070
  %1790 = vmatprep.subr.bf16.mxu0 0
  %1791 = vmatpush1.bf16.msra.mxu0 %v1071
  %1792 = vmatprep.subr.bf16.mxu0 0
  %1793 = vmatpush1.bf16.msra.mxu0 0
  %1794 = vmatprep.subr.bf16.mxu0 0
  %1795 = vmatpush1.bf16.msra.mxu0 0
  %1796 = vmatprep.subr.bf16.mxu0 0
  %1797 = vmatpush1.bf16.msra.mxu0 0
  %1798 = vmatprep.subr.bf16.mxu0 0
  %1799 = vmatpush1.bf16.msra.mxu0 0
  %1800 = vmatprep.subr.bf16.mxu0 0
  %1801 = vmatpush1.bf16.msra.mxu0 0
  %1802 = vmatprep.subr.bf16.mxu0 0
  %1803 = vmatpush1.bf16.msra.mxu0 0
  %1804 = vmatprep.subr.bf16.mxu0 0
  %1805 = vmatpush1.bf16.msra.mxu0 0
  %1806 = vmatprep.subr.bf16.mxu0 0
  %1807 = vmatpush1.bf16.msra.mxu0 0
  %1808 = vmatprep.subr.bf16.mxu0 0
  %1809 = vmatpush1.bf16.msra.mxu0 0
  %1810 = vmatprep.subr.bf16.mxu0 0
  %1811 = vmatpush1.bf16.msra.mxu0 0
  %1812 = vmatprep.subr.bf16.mxu0 0
  %1813 = vmatpush1.bf16.msra.mxu0 0
  %1814 = vmatprep.subr.bf16.mxu0 0
  %1815 = vmatpush1.bf16.msra.mxu0 0
  %1816 = vmatprep.mubr.bf16.mxu0 0
  %1817 = vmatmul.mubr.bf16.gmra.mrb[0].mxu0 %v1773
  %v1818 = vpop.f32.mrb[0].mxu0
  %v1819 = vadd.f32 0.0, %v1818
  %v1820 = vpop.f32.mrb[0].mxu0
  %v1821 = vpop.f32.mrb[0].mxu0
  %v1822 = vadd.f32 0.0, %v1821
  %v1823 = vpop.f32.mrb[0].mxu0
  %1824 = vmatprep.mubr.bf16.mxu0 0
  %1825 = vmatmul.mubr.bf16.gmra.mrb[0].mxu0 %v1776
  %v1826 = vpop.f32.mrb[0].mxu0
  %v1827 = vadd.f32 0.0, %v1826
  %v1828 = vpop.f32.mrb[0].mxu0
  %v1829 = vpop.f32.mrb[0].mxu0
  %v1830 = vadd.f32 0.0, %v1829
  %v1831 = vpop.f32.mrb[0].mxu0
  %1832 = vmatprep.mubr.bf16.mxu0 0
  %1833 = vmatmul.mubr.bf16.gmra.mrb[0].mxu0 %v1779
  %v1834 = vpop.f32.mrb[0].mxu0
  %v1835 = vadd.f32 0.0, %v1834
  %v1836 = vpop.f32.mrb[0].mxu0
  %v1837 = vpop.f32.mrb[0].mxu0
  %v1838 = vadd.f32 0.0, %v1837
  %v1839 = vpop.f32.mrb[0].mxu0
  %1840 = vmatprep.mubr.bf16.mxu0 0
  %1841 = vmatmul.mubr.bf16.gmra.mrb[0].mxu0 %v1782
  %v1842 = vpop.f32.mrb[0].mxu0
  %v1843 = vadd.f32 0.0, %v1842
  %v1844 = vpop.f32.mrb[0].mxu0
  %v1845 = vpop.f32.mrb[0].mxu0
  %v1846 = vadd.f32 0.0, %v1845
  %v1847 = vpop.f32.mrb[0].mxu0
  %1848 = vdwg.mxu0
  %v1849 = vmul.f32 %v225, %v1140
  %v1850 = vmul.f32 %v230, %v1143
  %v1851 = vmul.f32 %v235, %v1148
  %v1852 = vmul.f32 %v240, %v1151
  %v1853 = vmul.f32 %v245, %v1156
  %v1854 = vmul.f32 %v250, %v1159
  %v1855 = vmul.f32 %v255, %v1164
  %v1856 = vmul.f32 %v260, %v1167
  %v1857 = vmul.f32 %v265, %v1237
  %v1858 = vmul.f32 %v270, %v1240
  %v1859 = vmul.f32 %v275, %v1245
  %v1860 = vmul.f32 %v280, %v1248
  %v1861 = vmul.f32 %v285, %v1253
  %v1862 = vmul.f32 %v290, %v1256
  %v1863 = vmul.f32 %v295, %v1261
  %v1864 = vmul.f32 %v300, %v1264
  %v1865 = vmul.f32 %v305, %v1334
  %v1866 = vmul.f32 %v310, %v1337
  %v1867 = vmul.f32 %v315, %v1342
  %v1868 = vmul.f32 %v320, %v1345
  %v1869 = vmul.f32 %v325, %v1350
  %v1870 = vmul.f32 %v330, %v1353
  %v1871 = vmul.f32 %v335, %v1358
  %v1872 = vmul.f32 %v340, %v1361
  %v1873 = vmul.f32 %v345, %v1431
  %v1874 = vmul.f32 %v350, %v1434
  %v1875 = vmul.f32 %v355, %v1439
  %v1876 = vmul.f32 %v360, %v1442
  %v1877 = vmul.f32 %v365, %v1447
  %v1878 = vmul.f32 %v370, %v1450
  %v1879 = vmul.f32 %v375, %v1455
  %v1880 = vmul.f32 %v380, %v1458
  %v1881 = vmul.f32 %v385, %v1528
  %v1882 = vmul.f32 %v390, %v1531
  %v1883 = vmul.f32 %v395, %v1536
  %v1884 = vmul.f32 %v400, %v1539
  %v1885 = vmul.f32 %v405, %v1544
  %v1886 = vmul.f32 %v410, %v1547
  %v1887 = vmul.f32 %v415, %v1552
  %v1888 = vmul.f32 %v420, %v1555
  %v1889 = vmul.f32 %v425, %v1625
  %v1890 = vmul.f32 %v430, %v1628
  %v1891 = vmul.f32 %v435, %v1633
  %v1892 = vmul.f32 %v440, %v1636
  %v1893 = vmul.f32 %v445, %v1641
  %v1894 = vmul.f32 %v450, %v1644
  %v1895 = vmul.f32 %v455, %v1649
  %v1896 = vmul.f32 %v460, %v1652
  %v1897 = vmul.f32 %v465, %v1722
  %v1898 = vmul.f32 %v470, %v1725
  %v1899 = vmul.f32 %v475, %v1730
  %v1900 = vmul.f32 %v480, %v1733
  %v1901 = vmul.f32 %v485, %v1738
  %v1902 = vmul.f32 %v490, %v1741
  %v1903 = vmul.f32 %v495, %v1746
  %v1904 = vmul.f32 %v500, %v1749
  %v1905 = vmul.f32 %v505, %v1819
  %v1906 = vmul.f32 %v510, %v1822
  %v1907 = vmul.f32 %v515, %v1827
  %v1908 = vmul.f32 %v520, %v1830
  %v1909 = vmul.f32 %v525, %v1835
  %v1910 = vmul.f32 %v530, %v1838
  %v1911 = vmul.f32 %v535, %v1843
  %v1912 = vmul.f32 %v540, %v1846
  %v1913 = vlaneseq
  %v1914 = vshrl.u32 %v1913, 7
  %v1915 = vsub.s32 0, %v1914
  %v1916 = vrot.slane %v216, %v1915
  %v1917 = vadd.f32 %v1849, %v1916
  %v1918 = vadd.f32 %v1850, %v1916
  %v1919 = vadd.f32 %v1851, %v1916
  %v1920 = vadd.f32 %v1852, %v1916
  %v1921 = vadd.f32 %v1853, %v1916
  %v1922 = vadd.f32 %v1854, %v1916
  %v1923 = vadd.f32 %v1855, %v1916
  %v1924 = vadd.f32 %v1856, %v1916
  %v1925 = vadd.f32 %v1857, %v1916
  %v1926 = vadd.f32 %v1858, %v1916
  %v1927 = vadd.f32 %v1859, %v1916
  %v1928 = vadd.f32 %v1860, %v1916
  %v1929 = vadd.f32 %v1861, %v1916
  %v1930 = vadd.f32 %v1862, %v1916
  %v1931 = vadd.f32 %v1863, %v1916
  %v1932 = vadd.f32 %v1864, %v1916
  %v1933 = vadd.f32 %v1865, %v1916
  %v1934 = vadd.f32 %v1866, %v1916
  %v1935 = vadd.f32 %v1867, %v1916
  %v1936 = vadd.f32 %v1868, %v1916
  %v1937 = vadd.f32 %v1869, %v1916
  %v1938 = vadd.f32 %v1870, %v1916
  %v1939 = vadd.f32 %v1871, %v1916
  %v1940 = vadd.f32 %v1872, %v1916
  %v1941 = vadd.f32 %v1873, %v1916
  %v1942 = vadd.f32 %v1874, %v1916
  %v1943 = vadd.f32 %v1875, %v1916
  %v1944 = vadd.f32 %v1876, %v1916
  %v1945 = vadd.f32 %v1877, %v1916
  %v1946 = vadd.f32 %v1878, %v1916
  %v1947 = vadd.f32 %v1879, %v1916
  %v1948 = vadd.f32 %v1880, %v1916
  %v1949 = vadd.f32 %v1881, %v1916
  %v1950 = vadd.f32 %v1882, %v1916
  %v1951 = vadd.f32 %v1883, %v1916
  %v1952 = vadd.f32 %v1884, %v1916
  %v1953 = vadd.f32 %v1885, %v1916
  %v1954 = vadd.f32 %v1886, %v1916
  %v1955 = vadd.f32 %v1887, %v1916
  %v1956 = vadd.f32 %v1888, %v1916
  %v1957 = vadd.f32 %v1889, %v1916
  %v1958 = vadd.f32 %v1890, %v1916
  %v1959 = vadd.f32 %v1891, %v1916
  %v1960 = vadd.f32 %v1892, %v1916
  %v1961 = vadd.f32 %v1893, %v1916
  %v1962 = vadd.f32 %v1894, %v1916
  %v1963 = vadd.f32 %v1895, %v1916
  %v1964 = vadd.f32 %v1896, %v1916
  %v1965 = vadd.f32 %v1897, %v1916
  %v1966 = vadd.f32 %v1898, %v1916
  %v1967 = vadd.f32 %v1899, %v1916
  %v1968 = vadd.f32 %v1900, %v1916
  %v1969 = vadd.f32 %v1901, %v1916
  %v1970 = vadd.f32 %v1902, %v1916
  %v1971 = vadd.f32 %v1903, %v1916
  %v1972 = vadd.f32 %v1904, %v1916
  %v1973 = vadd.f32 %v1905, %v1916
  %v1974 = vadd.f32 %v1906, %v1916
  %v1975 = vadd.f32 %v1907, %v1916
  %v1976 = vadd.f32 %v1908, %v1916
  %v1977 = vadd.f32 %v1909, %v1916
  %v1978 = vadd.f32 %v1910, %v1916
  %v1979 = vadd.f32 %v1911, %v1916
  %v1980 = vadd.f32 %v1912, %v1916
  %vm1981 = vcmp.ge.f32.partialorder %v1917, 0.0
  %vm1982 = vcmp.ge.f32.partialorder %v1918, 0.0
  %vm1983 = vcmp.ge.f32.partialorder %v1919, 0.0
  %vm1984 = vcmp.ge.f32.partialorder %v1920, 0.0
  %vm1985 = vcmp.ge.f32.partialorder %v1921, 0.0
  %vm1986 = vcmp.ge.f32.partialorder %v1922, 0.0
  %vm1987 = vcmp.ge.f32.partialorder %v1923, 0.0
  %vm1988 = vcmp.ge.f32.partialorder %v1924, 0.0
  %vm1989 = vcmp.ge.f32.partialorder %v1925, 0.0
  %vm1990 = vcmp.ge.f32.partialorder %v1926, 0.0
  %vm1991 = vcmp.ge.f32.partialorder %v1927, 0.0
  %vm1992 = vcmp.ge.f32.partialorder %v1928, 0.0
  %vm1993 = vcmp.ge.f32.partialorder %v1929, 0.0
  %vm1994 = vcmp.ge.f32.partialorder %v1930, 0.0
  %vm1995 = vcmp.ge.f32.partialorder %v1931, 0.0
  %vm1996 = vcmp.ge.f32.partialorder %v1932, 0.0
  %vm1997 = vcmp.ge.f32.partialorder %v1933, 0.0
  %vm1998 = vcmp.ge.f32.partialorder %v1934, 0.0
  %vm1999 = vcmp.ge.f32.partialorder %v1935, 0.0
  %vm2000 = vcmp.ge.f32.partialorder %v1936, 0.0
  %vm2001 = vcmp.ge.f32.partialorder %v1937, 0.0
  %vm2002 = vcmp.ge.f32.partialorder %v1938, 0.0
  %vm2003 = vcmp.ge.f32.partialorder %v1939, 0.0
  %vm2004 = vcmp.ge.f32.partialorder %v1940, 0.0
  %vm2005 = vcmp.ge.f32.partialorder %v1941, 0.0
  %vm2006 = vcmp.ge.f32.partialorder %v1942, 0.0
  %vm2007 = vcmp.ge.f32.partialorder %v1943, 0.0
  %vm2008 = vcmp.ge.f32.partialorder %v1944, 0.0
  %vm2009 = vcmp.ge.f32.partialorder %v1945, 0.0
  %vm2010 = vcmp.ge.f32.partialorder %v1946, 0.0
  %vm2011 = vcmp.ge.f32.partialorder %v1947, 0.0
  %vm2012 = vcmp.ge.f32.partialorder %v1948, 0.0
  %vm2013 = vcmp.ge.f32.partialorder %v1949, 0.0
  %vm2014 = vcmp.ge.f32.partialorder %v1950, 0.0
  %vm2015 = vcmp.ge.f32.partialorder %v1951, 0.0
  %vm2016 = vcmp.ge.f32.partialorder %v1952, 0.0
  %vm2017 = vcmp.ge.f32.partialorder %v1953, 0.0
  %vm2018 = vcmp.ge.f32.partialorder %v1954, 0.0
  %vm2019 = vcmp.ge.f32.partialorder %v1955, 0.0
  %vm2020 = vcmp.ge.f32.partialorder %v1956, 0.0
  %vm2021 = vcmp.ge.f32.partialorder %v1957, 0.0
  %vm2022 = vcmp.ge.f32.partialorder %v1958, 0.0
  %vm2023 = vcmp.ge.f32.partialorder %v1959, 0.0
  %vm2024 = vcmp.ge.f32.partialorder %v1960, 0.0
  %vm2025 = vcmp.ge.f32.partialorder %v1961, 0.0
  %vm2026 = vcmp.ge.f32.partialorder %v1962, 0.0
  %vm2027 = vcmp.ge.f32.partialorder %v1963, 0.0
  %vm2028 = vcmp.ge.f32.partialorder %v1964, 0.0
  %vm2029 = vcmp.ge.f32.partialorder %v1965, 0.0
  %vm2030 = vcmp.ge.f32.partialorder %v1966, 0.0
  %vm2031 = vcmp.ge.f32.partialorder %v1967, 0.0
  %vm2032 = vcmp.ge.f32.partialorder %v1968, 0.0
  %vm2033 = vcmp.ge.f32.partialorder %v1969, 0.0
  %vm2034 = vcmp.ge.f32.partialorder %v1970, 0.0
  %vm2035 = vcmp.ge.f32.partialorder %v1971, 0.0
  %vm2036 = vcmp.ge.f32.partialorder %v1972, 0.0
  %vm2037 = vcmp.ge.f32.partialorder %v1973, 0.0
  %vm2038 = vcmp.ge.f32.partialorder %v1974, 0.0
  %vm2039 = vcmp.ge.f32.partialorder %v1975, 0.0
  %vm2040 = vcmp.ge.f32.partialorder %v1976, 0.0
  %vm2041 = vcmp.ge.f32.partialorder %v1977, 0.0
  %vm2042 = vcmp.ge.f32.partialorder %v1978, 0.0
  %vm2043 = vcmp.ge.f32.partialorder %v1979, 0.0
  %vm2044 = vcmp.ge.f32.partialorder %v1980, 0.0
  %v2045 = vmul.f32 %v1917, 0.01
  %v2046 = vmul.f32 %v1918, 0.01
  %v2047 = vmul.f32 %v1919, 0.01
  %v2048 = vmul.f32 %v1920, 0.01
  %v2049 = vmul.f32 %v1921, 0.01
  %v2050 = vmul.f32 %v1922, 0.01
  %v2051 = vmul.f32 %v1923, 0.01
  %v2052 = vmul.f32 %v1924, 0.01
  %v2053 = vmul.f32 %v1925, 0.01
  %v2054 = vmul.f32 %v1926, 0.01
  %v2055 = vmul.f32 %v1927, 0.01
  %v2056 = vmul.f32 %v1928, 0.01
  %v2057 = vmul.f32 %v1929, 0.01
  %v2058 = vmul.f32 %v1930, 0.01
  %v2059 = vmul.f32 %v1931, 0.01
  %v2060 = vmul.f32 %v1932, 0.01
  %v2061 = vmul.f32 %v1933, 0.01
  %v2062 = vmul.f32 %v1934, 0.01
  %v2063 = vmul.f32 %v1935, 0.01
  %v2064 = vmul.f32 %v1936, 0.01
  %v2065 = vmul.f32 %v1937, 0.01
  %v2066 = vmul.f32 %v1938, 0.01
  %v2067 = vmul.f32 %v1939, 0.01
  %v2068 = vmul.f32 %v1940, 0.01
  %v2069 = vmul.f32 %v1941, 0.01
  %v2070 = vmul.f32 %v1942, 0.01
  %v2071 = vmul.f32 %v1943, 0.01
  %v2072 = vmul.f32 %v1944, 0.01
  %v2073 = vmul.f32 %v1945, 0.01
  %v2074 = vmul.f32 %v1946, 0.01
  %v2075 = vmul.f32 %v1947, 0.01
  %v2076 = vmul.f32 %v1948, 0.01
  %v2077 = vmul.f32 %v1949, 0.01
  %v2078 = vmul.f32 %v1950, 0.01
  %v2079 = vmul.f32 %v1951, 0.01
  %v2080 = vmul.f32 %v1952, 0.01
  %v2081 = vmul.f32 %v1953, 0.01
  %v2082 = vmul.f32 %v1954, 0.01
  %v2083 = vmul.f32 %v1955, 0.01
  %v2084 = vmul.f32 %v1956, 0.01
  %v2085 = vmul.f32 %v1957, 0.01
  %v2086 = vmul.f32 %v1958, 0.01
  %v2087 = vmul.f32 %v1959, 0.01
  %v2088 = vmul.f32 %v1960, 0.01
  %v2089 = vmul.f32 %v1961, 0.01
  %v2090 = vmul.f32 %v1962, 0.01
  %v2091 = vmul.f32 %v1963, 0.01
  %v2092 = vmul.f32 %v1964, 0.01
  %v2093 = vmul.f32 %v1965, 0.01
  %v2094 = vmul.f32 %v1966, 0.01
  %v2095 = vmul.f32 %v1967, 0.01
  %v2096 = vmul.f32 %v1968, 0.01
  %v2097 = vmul.f32 %v1969, 0.01
  %v2098 = vmul.f32 %v1970, 0.01
  %v2099 = vmul.f32 %v1971, 0.01
  %v2100 = vmul.f32 %v1972, 0.01
  %v2101 = vmul.f32 %v1973, 0.01
  %v2102 = vmul.f32 %v1974, 0.01
  %v2103 = vmul.f32 %v1975, 0.01
  %v2104 = vmul.f32 %v1976, 0.01
  %v2105 = vmul.f32 %v1977, 0.01
  %v2106 = vmul.f32 %v1978, 0.01
  %v2107 = vmul.f32 %v1979, 0.01
  %v2108 = vmul.f32 %v1980, 0.01
  %v2109 = vsel %vm1981, %v1917, %v2045
  %v2110 = vsel %vm1982, %v1918, %v2046
  %v2111 = vsel %vm1983, %v1919, %v2047
  %v2112 = vsel %vm1984, %v1920, %v2048
  %v2113 = vsel %vm1985, %v1921, %v2049
  %v2114 = vsel %vm1986, %v1922, %v2050
  %v2115 = vsel %vm1987, %v1923, %v2051
  %v2116 = vsel %vm1988, %v1924, %v2052
  %v2117 = vsel %vm1989, %v1925, %v2053
  %v2118 = vsel %vm1990, %v1926, %v2054
  %v2119 = vsel %vm1991, %v1927, %v2055
  %v2120 = vsel %vm1992, %v1928, %v2056
  %v2121 = vsel %vm1993, %v1929, %v2057
  %v2122 = vsel %vm1994, %v1930, %v2058
  %v2123 = vsel %vm1995, %v1931, %v2059
  %v2124 = vsel %vm1996, %v1932, %v2060
  %v2125 = vsel %vm1997, %v1933, %v2061
  %v2126 = vsel %vm1998, %v1934, %v2062
  %v2127 = vsel %vm1999, %v1935, %v2063
  %v2128 = vsel %vm2000, %v1936, %v2064
  %v2129 = vsel %vm2001, %v1937, %v2065
  %v2130 = vsel %vm2002, %v1938, %v2066
  %v2131 = vsel %vm2003, %v1939, %v2067
  %v2132 = vsel %vm2004, %v1940, %v2068
  %v2133 = vsel %vm2005, %v1941, %v2069
  %v2134 = vsel %vm2006, %v1942, %v2070
  %v2135 = vsel %vm2007, %v1943, %v2071
  %v2136 = vsel %vm2008, %v1944, %v2072
  %v2137 = vsel %vm2009, %v1945, %v2073
  %v2138 = vsel %vm2010, %v1946, %v2074
  %v2139 = vsel %vm2011, %v1947, %v2075
  %v2140 = vsel %vm2012, %v1948, %v2076
  %v2141 = vsel %vm2013, %v1949, %v2077
  %v2142 = vsel %vm2014, %v1950, %v2078
  %v2143 = vsel %vm2015, %v1951, %v2079
  %v2144 = vsel %vm2016, %v1952, %v2080
  %v2145 = vsel %vm2017, %v1953, %v2081
  %v2146 = vsel %vm2018, %v1954, %v2082
  %v2147 = vsel %vm2019, %v1955, %v2083
  %v2148 = vsel %vm2020, %v1956, %v2084
  %v2149 = vsel %vm2021, %v1957, %v2085
  %v2150 = vsel %vm2022, %v1958, %v2086
  %v2151 = vsel %vm2023, %v1959, %v2087
  %v2152 = vsel %vm2024, %v1960, %v2088
  %v2153 = vsel %vm2025, %v1961, %v2089
  %v2154 = vsel %vm2026, %v1962, %v2090
  %v2155 = vsel %vm2027, %v1963, %v2091
  %v2156 = vsel %vm2028, %v1964, %v2092
  %v2157 = vsel %vm2029, %v1965, %v2093
  %v2158 = vsel %vm2030, %v1966, %v2094
  %v2159 = vsel %vm2031, %v1967, %v2095
  %v2160 = vsel %vm2032, %v1968, %v2096
  %v2161 = vsel %vm2033, %v1969, %v2097
  %v2162 = vsel %vm2034, %v1970, %v2098
  %v2163 = vsel %vm2035, %v1971, %v2099
  %v2164 = vsel %vm2036, %v1972, %v2100
  %v2165 = vsel %vm2037, %v1973, %v2101
  %v2166 = vsel %vm2038, %v1974, %v2102
  %v2167 = vsel %vm2039, %v1975, %v2103
  %v2168 = vsel %vm2040, %v1976, %v2104
  %v2169 = vsel %vm2041, %v1977, %v2105
  %v2170 = vsel %vm2042, %v1978, %v2106
  %v2171 = vsel %vm2043, %v1979, %v2107
  %v2172 = vsel %vm2044, %v1980, %v2108
  %v2173 = vadd.f32 %v2109, %v24
  %v2174 = vadd.f32 %v2110, %v25
  %v2175 = vadd.f32 %v2111, %v26
  %v2176 = vadd.f32 %v2112, %v27
  %v2177 = vadd.f32 %v2113, %v28
  %v2178 = vadd.f32 %v2114, %v29
  %v2179 = vadd.f32 %v2115, %v30
  %v2180 = vadd.f32 %v2116, %v31
  %v2181 = vadd.f32 %v2117, %v32
  %v2182 = vadd.f32 %v2118, %v33
  %v2183 = vadd.f32 %v2119, %v34
  %v2184 = vadd.f32 %v2120, %v35
  %v2185 = vadd.f32 %v2121, %v36
  %v2186 = vadd.f32 %v2122, %v37
  %v2187 = vadd.f32 %v2123, %v38
  %v2188 = vadd.f32 %v2124, %v39
  %v2189 = vadd.f32 %v2125, %v40
  %v2190 = vadd.f32 %v2126, %v41
  %v2191 = vadd.f32 %v2127, %v42
  %v2192 = vadd.f32 %v2128, %v43
  %v2193 = vadd.f32 %v2129, %v44
  %v2194 = vadd.f32 %v2130, %v45
  %v2195 = vadd.f32 %v2131, %v46
  %v2196 = vadd.f32 %v2132, %v47
  %v2197 = vadd.f32 %v2133, %v48
  %v2198 = vadd.f32 %v2134, %v49
  %v2199 = vadd.f32 %v2135, %v50
  %v2200 = vadd.f32 %v2136, %v51
  %v2201 = vadd.f32 %v2137, %v52
  %v2202 = vadd.f32 %v2138, %v53
  %v2203 = vadd.f32 %v2139, %v54
  %v2204 = vadd.f32 %v2140, %v55
  %v2205 = vadd.f32 %v2141, %v56
  %v2206 = vadd.f32 %v2142, %v57
  %v2207 = vadd.f32 %v2143, %v58
  %v2208 = vadd.f32 %v2144, %v59
  %v2209 = vadd.f32 %v2145, %v60
  %v2210 = vadd.f32 %v2146, %v61
  %v2211 = vadd.f32 %v2147, %v62
  %v2212 = vadd.f32 %v2148, %v63
  %v2213 = vadd.f32 %v2149, %v64
  %v2214 = vadd.f32 %v2150, %v65
  %v2215 = vadd.f32 %v2151, %v66
  %v2216 = vadd.f32 %v2152, %v67
  %v2217 = vadd.f32 %v2153, %v68
  %v2218 = vadd.f32 %v2154, %v69
  %v2219 = vadd.f32 %v2155, %v70
  %v2220 = vadd.f32 %v2156, %v71
  %v2221 = vadd.f32 %v2157, %v72
  %v2222 = vadd.f32 %v2158, %v73
  %v2223 = vadd.f32 %v2159, %v74
  %v2224 = vadd.f32 %v2160, %v75
  %v2225 = vadd.f32 %v2161, %v76
  %v2226 = vadd.f32 %v2162, %v77
  %v2227 = vadd.f32 %v2163, %v78
  %v2228 = vadd.f32 %v2164, %v79
  %v2229 = vadd.f32 %v2165, %v80
  %v2230 = vadd.f32 %v2166, %v81
  %v2231 = vadd.f32 %v2167, %v82
  %v2232 = vadd.f32 %v2168, %v83
  %v2233 = vadd.f32 %v2169, %v84
  %v2234 = vadd.f32 %v2170, %v85
  %v2235 = vadd.f32 %v2171, %v86
  %v2236 = vadd.f32 %v2172, %v87
  %v2237 = vsel %vm590, %v2173, 0.0
  %2238 = vadd.xlane.f32.xlu0 %v2237
  %v2239 = vpop.xlane.xlu0 %2238
  %v2240 = vsel %vm590, %v2174, 0.0
  %2241 = vadd.xlane.f32.xlu0 %v2240
  %v2242 = vpop.xlane.xlu0 %2241
  %v2243 = vsel %vm590, %v2175, 0.0
  %2244 = vadd.xlane.f32.xlu0 %v2243
  %v2245 = vpop.xlane.xlu0 %2244
  %v2246 = vsel %vm590, %v2176, 0.0
  %2247 = vadd.xlane.f32.xlu0 %v2246
  %v2248 = vpop.xlane.xlu0 %2247
  %v2249 = vsel %vm590, %v2177, 0.0
  %2250 = vadd.xlane.f32.xlu0 %v2249
  %v2251 = vpop.xlane.xlu0 %2250
  %v2252 = vsel %vm590, %v2178, 0.0
  %2253 = vadd.xlane.f32.xlu0 %v2252
  %v2254 = vpop.xlane.xlu0 %2253
  %v2255 = vsel %vm590, %v2179, 0.0
  %2256 = vadd.xlane.f32.xlu0 %v2255
  %v2257 = vpop.xlane.xlu0 %2256
  %v2258 = vsel %vm590, %v2180, 0.0
  %2259 = vadd.xlane.f32.xlu0 %v2258
  %v2260 = vpop.xlane.xlu0 %2259
  %v2261 = vsel %vm590, %v2181, 0.0
  %2262 = vadd.xlane.f32.xlu0 %v2261
  %v2263 = vpop.xlane.xlu0 %2262
  %v2264 = vsel %vm590, %v2182, 0.0
  %2265 = vadd.xlane.f32.xlu0 %v2264
  %v2266 = vpop.xlane.xlu0 %2265
  %v2267 = vsel %vm590, %v2183, 0.0
  %2268 = vadd.xlane.f32.xlu0 %v2267
  %v2269 = vpop.xlane.xlu0 %2268
  %v2270 = vsel %vm590, %v2184, 0.0
  %2271 = vadd.xlane.f32.xlu0 %v2270
  %v2272 = vpop.xlane.xlu0 %2271
  %v2273 = vsel %vm590, %v2185, 0.0
  %2274 = vadd.xlane.f32.xlu0 %v2273
  %v2275 = vpop.xlane.xlu0 %2274
  %v2276 = vsel %vm590, %v2186, 0.0
  %2277 = vadd.xlane.f32.xlu0 %v2276
  %v2278 = vpop.xlane.xlu0 %2277
  %v2279 = vsel %vm590, %v2187, 0.0
  %2280 = vadd.xlane.f32.xlu0 %v2279
  %v2281 = vpop.xlane.xlu0 %2280
  %v2282 = vsel %vm590, %v2188, 0.0
  %2283 = vadd.xlane.f32.xlu0 %v2282
  %v2284 = vpop.xlane.xlu0 %2283
  %v2285 = vsel %vm590, %v2189, 0.0
  %2286 = vadd.xlane.f32.xlu0 %v2285
  %v2287 = vpop.xlane.xlu0 %2286
  %v2288 = vsel %vm590, %v2190, 0.0
  %2289 = vadd.xlane.f32.xlu0 %v2288
  %v2290 = vpop.xlane.xlu0 %2289
  %v2291 = vsel %vm590, %v2191, 0.0
  %2292 = vadd.xlane.f32.xlu0 %v2291
  %v2293 = vpop.xlane.xlu0 %2292
  %v2294 = vsel %vm590, %v2192, 0.0
  %2295 = vadd.xlane.f32.xlu0 %v2294
  %v2296 = vpop.xlane.xlu0 %2295
  %v2297 = vsel %vm590, %v2193, 0.0
  %2298 = vadd.xlane.f32.xlu0 %v2297
  %v2299 = vpop.xlane.xlu0 %2298
  %v2300 = vsel %vm590, %v2194, 0.0
  %2301 = vadd.xlane.f32.xlu0 %v2300
  %v2302 = vpop.xlane.xlu0 %2301
  %v2303 = vsel %vm590, %v2195, 0.0
  %2304 = vadd.xlane.f32.xlu0 %v2303
  %v2305 = vpop.xlane.xlu0 %2304
  %v2306 = vsel %vm590, %v2196, 0.0
  %2307 = vadd.xlane.f32.xlu0 %v2306
  %v2308 = vpop.xlane.xlu0 %2307
  %v2309 = vsel %vm590, %v2197, 0.0
  %2310 = vadd.xlane.f32.xlu0 %v2309
  %v2311 = vpop.xlane.xlu0 %2310
  %v2312 = vsel %vm590, %v2198, 0.0
  %2313 = vadd.xlane.f32.xlu0 %v2312
  %v2314 = vpop.xlane.xlu0 %2313
  %v2315 = vsel %vm590, %v2199, 0.0
  %2316 = vadd.xlane.f32.xlu0 %v2315
  %v2317 = vpop.xlane.xlu0 %2316
  %v2318 = vsel %vm590, %v2200, 0.0
  %2319 = vadd.xlane.f32.xlu0 %v2318
  %v2320 = vpop.xlane.xlu0 %2319
  %v2321 = vsel %vm590, %v2201, 0.0
  %2322 = vadd.xlane.f32.xlu0 %v2321
  %v2323 = vpop.xlane.xlu0 %2322
  %v2324 = vsel %vm590, %v2202, 0.0
  %2325 = vadd.xlane.f32.xlu0 %v2324
  %v2326 = vpop.xlane.xlu0 %2325
  %v2327 = vsel %vm590, %v2203, 0.0
  %2328 = vadd.xlane.f32.xlu0 %v2327
  %v2329 = vpop.xlane.xlu0 %2328
  %v2330 = vsel %vm590, %v2204, 0.0
  %2331 = vadd.xlane.f32.xlu0 %v2330
  %v2332 = vpop.xlane.xlu0 %2331
  %v2333 = vsel %vm590, %v2205, 0.0
  %2334 = vadd.xlane.f32.xlu0 %v2333
  %v2335 = vpop.xlane.xlu0 %2334
  %v2336 = vsel %vm590, %v2206, 0.0
  %2337 = vadd.xlane.f32.xlu0 %v2336
  %v2338 = vpop.xlane.xlu0 %2337
  %v2339 = vsel %vm590, %v2207, 0.0
  %2340 = vadd.xlane.f32.xlu0 %v2339
  %v2341 = vpop.xlane.xlu0 %2340
  %v2342 = vsel %vm590, %v2208, 0.0
  %2343 = vadd.xlane.f32.xlu0 %v2342
  %v2344 = vpop.xlane.xlu0 %2343
  %v2345 = vsel %vm590, %v2209, 0.0
  %2346 = vadd.xlane.f32.xlu0 %v2345
  %v2347 = vpop.xlane.xlu0 %2346
  %v2348 = vsel %vm590, %v2210, 0.0
  %2349 = vadd.xlane.f32.xlu0 %v2348
  %v2350 = vpop.xlane.xlu0 %2349
  %v2351 = vsel %vm590, %v2211, 0.0
  %2352 = vadd.xlane.f32.xlu0 %v2351
  %v2353 = vpop.xlane.xlu0 %2352
  %v2354 = vsel %vm590, %v2212, 0.0
  %2355 = vadd.xlane.f32.xlu0 %v2354
  %v2356 = vpop.xlane.xlu0 %2355
  %v2357 = vsel %vm590, %v2213, 0.0
  %2358 = vadd.xlane.f32.xlu0 %v2357
  %v2359 = vpop.xlane.xlu0 %2358
  %v2360 = vsel %vm590, %v2214, 0.0
  %2361 = vadd.xlane.f32.xlu0 %v2360
  %v2362 = vpop.xlane.xlu0 %2361
  %v2363 = vsel %vm590, %v2215, 0.0
  %2364 = vadd.xlane.f32.xlu0 %v2363
  %v2365 = vpop.xlane.xlu0 %2364
  %v2366 = vsel %vm590, %v2216, 0.0
  %2367 = vadd.xlane.f32.xlu0 %v2366
  %v2368 = vpop.xlane.xlu0 %2367
  %v2369 = vsel %vm590, %v2217, 0.0
  %2370 = vadd.xlane.f32.xlu0 %v2369
  %v2371 = vpop.xlane.xlu0 %2370
  %v2372 = vsel %vm590, %v2218, 0.0
  %2373 = vadd.xlane.f32.xlu0 %v2372
  %v2374 = vpop.xlane.xlu0 %2373
  %v2375 = vsel %vm590, %v2219, 0.0
  %2376 = vadd.xlane.f32.xlu0 %v2375
  %v2377 = vpop.xlane.xlu0 %2376
  %v2378 = vsel %vm590, %v2220, 0.0
  %2379 = vadd.xlane.f32.xlu0 %v2378
  %v2380 = vpop.xlane.xlu0 %2379
  %v2381 = vsel %vm590, %v2221, 0.0
  %2382 = vadd.xlane.f32.xlu0 %v2381
  %v2383 = vpop.xlane.xlu0 %2382
  %v2384 = vsel %vm590, %v2222, 0.0
  %2385 = vadd.xlane.f32.xlu0 %v2384
  %v2386 = vpop.xlane.xlu0 %2385
  %v2387 = vsel %vm590, %v2223, 0.0
  %2388 = vadd.xlane.f32.xlu0 %v2387
  %v2389 = vpop.xlane.xlu0 %2388
  %v2390 = vsel %vm590, %v2224, 0.0
  %2391 = vadd.xlane.f32.xlu0 %v2390
  %v2392 = vpop.xlane.xlu0 %2391
  %v2393 = vsel %vm590, %v2225, 0.0
  %2394 = vadd.xlane.f32.xlu0 %v2393
  %v2395 = vpop.xlane.xlu0 %2394
  %v2396 = vsel %vm590, %v2226, 0.0
  %2397 = vadd.xlane.f32.xlu0 %v2396
  %v2398 = vpop.xlane.xlu0 %2397
  %v2399 = vsel %vm590, %v2227, 0.0
  %2400 = vadd.xlane.f32.xlu0 %v2399
  %v2401 = vpop.xlane.xlu0 %2400
  %v2402 = vsel %vm590, %v2228, 0.0
  %2403 = vadd.xlane.f32.xlu0 %v2402
  %v2404 = vpop.xlane.xlu0 %2403
  %v2405 = vsel %vm590, %v2229, 0.0
  %2406 = vadd.xlane.f32.xlu0 %v2405
  %v2407 = vpop.xlane.xlu0 %2406
  %v2408 = vsel %vm590, %v2230, 0.0
  %2409 = vadd.xlane.f32.xlu0 %v2408
  %v2410 = vpop.xlane.xlu0 %2409
  %v2411 = vsel %vm590, %v2231, 0.0
  %2412 = vadd.xlane.f32.xlu0 %v2411
  %v2413 = vpop.xlane.xlu0 %2412
  %v2414 = vsel %vm590, %v2232, 0.0
  %2415 = vadd.xlane.f32.xlu0 %v2414
  %v2416 = vpop.xlane.xlu0 %2415
  %v2417 = vsel %vm590, %v2233, 0.0
  %2418 = vadd.xlane.f32.xlu0 %v2417
  %v2419 = vpop.xlane.xlu0 %2418
  %v2420 = vsel %vm590, %v2234, 0.0
  %2421 = vadd.xlane.f32.xlu0 %v2420
  %v2422 = vpop.xlane.xlu0 %2421
  %v2423 = vsel %vm590, %v2235, 0.0
  %2424 = vadd.xlane.f32.xlu0 %v2423
  %v2425 = vpop.xlane.xlu0 %2424
  %v2426 = vsel %vm590, %v2236, 0.0
  %2427 = vadd.xlane.f32.xlu0 %v2426
  %v2428 = vpop.xlane.xlu0 %2427
  %v2429 = vrcp.pop 32.0
  %v2430 = vmul.f32 %v2239, %v2429
  %v2431 = vmul.f32 %v2242, %v2429
  %v2432 = vmul.f32 %v2245, %v2429
  %v2433 = vmul.f32 %v2248, %v2429
  %v2434 = vmul.f32 %v2251, %v2429
  %v2435 = vmul.f32 %v2254, %v2429
  %v2436 = vmul.f32 %v2257, %v2429
  %v2437 = vmul.f32 %v2260, %v2429
  %v2438 = vmul.f32 %v2263, %v2429
  %v2439 = vmul.f32 %v2266, %v2429
  %v2440 = vmul.f32 %v2269, %v2429
  %v2441 = vmul.f32 %v2272, %v2429
  %v2442 = vmul.f32 %v2275, %v2429
  %v2443 = vmul.f32 %v2278, %v2429
  %v2444 = vmul.f32 %v2281, %v2429
  %v2445 = vmul.f32 %v2284, %v2429
  %v2446 = vmul.f32 %v2287, %v2429
  %v2447 = vmul.f32 %v2290, %v2429
  %v2448 = vmul.f32 %v2293, %v2429
  %v2449 = vmul.f32 %v2296, %v2429
  %v2450 = vmul.f32 %v2299, %v2429
  %v2451 = vmul.f32 %v2302, %v2429
  %v2452 = vmul.f32 %v2305, %v2429
  %v2453 = vmul.f32 %v2308, %v2429
  %v2454 = vmul.f32 %v2311, %v2429
  %v2455 = vmul.f32 %v2314, %v2429
  %v2456 = vmul.f32 %v2317, %v2429
  %v2457 = vmul.f32 %v2320, %v2429
  %v2458 = vmul.f32 %v2323, %v2429
  %v2459 = vmul.f32 %v2326, %v2429
  %v2460 = vmul.f32 %v2329, %v2429
  %v2461 = vmul.f32 %v2332, %v2429
  %v2462 = vmul.f32 %v2335, %v2429
  %v2463 = vmul.f32 %v2338, %v2429
  %v2464 = vmul.f32 %v2341, %v2429
  %v2465 = vmul.f32 %v2344, %v2429
  %v2466 = vmul.f32 %v2347, %v2429
  %v2467 = vmul.f32 %v2350, %v2429
  %v2468 = vmul.f32 %v2353, %v2429
  %v2469 = vmul.f32 %v2356, %v2429
  %v2470 = vmul.f32 %v2359, %v2429
  %v2471 = vmul.f32 %v2362, %v2429
  %v2472 = vmul.f32 %v2365, %v2429
  %v2473 = vmul.f32 %v2368, %v2429
  %v2474 = vmul.f32 %v2371, %v2429
  %v2475 = vmul.f32 %v2374, %v2429
  %v2476 = vmul.f32 %v2377, %v2429
  %v2477 = vmul.f32 %v2380, %v2429
  %v2478 = vmul.f32 %v2383, %v2429
  %v2479 = vmul.f32 %v2386, %v2429
  %v2480 = vmul.f32 %v2389, %v2429
  %v2481 = vmul.f32 %v2392, %v2429
  %v2482 = vmul.f32 %v2395, %v2429
  %v2483 = vmul.f32 %v2398, %v2429
  %v2484 = vmul.f32 %v2401, %v2429
  %v2485 = vmul.f32 %v2404, %v2429
  %v2486 = vmul.f32 %v2407, %v2429
  %v2487 = vmul.f32 %v2410, %v2429
  %v2488 = vmul.f32 %v2413, %v2429
  %v2489 = vmul.f32 %v2416, %v2429
  %v2490 = vmul.f32 %v2419, %v2429
  %v2491 = vmul.f32 %v2422, %v2429
  %v2492 = vmul.f32 %v2425, %v2429
  %v2493 = vmul.f32 %v2428, %v2429
  %v2494 = vsub.f32 %v2173, %v2430
  %v2495 = vsub.f32 %v2174, %v2431
  %v2496 = vsub.f32 %v2175, %v2432
  %v2497 = vsub.f32 %v2176, %v2433
  %v2498 = vsub.f32 %v2177, %v2434
  %v2499 = vsub.f32 %v2178, %v2435
  %v2500 = vsub.f32 %v2179, %v2436
  %v2501 = vsub.f32 %v2180, %v2437
  %v2502 = vsub.f32 %v2181, %v2438
  %v2503 = vsub.f32 %v2182, %v2439
  %v2504 = vsub.f32 %v2183, %v2440
  %v2505 = vsub.f32 %v2184, %v2441
  %v2506 = vsub.f32 %v2185, %v2442
  %v2507 = vsub.f32 %v2186, %v2443
  %v2508 = vsub.f32 %v2187, %v2444
  %v2509 = vsub.f32 %v2188, %v2445
  %v2510 = vsub.f32 %v2189, %v2446
  %v2511 = vsub.f32 %v2190, %v2447
  %v2512 = vsub.f32 %v2191, %v2448
  %v2513 = vsub.f32 %v2192, %v2449
  %v2514 = vsub.f32 %v2193, %v2450
  %v2515 = vsub.f32 %v2194, %v2451
  %v2516 = vsub.f32 %v2195, %v2452
  %v2517 = vsub.f32 %v2196, %v2453
  %v2518 = vsub.f32 %v2197, %v2454
  %v2519 = vsub.f32 %v2198, %v2455
  %v2520 = vsub.f32 %v2199, %v2456
  %v2521 = vsub.f32 %v2200, %v2457
  %v2522 = vsub.f32 %v2201, %v2458
  %v2523 = vsub.f32 %v2202, %v2459
  %v2524 = vsub.f32 %v2203, %v2460
  %v2525 = vsub.f32 %v2204, %v2461
  %v2526 = vsub.f32 %v2205, %v2462
  %v2527 = vsub.f32 %v2206, %v2463
  %v2528 = vsub.f32 %v2207, %v2464
  %v2529 = vsub.f32 %v2208, %v2465
  %v2530 = vsub.f32 %v2209, %v2466
  %v2531 = vsub.f32 %v2210, %v2467
  %v2532 = vsub.f32 %v2211, %v2468
  %v2533 = vsub.f32 %v2212, %v2469
  %v2534 = vsub.f32 %v2213, %v2470
  %v2535 = vsub.f32 %v2214, %v2471
  %v2536 = vsub.f32 %v2215, %v2472
  %v2537 = vsub.f32 %v2216, %v2473
  %v2538 = vsub.f32 %v2217, %v2474
  %v2539 = vsub.f32 %v2218, %v2475
  %v2540 = vsub.f32 %v2219, %v2476
  %v2541 = vsub.f32 %v2220, %v2477
  %v2542 = vsub.f32 %v2221, %v2478
  %v2543 = vsub.f32 %v2222, %v2479
  %v2544 = vsub.f32 %v2223, %v2480
  %v2545 = vsub.f32 %v2224, %v2481
  %v2546 = vsub.f32 %v2225, %v2482
  %v2547 = vsub.f32 %v2226, %v2483
  %v2548 = vsub.f32 %v2227, %v2484
  %v2549 = vsub.f32 %v2228, %v2485
  %v2550 = vsub.f32 %v2229, %v2486
  %v2551 = vsub.f32 %v2230, %v2487
  %v2552 = vsub.f32 %v2231, %v2488
  %v2553 = vsub.f32 %v2232, %v2489
  %v2554 = vsub.f32 %v2233, %v2490
  %v2555 = vsub.f32 %v2234, %v2491
  %v2556 = vsub.f32 %v2235, %v2492
  %v2557 = vsub.f32 %v2236, %v2493
  %v2558 = vmul.f32 %v2494, %v2494
  %v2559 = vmul.f32 %v2495, %v2495
  %v2560 = vmul.f32 %v2496, %v2496
  %v2561 = vmul.f32 %v2497, %v2497
  %v2562 = vmul.f32 %v2498, %v2498
  %v2563 = vmul.f32 %v2499, %v2499
  %v2564 = vmul.f32 %v2500, %v2500
  %v2565 = vmul.f32 %v2501, %v2501
  %v2566 = vmul.f32 %v2502, %v2502
  %v2567 = vmul.f32 %v2503, %v2503
  %v2568 = vmul.f32 %v2504, %v2504
  %v2569 = vmul.f32 %v2505, %v2505
  %v2570 = vmul.f32 %v2506, %v2506
  %v2571 = vmul.f32 %v2507, %v2507
  %v2572 = vmul.f32 %v2508, %v2508
  %v2573 = vmul.f32 %v2509, %v2509
  %v2574 = vmul.f32 %v2510, %v2510
  %v2575 = vmul.f32 %v2511, %v2511
  %v2576 = vmul.f32 %v2512, %v2512
  %v2577 = vmul.f32 %v2513, %v2513
  %v2578 = vmul.f32 %v2514, %v2514
  %v2579 = vmul.f32 %v2515, %v2515
  %v2580 = vmul.f32 %v2516, %v2516
  %v2581 = vmul.f32 %v2517, %v2517
  %v2582 = vmul.f32 %v2518, %v2518
  %v2583 = vmul.f32 %v2519, %v2519
  %v2584 = vmul.f32 %v2520, %v2520
  %v2585 = vmul.f32 %v2521, %v2521
  %v2586 = vmul.f32 %v2522, %v2522
  %v2587 = vmul.f32 %v2523, %v2523
  %v2588 = vmul.f32 %v2524, %v2524
  %v2589 = vmul.f32 %v2525, %v2525
  %v2590 = vmul.f32 %v2526, %v2526
  %v2591 = vmul.f32 %v2527, %v2527
  %v2592 = vmul.f32 %v2528, %v2528
  %v2593 = vmul.f32 %v2529, %v2529
  %v2594 = vmul.f32 %v2530, %v2530
  %v2595 = vmul.f32 %v2531, %v2531
  %v2596 = vmul.f32 %v2532, %v2532
  %v2597 = vmul.f32 %v2533, %v2533
  %v2598 = vmul.f32 %v2534, %v2534
  %v2599 = vmul.f32 %v2535, %v2535
  %v2600 = vmul.f32 %v2536, %v2536
  %v2601 = vmul.f32 %v2537, %v2537
  %v2602 = vmul.f32 %v2538, %v2538
  %v2603 = vmul.f32 %v2539, %v2539
  %v2604 = vmul.f32 %v2540, %v2540
  %v2605 = vmul.f32 %v2541, %v2541
  %v2606 = vmul.f32 %v2542, %v2542
  %v2607 = vmul.f32 %v2543, %v2543
  %v2608 = vmul.f32 %v2544, %v2544
  %v2609 = vmul.f32 %v2545, %v2545
  %v2610 = vmul.f32 %v2546, %v2546
  %v2611 = vmul.f32 %v2547, %v2547
  %v2612 = vmul.f32 %v2548, %v2548
  %v2613 = vmul.f32 %v2549, %v2549
  %v2614 = vmul.f32 %v2550, %v2550
  %v2615 = vmul.f32 %v2551, %v2551
  %v2616 = vmul.f32 %v2552, %v2552
  %v2617 = vmul.f32 %v2553, %v2553
  %v2618 = vmul.f32 %v2554, %v2554
  %v2619 = vmul.f32 %v2555, %v2555
  %v2620 = vmul.f32 %v2556, %v2556
  %v2621 = vmul.f32 %v2557, %v2557
  %v2622 = vsel %vm590, %v2558, 0.0
  %2623 = vadd.xlane.f32.xlu0 %v2622
  %v2624 = vpop.xlane.xlu0 %2623
  %v2625 = vsel %vm590, %v2559, 0.0
  %2626 = vadd.xlane.f32.xlu0 %v2625
  %v2627 = vpop.xlane.xlu0 %2626
  %v2628 = vsel %vm590, %v2560, 0.0
  %2629 = vadd.xlane.f32.xlu0 %v2628
  %v2630 = vpop.xlane.xlu0 %2629
  %v2631 = vsel %vm590, %v2561, 0.0
  %2632 = vadd.xlane.f32.xlu0 %v2631
  %v2633 = vpop.xlane.xlu0 %2632
  %v2634 = vsel %vm590, %v2562, 0.0
  %2635 = vadd.xlane.f32.xlu0 %v2634
  %v2636 = vpop.xlane.xlu0 %2635
  %v2637 = vsel %vm590, %v2563, 0.0
  %2638 = vadd.xlane.f32.xlu0 %v2637
  %v2639 = vpop.xlane.xlu0 %2638
  %v2640 = vsel %vm590, %v2564, 0.0
  %2641 = vadd.xlane.f32.xlu0 %v2640
  %v2642 = vpop.xlane.xlu0 %2641
  %v2643 = vsel %vm590, %v2565, 0.0
  %2644 = vadd.xlane.f32.xlu0 %v2643
  %v2645 = vpop.xlane.xlu0 %2644
  %v2646 = vsel %vm590, %v2566, 0.0
  %2647 = vadd.xlane.f32.xlu0 %v2646
  %v2648 = vpop.xlane.xlu0 %2647
  %v2649 = vsel %vm590, %v2567, 0.0
  %2650 = vadd.xlane.f32.xlu0 %v2649
  %v2651 = vpop.xlane.xlu0 %2650
  %v2652 = vsel %vm590, %v2568, 0.0
  %2653 = vadd.xlane.f32.xlu0 %v2652
  %v2654 = vpop.xlane.xlu0 %2653
  %v2655 = vsel %vm590, %v2569, 0.0
  %2656 = vadd.xlane.f32.xlu0 %v2655
  %v2657 = vpop.xlane.xlu0 %2656
  %v2658 = vsel %vm590, %v2570, 0.0
  %2659 = vadd.xlane.f32.xlu0 %v2658
  %v2660 = vpop.xlane.xlu0 %2659
  %v2661 = vsel %vm590, %v2571, 0.0
  %2662 = vadd.xlane.f32.xlu0 %v2661
  %v2663 = vpop.xlane.xlu0 %2662
  %v2664 = vsel %vm590, %v2572, 0.0
  %2665 = vadd.xlane.f32.xlu0 %v2664
  %v2666 = vpop.xlane.xlu0 %2665
  %v2667 = vsel %vm590, %v2573, 0.0
  %2668 = vadd.xlane.f32.xlu0 %v2667
  %v2669 = vpop.xlane.xlu0 %2668
  %v2670 = vsel %vm590, %v2574, 0.0
  %2671 = vadd.xlane.f32.xlu0 %v2670
  %v2672 = vpop.xlane.xlu0 %2671
  %v2673 = vsel %vm590, %v2575, 0.0
  %2674 = vadd.xlane.f32.xlu0 %v2673
  %v2675 = vpop.xlane.xlu0 %2674
  %v2676 = vsel %vm590, %v2576, 0.0
  %2677 = vadd.xlane.f32.xlu0 %v2676
  %v2678 = vpop.xlane.xlu0 %2677
  %v2679 = vsel %vm590, %v2577, 0.0
  %2680 = vadd.xlane.f32.xlu0 %v2679
  %v2681 = vpop.xlane.xlu0 %2680
  %v2682 = vsel %vm590, %v2578, 0.0
  %2683 = vadd.xlane.f32.xlu0 %v2682
  %v2684 = vpop.xlane.xlu0 %2683
  %v2685 = vsel %vm590, %v2579, 0.0
  %2686 = vadd.xlane.f32.xlu0 %v2685
  %v2687 = vpop.xlane.xlu0 %2686
  %v2688 = vsel %vm590, %v2580, 0.0
  %2689 = vadd.xlane.f32.xlu0 %v2688
  %v2690 = vpop.xlane.xlu0 %2689
  %v2691 = vsel %vm590, %v2581, 0.0
  %2692 = vadd.xlane.f32.xlu0 %v2691
  %v2693 = vpop.xlane.xlu0 %2692
  %v2694 = vsel %vm590, %v2582, 0.0
  %2695 = vadd.xlane.f32.xlu0 %v2694
  %v2696 = vpop.xlane.xlu0 %2695
  %v2697 = vsel %vm590, %v2583, 0.0
  %2698 = vadd.xlane.f32.xlu0 %v2697
  %v2699 = vpop.xlane.xlu0 %2698
  %v2700 = vsel %vm590, %v2584, 0.0
  %2701 = vadd.xlane.f32.xlu0 %v2700
  %v2702 = vpop.xlane.xlu0 %2701
  %v2703 = vsel %vm590, %v2585, 0.0
  %2704 = vadd.xlane.f32.xlu0 %v2703
  %v2705 = vpop.xlane.xlu0 %2704
  %v2706 = vsel %vm590, %v2586, 0.0
  %2707 = vadd.xlane.f32.xlu0 %v2706
  %v2708 = vpop.xlane.xlu0 %2707
  %v2709 = vsel %vm590, %v2587, 0.0
  %2710 = vadd.xlane.f32.xlu0 %v2709
  %v2711 = vpop.xlane.xlu0 %2710
  %v2712 = vsel %vm590, %v2588, 0.0
  %2713 = vadd.xlane.f32.xlu0 %v2712
  %v2714 = vpop.xlane.xlu0 %2713
  %v2715 = vsel %vm590, %v2589, 0.0
  %2716 = vadd.xlane.f32.xlu0 %v2715
  %v2717 = vpop.xlane.xlu0 %2716
  %v2718 = vsel %vm590, %v2590, 0.0
  %2719 = vadd.xlane.f32.xlu0 %v2718
  %v2720 = vpop.xlane.xlu0 %2719
  %v2721 = vsel %vm590, %v2591, 0.0
  %2722 = vadd.xlane.f32.xlu0 %v2721
  %v2723 = vpop.xlane.xlu0 %2722
  %v2724 = vsel %vm590, %v2592, 0.0
  %2725 = vadd.xlane.f32.xlu0 %v2724
  %v2726 = vpop.xlane.xlu0 %2725
  %v2727 = vsel %vm590, %v2593, 0.0
  %2728 = vadd.xlane.f32.xlu0 %v2727
  %v2729 = vpop.xlane.xlu0 %2728
  %v2730 = vsel %vm590, %v2594, 0.0
  %2731 = vadd.xlane.f32.xlu0 %v2730
  %v2732 = vpop.xlane.xlu0 %2731
  %v2733 = vsel %vm590, %v2595, 0.0
  %2734 = vadd.xlane.f32.xlu0 %v2733
  %v2735 = vpop.xlane.xlu0 %2734
  %v2736 = vsel %vm590, %v2596, 0.0
  %2737 = vadd.xlane.f32.xlu0 %v2736
  %v2738 = vpop.xlane.xlu0 %2737
  %v2739 = vsel %vm590, %v2597, 0.0
  %2740 = vadd.xlane.f32.xlu0 %v2739
  %v2741 = vpop.xlane.xlu0 %2740
  %v2742 = vsel %vm590, %v2598, 0.0
  %2743 = vadd.xlane.f32.xlu0 %v2742
  %v2744 = vpop.xlane.xlu0 %2743
  %v2745 = vsel %vm590, %v2599, 0.0
  %2746 = vadd.xlane.f32.xlu0 %v2745
  %v2747 = vpop.xlane.xlu0 %2746
  %v2748 = vsel %vm590, %v2600, 0.0
  %2749 = vadd.xlane.f32.xlu0 %v2748
  %v2750 = vpop.xlane.xlu0 %2749
  %v2751 = vsel %vm590, %v2601, 0.0
  %2752 = vadd.xlane.f32.xlu0 %v2751
  %v2753 = vpop.xlane.xlu0 %2752
  %v2754 = vsel %vm590, %v2602, 0.0
  %2755 = vadd.xlane.f32.xlu0 %v2754
  %v2756 = vpop.xlane.xlu0 %2755
  %v2757 = vsel %vm590, %v2603, 0.0
  %2758 = vadd.xlane.f32.xlu0 %v2757
  %v2759 = vpop.xlane.xlu0 %2758
  %v2760 = vsel %vm590, %v2604, 0.0
  %2761 = vadd.xlane.f32.xlu0 %v2760
  %v2762 = vpop.xlane.xlu0 %2761
  %v2763 = vsel %vm590, %v2605, 0.0
  %2764 = vadd.xlane.f32.xlu0 %v2763
  %v2765 = vpop.xlane.xlu0 %2764
  %v2766 = vsel %vm590, %v2606, 0.0
  %2767 = vadd.xlane.f32.xlu0 %v2766
  %v2768 = vpop.xlane.xlu0 %2767
  %v2769 = vsel %vm590, %v2607, 0.0
  %2770 = vadd.xlane.f32.xlu0 %v2769
  %v2771 = vpop.xlane.xlu0 %2770
  %v2772 = vsel %vm590, %v2608, 0.0
  %2773 = vadd.xlane.f32.xlu0 %v2772
  %v2774 = vpop.xlane.xlu0 %2773
  %v2775 = vsel %vm590, %v2609, 0.0
  %2776 = vadd.xlane.f32.xlu0 %v2775
  %v2777 = vpop.xlane.xlu0 %2776
  %v2778 = vsel %vm590, %v2610, 0.0
  %2779 = vadd.xlane.f32.xlu0 %v2778
  %v2780 = vpop.xlane.xlu0 %2779
  %v2781 = vsel %vm590, %v2611, 0.0
  %2782 = vadd.xlane.f32.xlu0 %v2781
  %v2783 = vpop.xlane.xlu0 %2782
  %v2784 = vsel %vm590, %v2612, 0.0
  %2785 = vadd.xlane.f32.xlu0 %v2784
  %v2786 = vpop.xlane.xlu0 %2785
  %v2787 = vsel %vm590, %v2613, 0.0
  %2788 = vadd.xlane.f32.xlu0 %v2787
  %v2789 = vpop.xlane.xlu0 %2788
  %v2790 = vsel %vm590, %v2614, 0.0
  %2791 = vadd.xlane.f32.xlu0 %v2790
  %v2792 = vpop.xlane.xlu0 %2791
  %v2793 = vsel %vm590, %v2615, 0.0
  %2794 = vadd.xlane.f32.xlu0 %v2793
  %v2795 = vpop.xlane.xlu0 %2794
  %v2796 = vsel %vm590, %v2616, 0.0
  %2797 = vadd.xlane.f32.xlu0 %v2796
  %v2798 = vpop.xlane.xlu0 %2797
  %v2799 = vsel %vm590, %v2617, 0.0
  %2800 = vadd.xlane.f32.xlu0 %v2799
  %v2801 = vpop.xlane.xlu0 %2800
  %v2802 = vsel %vm590, %v2618, 0.0
  %2803 = vadd.xlane.f32.xlu0 %v2802
  %v2804 = vpop.xlane.xlu0 %2803
  %v2805 = vsel %vm590, %v2619, 0.0
  %2806 = vadd.xlane.f32.xlu0 %v2805
  %v2807 = vpop.xlane.xlu0 %2806
  %v2808 = vsel %vm590, %v2620, 0.0
  %2809 = vadd.xlane.f32.xlu0 %v2808
  %v2810 = vpop.xlane.xlu0 %2809
  %v2811 = vsel %vm590, %v2621, 0.0
  %2812 = vadd.xlane.f32.xlu0 %v2811
  %v2813 = vpop.xlane.xlu0 %2812
  %v2814 = vmul.f32 %v2624, %v2429
  %v2815 = vmul.f32 %v2627, %v2429
  %v2816 = vmul.f32 %v2630, %v2429
  %v2817 = vmul.f32 %v2633, %v2429
  %v2818 = vmul.f32 %v2636, %v2429
  %v2819 = vmul.f32 %v2639, %v2429
  %v2820 = vmul.f32 %v2642, %v2429
  %v2821 = vmul.f32 %v2645, %v2429
  %v2822 = vmul.f32 %v2648, %v2429
  %v2823 = vmul.f32 %v2651, %v2429
  %v2824 = vmul.f32 %v2654, %v2429
  %v2825 = vmul.f32 %v2657, %v2429
  %v2826 = vmul.f32 %v2660, %v2429
  %v2827 = vmul.f32 %v2663, %v2429
  %v2828 = vmul.f32 %v2666, %v2429
  %v2829 = vmul.f32 %v2669, %v2429
  %v2830 = vmul.f32 %v2672, %v2429
  %v2831 = vmul.f32 %v2675, %v2429
  %v2832 = vmul.f32 %v2678, %v2429
  %v2833 = vmul.f32 %v2681, %v2429
  %v2834 = vmul.f32 %v2684, %v2429
  %v2835 = vmul.f32 %v2687, %v2429
  %v2836 = vmul.f32 %v2690, %v2429
  %v2837 = vmul.f32 %v2693, %v2429
  %v2838 = vmul.f32 %v2696, %v2429
  %v2839 = vmul.f32 %v2699, %v2429
  %v2840 = vmul.f32 %v2702, %v2429
  %v2841 = vmul.f32 %v2705, %v2429
  %v2842 = vmul.f32 %v2708, %v2429
  %v2843 = vmul.f32 %v2711, %v2429
  %v2844 = vmul.f32 %v2714, %v2429
  %v2845 = vmul.f32 %v2717, %v2429
  %v2846 = vmul.f32 %v2720, %v2429
  %v2847 = vmul.f32 %v2723, %v2429
  %v2848 = vmul.f32 %v2726, %v2429
  %v2849 = vmul.f32 %v2729, %v2429
  %v2850 = vmul.f32 %v2732, %v2429
  %v2851 = vmul.f32 %v2735, %v2429
  %v2852 = vmul.f32 %v2738, %v2429
  %v2853 = vmul.f32 %v2741, %v2429
  %v2854 = vmul.f32 %v2744, %v2429
  %v2855 = vmul.f32 %v2747, %v2429
  %v2856 = vmul.f32 %v2750, %v2429
  %v2857 = vmul.f32 %v2753, %v2429
  %v2858 = vmul.f32 %v2756, %v2429
  %v2859 = vmul.f32 %v2759, %v2429
  %v2860 = vmul.f32 %v2762, %v2429
  %v2861 = vmul.f32 %v2765, %v2429
  %v2862 = vmul.f32 %v2768, %v2429
  %v2863 = vmul.f32 %v2771, %v2429
  %v2864 = vmul.f32 %v2774, %v2429
  %v2865 = vmul.f32 %v2777, %v2429
  %v2866 = vmul.f32 %v2780, %v2429
  %v2867 = vmul.f32 %v2783, %v2429
  %v2868 = vmul.f32 %v2786, %v2429
  %v2869 = vmul.f32 %v2789, %v2429
  %v2870 = vmul.f32 %v2792, %v2429
  %v2871 = vmul.f32 %v2795, %v2429
  %v2872 = vmul.f32 %v2798, %v2429
  %v2873 = vmul.f32 %v2801, %v2429
  %v2874 = vmul.f32 %v2804, %v2429
  %v2875 = vmul.f32 %v2807, %v2429
  %v2876 = vmul.f32 %v2810, %v2429
  %v2877 = vmul.f32 %v2813, %v2429
  %v2878 = vadd.f32 %v2814, 1e-05
  %v2879 = vadd.f32 %v2815, 1e-05
  %v2880 = vadd.f32 %v2816, 1e-05
  %v2881 = vadd.f32 %v2817, 1e-05
  %v2882 = vadd.f32 %v2818, 1e-05
  %v2883 = vadd.f32 %v2819, 1e-05
  %v2884 = vadd.f32 %v2820, 1e-05
  %v2885 = vadd.f32 %v2821, 1e-05
  %v2886 = vadd.f32 %v2822, 1e-05
  %v2887 = vadd.f32 %v2823, 1e-05
  %v2888 = vadd.f32 %v2824, 1e-05
  %v2889 = vadd.f32 %v2825, 1e-05
  %v2890 = vadd.f32 %v2826, 1e-05
  %v2891 = vadd.f32 %v2827, 1e-05
  %v2892 = vadd.f32 %v2828, 1e-05
  %v2893 = vadd.f32 %v2829, 1e-05
  %v2894 = vadd.f32 %v2830, 1e-05
  %v2895 = vadd.f32 %v2831, 1e-05
  %v2896 = vadd.f32 %v2832, 1e-05
  %v2897 = vadd.f32 %v2833, 1e-05
  %v2898 = vadd.f32 %v2834, 1e-05
  %v2899 = vadd.f32 %v2835, 1e-05
  %v2900 = vadd.f32 %v2836, 1e-05
  %v2901 = vadd.f32 %v2837, 1e-05
  %v2902 = vadd.f32 %v2838, 1e-05
  %v2903 = vadd.f32 %v2839, 1e-05
  %v2904 = vadd.f32 %v2840, 1e-05
  %v2905 = vadd.f32 %v2841, 1e-05
  %v2906 = vadd.f32 %v2842, 1e-05
  %v2907 = vadd.f32 %v2843, 1e-05
  %v2908 = vadd.f32 %v2844, 1e-05
  %v2909 = vadd.f32 %v2845, 1e-05
  %v2910 = vadd.f32 %v2846, 1e-05
  %v2911 = vadd.f32 %v2847, 1e-05
  %v2912 = vadd.f32 %v2848, 1e-05
  %v2913 = vadd.f32 %v2849, 1e-05
  %v2914 = vadd.f32 %v2850, 1e-05
  %v2915 = vadd.f32 %v2851, 1e-05
  %v2916 = vadd.f32 %v2852, 1e-05
  %v2917 = vadd.f32 %v2853, 1e-05
  %v2918 = vadd.f32 %v2854, 1e-05
  %v2919 = vadd.f32 %v2855, 1e-05
  %v2920 = vadd.f32 %v2856, 1e-05
  %v2921 = vadd.f32 %v2857, 1e-05
  %v2922 = vadd.f32 %v2858, 1e-05
  %v2923 = vadd.f32 %v2859, 1e-05
  %v2924 = vadd.f32 %v2860, 1e-05
  %v2925 = vadd.f32 %v2861, 1e-05
  %v2926 = vadd.f32 %v2862, 1e-05
  %v2927 = vadd.f32 %v2863, 1e-05
  %v2928 = vadd.f32 %v2864, 1e-05
  %v2929 = vadd.f32 %v2865, 1e-05
  %v2930 = vadd.f32 %v2866, 1e-05
  %v2931 = vadd.f32 %v2867, 1e-05
  %v2932 = vadd.f32 %v2868, 1e-05
  %v2933 = vadd.f32 %v2869, 1e-05
  %v2934 = vadd.f32 %v2870, 1e-05
  %v2935 = vadd.f32 %v2871, 1e-05
  %v2936 = vadd.f32 %v2872, 1e-05
  %v2937 = vadd.f32 %v2873, 1e-05
  %v2938 = vadd.f32 %v2874, 1e-05
  %v2939 = vadd.f32 %v2875, 1e-05
  %v2940 = vadd.f32 %v2876, 1e-05
  %v2941 = vadd.f32 %v2877, 1e-05
  %v2942 = vrsqrt.pop %v2878
  %v2943 = vrsqrt.pop %v2879
  %v2944 = vrsqrt.pop %v2880
  %v2945 = vrsqrt.pop %v2881
  %v2946 = vrsqrt.pop %v2882
  %v2947 = vrsqrt.pop %v2883
  %v2948 = vrsqrt.pop %v2884
  %v2949 = vrsqrt.pop %v2885
  %v2950 = vrsqrt.pop %v2886
  %v2951 = vrsqrt.pop %v2887
  %v2952 = vrsqrt.pop %v2888
  %v2953 = vrsqrt.pop %v2889
  %v2954 = vrsqrt.pop %v2890
  %v2955 = vrsqrt.pop %v2891
  %v2956 = vrsqrt.pop %v2892
  %v2957 = vrsqrt.pop %v2893
  %v2958 = vrsqrt.pop %v2894
  %v2959 = vrsqrt.pop %v2895
  %v2960 = vrsqrt.pop %v2896
  %v2961 = vrsqrt.pop %v2897
  %v2962 = vrsqrt.pop %v2898
  %v2963 = vrsqrt.pop %v2899
  %v2964 = vrsqrt.pop %v2900
  %v2965 = vrsqrt.pop %v2901
  %v2966 = vrsqrt.pop %v2902
  %v2967 = vrsqrt.pop %v2903
  %v2968 = vrsqrt.pop %v2904
  %v2969 = vrsqrt.pop %v2905
  %v2970 = vrsqrt.pop %v2906
  %v2971 = vrsqrt.pop %v2907
  %v2972 = vrsqrt.pop %v2908
  %v2973 = vrsqrt.pop %v2909
  %v2974 = vrsqrt.pop %v2910
  %v2975 = vrsqrt.pop %v2911
  %v2976 = vrsqrt.pop %v2912
  %v2977 = vrsqrt.pop %v2913
  %v2978 = vrsqrt.pop %v2914
  %v2979 = vrsqrt.pop %v2915
  %v2980 = vrsqrt.pop %v2916
  %v2981 = vrsqrt.pop %v2917
  %v2982 = vrsqrt.pop %v2918
  %v2983 = vrsqrt.pop %v2919
  %v2984 = vrsqrt.pop %v2920
  %v2985 = vrsqrt.pop %v2921
  %v2986 = vrsqrt.pop %v2922
  %v2987 = vrsqrt.pop %v2923
  %v2988 = vrsqrt.pop %v2924
  %v2989 = vrsqrt.pop %v2925
  %v2990 = vrsqrt.pop %v2926
  %v2991 = vrsqrt.pop %v2927
  %v2992 = vrsqrt.pop %v2928
  %v2993 = vrsqrt.pop %v2929
  %v2994 = vrsqrt.pop %v2930
  %v2995 = vrsqrt.pop %v2931
  %v2996 = vrsqrt.pop %v2932
  %v2997 = vrsqrt.pop %v2933
  %v2998 = vrsqrt.pop %v2934
  %v2999 = vrsqrt.pop %v2935
  %v3000 = vrsqrt.pop %v2936
  %v3001 = vrsqrt.pop %v2937
  %v3002 = vrsqrt.pop %v2938
  %v3003 = vrsqrt.pop %v2939
  %v3004 = vrsqrt.pop %v2940
  %v3005 = vrsqrt.pop %v2941
  %v3006 = vmul.f32 %v2494, %v2942
  %v3007 = vmul.f32 %v2495, %v2943
  %v3008 = vmul.f32 %v2496, %v2944
  %v3009 = vmul.f32 %v2497, %v2945
  %v3010 = vmul.f32 %v2498, %v2946
  %v3011 = vmul.f32 %v2499, %v2947
  %v3012 = vmul.f32 %v2500, %v2948
  %v3013 = vmul.f32 %v2501, %v2949
  %v3014 = vmul.f32 %v2502, %v2950
  %v3015 = vmul.f32 %v2503, %v2951
  %v3016 = vmul.f32 %v2504, %v2952
  %v3017 = vmul.f32 %v2505, %v2953
  %v3018 = vmul.f32 %v2506, %v2954
  %v3019 = vmul.f32 %v2507, %v2955
  %v3020 = vmul.f32 %v2508, %v2956
  %v3021 = vmul.f32 %v2509, %v2957
  %v3022 = vmul.f32 %v2510, %v2958
  %v3023 = vmul.f32 %v2511, %v2959
  %v3024 = vmul.f32 %v2512, %v2960
  %v3025 = vmul.f32 %v2513, %v2961
  %v3026 = vmul.f32 %v2514, %v2962
  %v3027 = vmul.f32 %v2515, %v2963
  %v3028 = vmul.f32 %v2516, %v2964
  %v3029 = vmul.f32 %v2517, %v2965
  %v3030 = vmul.f32 %v2518, %v2966
  %v3031 = vmul.f32 %v2519, %v2967
  %v3032 = vmul.f32 %v2520, %v2968
  %v3033 = vmul.f32 %v2521, %v2969
  %v3034 = vmul.f32 %v2522, %v2970
  %v3035 = vmul.f32 %v2523, %v2971
  %v3036 = vmul.f32 %v2524, %v2972
  %v3037 = vmul.f32 %v2525, %v2973
  %v3038 = vmul.f32 %v2526, %v2974
  %v3039 = vmul.f32 %v2527, %v2975
  %v3040 = vmul.f32 %v2528, %v2976
  %v3041 = vmul.f32 %v2529, %v2977
  %v3042 = vmul.f32 %v2530, %v2978
  %v3043 = vmul.f32 %v2531, %v2979
  %v3044 = vmul.f32 %v2532, %v2980
  %v3045 = vmul.f32 %v2533, %v2981
  %v3046 = vmul.f32 %v2534, %v2982
  %v3047 = vmul.f32 %v2535, %v2983
  %v3048 = vmul.f32 %v2536, %v2984
  %v3049 = vmul.f32 %v2537, %v2985
  %v3050 = vmul.f32 %v2538, %v2986
  %v3051 = vmul.f32 %v2539, %v2987
  %v3052 = vmul.f32 %v2540, %v2988
  %v3053 = vmul.f32 %v2541, %v2989
  %v3054 = vmul.f32 %v2542, %v2990
  %v3055 = vmul.f32 %v2543, %v2991
  %v3056 = vmul.f32 %v2544, %v2992
  %v3057 = vmul.f32 %v2545, %v2993
  %v3058 = vmul.f32 %v2546, %v2994
  %v3059 = vmul.f32 %v2547, %v2995
  %v3060 = vmul.f32 %v2548, %v2996
  %v3061 = vmul.f32 %v2549, %v2997
  %v3062 = vmul.f32 %v2550, %v2998
  %v3063 = vmul.f32 %v2551, %v2999
  %v3064 = vmul.f32 %v2552, %v3000
  %v3065 = vmul.f32 %v2553, %v3001
  %v3066 = vmul.f32 %v2554, %v3002
  %v3067 = vmul.f32 %v2555, %v3003
  %v3068 = vmul.f32 %v2556, %v3004
  %v3069 = vmul.f32 %v2557, %v3005
  %v3070 = vlaneseq
  %v3071 = vshrl.u32 %v3070, 7
  %v3072 = vsub.s32 0, %v3071
  %v3073 = vrot.slane %v218, %v3072
  %v3074 = vmul.f32 %v3006, %v3073
  %v3075 = vmul.f32 %v3007, %v3073
  %v3076 = vmul.f32 %v3008, %v3073
  %v3077 = vmul.f32 %v3009, %v3073
  %v3078 = vmul.f32 %v3010, %v3073
  %v3079 = vmul.f32 %v3011, %v3073
  %v3080 = vmul.f32 %v3012, %v3073
  %v3081 = vmul.f32 %v3013, %v3073
  %v3082 = vmul.f32 %v3014, %v3073
  %v3083 = vmul.f32 %v3015, %v3073
  %v3084 = vmul.f32 %v3016, %v3073
  %v3085 = vmul.f32 %v3017, %v3073
  %v3086 = vmul.f32 %v3018, %v3073
  %v3087 = vmul.f32 %v3019, %v3073
  %v3088 = vmul.f32 %v3020, %v3073
  %v3089 = vmul.f32 %v3021, %v3073
  %v3090 = vmul.f32 %v3022, %v3073
  %v3091 = vmul.f32 %v3023, %v3073
  %v3092 = vmul.f32 %v3024, %v3073
  %v3093 = vmul.f32 %v3025, %v3073
  %v3094 = vmul.f32 %v3026, %v3073
  %v3095 = vmul.f32 %v3027, %v3073
  %v3096 = vmul.f32 %v3028, %v3073
  %v3097 = vmul.f32 %v3029, %v3073
  %v3098 = vmul.f32 %v3030, %v3073
  %v3099 = vmul.f32 %v3031, %v3073
  %v3100 = vmul.f32 %v3032, %v3073
  %v3101 = vmul.f32 %v3033, %v3073
  %v3102 = vmul.f32 %v3034, %v3073
  %v3103 = vmul.f32 %v3035, %v3073
  %v3104 = vmul.f32 %v3036, %v3073
  %v3105 = vmul.f32 %v3037, %v3073
  %v3106 = vmul.f32 %v3038, %v3073
  %v3107 = vmul.f32 %v3039, %v3073
  %v3108 = vmul.f32 %v3040, %v3073
  %v3109 = vmul.f32 %v3041, %v3073
  %v3110 = vmul.f32 %v3042, %v3073
  %v3111 = vmul.f32 %v3043, %v3073
  %v3112 = vmul.f32 %v3044, %v3073
  %v3113 = vmul.f32 %v3045, %v3073
  %v3114 = vmul.f32 %v3046, %v3073
  %v3115 = vmul.f32 %v3047, %v3073
  %v3116 = vmul.f32 %v3048, %v3073
  %v3117 = vmul.f32 %v3049, %v3073
  %v3118 = vmul.f32 %v3050, %v3073
  %v3119 = vmul.f32 %v3051, %v3073
  %v3120 = vmul.f32 %v3052, %v3073
  %v3121 = vmul.f32 %v3053, %v3073
  %v3122 = vmul.f32 %v3054, %v3073
  %v3123 = vmul.f32 %v3055, %v3073
  %v3124 = vmul.f32 %v3056, %v3073
  %v3125 = vmul.f32 %v3057, %v3073
  %v3126 = vmul.f32 %v3058, %v3073
  %v3127 = vmul.f32 %v3059, %v3073
  %v3128 = vmul.f32 %v3060, %v3073
  %v3129 = vmul.f32 %v3061, %v3073
  %v3130 = vmul.f32 %v3062, %v3073
  %v3131 = vmul.f32 %v3063, %v3073
  %v3132 = vmul.f32 %v3064, %v3073
  %v3133 = vmul.f32 %v3065, %v3073
  %v3134 = vmul.f32 %v3066, %v3073
  %v3135 = vmul.f32 %v3067, %v3073
  %v3136 = vmul.f32 %v3068, %v3073
  %v3137 = vmul.f32 %v3069, %v3073
  %v3138 = vlaneseq
  %v3139 = vshrl.u32 %v3138, 7
  %v3140 = vsub.s32 0, %v3139
  %v3141 = vrot.slane %v219, %v3140
  %v3142 = vadd.f32 %v3074, %v3141
  %v3143 = vadd.f32 %v3075, %v3141
  %v3144 = vadd.f32 %v3076, %v3141
  %v3145 = vadd.f32 %v3077, %v3141
  %v3146 = vadd.f32 %v3078, %v3141
  %v3147 = vadd.f32 %v3079, %v3141
  %v3148 = vadd.f32 %v3080, %v3141
  %v3149 = vadd.f32 %v3081, %v3141
  %v3150 = vadd.f32 %v3082, %v3141
  %v3151 = vadd.f32 %v3083, %v3141
  %v3152 = vadd.f32 %v3084, %v3141
  %v3153 = vadd.f32 %v3085, %v3141
  %v3154 = vadd.f32 %v3086, %v3141
  %v3155 = vadd.f32 %v3087, %v3141
  %v3156 = vadd.f32 %v3088, %v3141
  %v3157 = vadd.f32 %v3089, %v3141
  %v3158 = vadd.f32 %v3090, %v3141
  %v3159 = vadd.f32 %v3091, %v3141
  %v3160 = vadd.f32 %v3092, %v3141
  %v3161 = vadd.f32 %v3093, %v3141
  %v3162 = vadd.f32 %v3094, %v3141
  %v3163 = vadd.f32 %v3095, %v3141
  %v3164 = vadd.f32 %v3096, %v3141
  %v3165 = vadd.f32 %v3097, %v3141
  %v3166 = vadd.f32 %v3098, %v3141
  %v3167 = vadd.f32 %v3099, %v3141
  %v3168 = vadd.f32 %v3100, %v3141
  %v3169 = vadd.f32 %v3101, %v3141
  %v3170 = vadd.f32 %v3102, %v3141
  %v3171 = vadd.f32 %v3103, %v3141
  %v3172 = vadd.f32 %v3104, %v3141
  %v3173 = vadd.f32 %v3105, %v3141
  %v3174 = vadd.f32 %v3106, %v3141
  %v3175 = vadd.f32 %v3107, %v3141
  %v3176 = vadd.f32 %v3108, %v3141
  %v3177 = vadd.f32 %v3109, %v3141
  %v3178 = vadd.f32 %v3110, %v3141
  %v3179 = vadd.f32 %v3111, %v3141
  %v3180 = vadd.f32 %v3112, %v3141
  %v3181 = vadd.f32 %v3113, %v3141
  %v3182 = vadd.f32 %v3114, %v3141
  %v3183 = vadd.f32 %v3115, %v3141
  %v3184 = vadd.f32 %v3116, %v3141
  %v3185 = vadd.f32 %v3117, %v3141
  %v3186 = vadd.f32 %v3118, %v3141
  %v3187 = vadd.f32 %v3119, %v3141
  %v3188 = vadd.f32 %v3120, %v3141
  %v3189 = vadd.f32 %v3121, %v3141
  %v3190 = vadd.f32 %v3122, %v3141
  %v3191 = vadd.f32 %v3123, %v3141
  %v3192 = vadd.f32 %v3124, %v3141
  %v3193 = vadd.f32 %v3125, %v3141
  %v3194 = vadd.f32 %v3126, %v3141
  %v3195 = vadd.f32 %v3127, %v3141
  %v3196 = vadd.f32 %v3128, %v3141
  %v3197 = vadd.f32 %v3129, %v3141
  %v3198 = vadd.f32 %v3130, %v3141
  %v3199 = vadd.f32 %v3131, %v3141
  %v3200 = vadd.f32 %v3132, %v3141
  %v3201 = vadd.f32 %v3133, %v3141
  %v3202 = vadd.f32 %v3134, %v3141
  %v3203 = vadd.f32 %v3135, %v3141
  %v3204 = vadd.f32 %v3136, %v3141
  %v3205 = vadd.f32 %v3137, %v3141
  %v3206 = vpack.c.bf16 %v3143, %v3142
  %v3207 = vpack.c.bf16 %v3145, %v3144
  %v3208 = vpack.c.bf16 %v3147, %v3146
  %v3209 = vpack.c.bf16 %v3149, %v3148
  %v3210 = vpack.c.bf16 %v3151, %v3150
  %v3211 = vpack.c.bf16 %v3153, %v3152
  %v3212 = vpack.c.bf16 %v3155, %v3154
  %v3213 = vpack.c.bf16 %v3157, %v3156
  %v3214 = vpack.c.bf16 %v3159, %v3158
  %v3215 = vpack.c.bf16 %v3161, %v3160
  %v3216 = vpack.c.bf16 %v3163, %v3162
  %v3217 = vpack.c.bf16 %v3165, %v3164
  %v3218 = vpack.c.bf16 %v3167, %v3166
  %v3219 = vpack.c.bf16 %v3169, %v3168
  %v3220 = vpack.c.bf16 %v3171, %v3170
  %v3221 = vpack.c.bf16 %v3173, %v3172
  %v3222 = vpack.c.bf16 %v3175, %v3174
  %v3223 = vpack.c.bf16 %v3177, %v3176
  %v3224 = vpack.c.bf16 %v3179, %v3178
  %v3225 = vpack.c.bf16 %v3181, %v3180
  %v3226 = vpack.c.bf16 %v3183, %v3182
  %v3227 = vpack.c.bf16 %v3185, %v3184
  %v3228 = vpack.c.bf16 %v3187, %v3186
  %v3229 = vpack.c.bf16 %v3189, %v3188
  %v3230 = vpack.c.bf16 %v3191, %v3190
  %v3231 = vpack.c.bf16 %v3193, %v3192
  %v3232 = vpack.c.bf16 %v3195, %v3194
  %v3233 = vpack.c.bf16 %v3197, %v3196
  %v3234 = vpack.c.bf16 %v3199, %v3198
  %v3235 = vpack.c.bf16 %v3201, %v3200
  %v3236 = vpack.c.bf16 %v3203, %v3202
  %v3237 = vpack.c.bf16 %v3205, %v3204
  %v3238 = vld [vmem:[%s4] sm:$0xf]
  %v3239 = vld [vmem:[%s4 + $0x4] sm:$0xf]
  %v3240 = vld [vmem:[%s4 + $0x8] sm:$0xf]
  %v3241 = vld [vmem:[%s4 + $0xc] sm:$0xf]
  %v3246 = vunpack.c.l.b16 %v3238
  %v3247 = vunpack.c.l.b16 %v3239
  %v3248 = vunpack.c.l.b16 %v3240
  %v3249 = vunpack.c.l.b16 %v3241
  %v3250 = vpack.c.b16 %v3247, %v3246
  %v3251 = vpack.c.b16 %v3249, %v3248
  %v3255 = vsel %vm590, %v3206, 0
  %v3258 = vsel %vm590, %v3207, 0
  %v3261 = vsel %vm590, %v3208, 0
  %v3264 = vsel %vm590, %v3209, 0
  %v3267 = vsel %vm590, %v3210, 0
  %v3270 = vsel %vm590, %v3211, 0
  %v3273 = vsel %vm590, %v3212, 0
  %v3276 = vsel %vm590, %v3213, 0
  %v3279 = vsel %vm590, %v3214, 0
  %v3282 = vsel %vm590, %v3215, 0
  %v3285 = vsel %vm590, %v3216, 0
  %v3288 = vsel %vm590, %v3217, 0
  %v3291 = vsel %vm590, %v3218, 0
  %v3294 = vsel %vm590, %v3219, 0
  %v3297 = vsel %vm590, %v3220, 0
  %v3300 = vsel %vm590, %v3221, 0
  %v3303 = vsel %vm590, %v3222, 0
  %v3306 = vsel %vm590, %v3223, 0
  %v3309 = vsel %vm590, %v3224, 0
  %v3312 = vsel %vm590, %v3225, 0
  %v3315 = vsel %vm590, %v3226, 0
  %v3318 = vsel %vm590, %v3227, 0
  %v3321 = vsel %vm590, %v3228, 0
  %v3324 = vsel %vm590, %v3229, 0
  %v3327 = vsel %vm590, %v3230, 0
  %v3330 = vsel %vm590, %v3231, 0
  %v3333 = vsel %vm590, %v3232, 0
  %v3336 = vsel %vm590, %v3233, 0
  %v3339 = vsel %vm590, %v3234, 0
  %v3342 = vsel %vm590, %v3235, 0
  %v3345 = vsel %vm590, %v3236, 0
  %v3348 = vsel %vm590, %v3237, 0
  %3350 = vmatprep.subr.bf16.mxu0 0
  %3351 = vmatpush1.bf16.msra.mxu0 %v3250
  %3352 = vmatprep.subr.bf16.mxu0 0
  %3353 = vmatpush1.bf16.msra.mxu0 %v3251
  %3354 = vmatprep.subr.bf16.mxu0 0
  %3355 = vmatpush1.bf16.msra.mxu0 0
  %3356 = vmatprep.subr.bf16.mxu0 0
  %3357 = vmatpush1.bf16.msra.mxu0 0
  %3358 = vmatprep.subr.bf16.mxu0 0
  %3359 = vmatpush1.bf16.msra.mxu0 0
  %3360 = vmatprep.subr.bf16.mxu0 0
  %3361 = vmatpush1.bf16.msra.mxu0 0
  %3362 = vmatprep.subr.bf16.mxu0 0
  %3363 = vmatpush1.bf16.msra.mxu0 0
  %3364 = vmatprep.subr.bf16.mxu0 0
  %3365 = vmatpush1.bf16.msra.mxu0 0
  %3366 = vmatprep.subr.bf16.mxu0 0
  %3367 = vmatpush1.bf16.msra.mxu0 0
  %3368 = vmatprep.subr.bf16.mxu0 0
  %3369 = vmatpush1.bf16.msra.mxu0 0
  %3370 = vmatprep.subr.bf16.mxu0 0
  %3371 = vmatpush1.bf16.msra.mxu0 0
  %3372 = vmatprep.subr.bf16.mxu0 0
  %3373 = vmatpush1.bf16.msra.mxu0 0
  %3374 = vmatprep.subr.bf16.mxu0 0
  %3375 = vmatpush1.bf16.msra.mxu0 0
  %3376 = vmatprep.subr.bf16.mxu0 0
  %3377 = vmatpush1.bf16.msra.mxu0 0
  %3378 = vmatprep.subr.bf16.mxu0 0
  %3379 = vmatpush1.bf16.msra.mxu0 0
  %3380 = vmatprep.subr.bf16.mxu0 0
  %3381 = vmatpush1.bf16.msra.mxu0 0
  %3382 = vmatprep.mubr.bf16.mxu0 0
  %3383 = vmatmul.mubr.bf16.gmra.mrb[0].mxu0 %v3255
  %v3384 = vpop.f32.mrb[0].mxu0
  %v3385 = vadd.f32 0.0, %v3384
  %v3386 = vpop.f32.mrb[0].mxu0
  %v3387 = vpop.f32.mrb[0].mxu0
  %v3388 = vadd.f32 0.0, %v3387
  %v3389 = vpop.f32.mrb[0].mxu0
  %3390 = vmatprep.mubr.bf16.mxu0 0
  %3391 = vmatmul.mubr.bf16.gmra.mrb[0].mxu0 %v3258
  %v3392 = vpop.f32.mrb[0].mxu0
  %v3393 = vadd.f32 0.0, %v3392
  %v3394 = vpop.f32.mrb[0].mxu0
  %v3395 = vpop.f32.mrb[0].mxu0
  %v3396 = vadd.f32 0.0, %v3395
  %v3397 = vpop.f32.mrb[0].mxu0
  %3398 = vmatprep.mubr.bf16.mxu0 0
  %3399 = vmatmul.mubr.bf16.gmra.mrb[0].mxu0 %v3261
  %v3400 = vpop.f32.mrb[0].mxu0
  %v3401 = vadd.f32 0.0, %v3400
  %v3402 = vpop.f32.mrb[0].mxu0
  %v3403 = vpop.f32.mrb[0].mxu0
  %v3404 = vadd.f32 0.0, %v3403
  %v3405 = vpop.f32.mrb[0].mxu0
  %3406 = vmatprep.mubr.bf16.mxu0 0
  %3407 = vmatmul.mubr.bf16.gmra.mrb[0].mxu0 %v3264
  %v3408 = vpop.f32.mrb[0].mxu0
  %v3409 = vadd.f32 0.0, %v3408
  %v3410 = vpop.f32.mrb[0].mxu0
  %v3411 = vpop.f32.mrb[0].mxu0
  %v3412 = vadd.f32 0.0, %v3411
  %v3413 = vpop.f32.mrb[0].mxu0
  %3414 = vmatprep.mubr.bf16.mxu0 0
  %3415 = vmatmul.mubr.bf16.gmra.mrb[0].mxu0 %v3267
  %v3416 = vpop.f32.mrb[0].mxu0
  %v3417 = vadd.f32 0.0, %v3416
  %v3418 = vpop.f32.mrb[0].mxu0
  %v3419 = vpop.f32.mrb[0].mxu0
  %v3420 = vadd.f32 0.0, %v3419
  %v3421 = vpop.f32.mrb[0].mxu0
  %3422 = vmatprep.mubr.bf16.mxu0 0
  %3423 = vmatmul.mubr.bf16.gmra.mrb[0].mxu0 %v3270
  %v3424 = vpop.f32.mrb[0].mxu0
  %v3425 = vadd.f32 0.0, %v3424
  %v3426 = vpop.f32.mrb[0].mxu0
  %v3427 = vpop.f32.mrb[0].mxu0
  %v3428 = vadd.f32 0.0, %v3427
  %v3429 = vpop.f32.mrb[0].mxu0
  %3430 = vmatprep.mubr.bf16.mxu0 0
  %3431 = vmatmul.mubr.bf16.gmra.mrb[0].mxu0 %v3273
  %v3432 = vpop.f32.mrb[0].mxu0
  %v3433 = vadd.f32 0.0, %v3432
  %v3434 = vpop.f32.mrb[0].mxu0
  %v3435 = vpop.f32.mrb[0].mxu0
  %v3436 = vadd.f32 0.0, %v3435
  %v3437 = vpop.f32.mrb[0].mxu0
  %3438 = vmatprep.mubr.bf16.mxu0 0
  %3439 = vmatmul.mubr.bf16.gmra.mrb[0].mxu0 %v3276
  %v3440 = vpop.f32.mrb[0].mxu0
  %v3441 = vadd.f32 0.0, %v3440
  %v3442 = vpop.f32.mrb[0].mxu0
  %v3443 = vpop.f32.mrb[0].mxu0
  %v3444 = vadd.f32 0.0, %v3443
  %v3445 = vpop.f32.mrb[0].mxu0
  %3446 = vmatprep.mubr.bf16.mxu0 0
  %3447 = vmatmul.mubr.bf16.gmra.mrb[0].mxu0 %v3279
  %v3448 = vpop.f32.mrb[0].mxu0
  %v3449 = vadd.f32 0.0, %v3448
  %v3450 = vpop.f32.mrb[0].mxu0
  %v3451 = vpop.f32.mrb[0].mxu0
  %v3452 = vadd.f32 0.0, %v3451
  %v3453 = vpop.f32.mrb[0].mxu0
  %3454 = vmatprep.mubr.bf16.mxu0 0
  %3455 = vmatmul.mubr.bf16.gmra.mrb[0].mxu0 %v3282
  %v3456 = vpop.f32.mrb[0].mxu0
  %v3457 = vadd.f32 0.0, %v3456
  %v3458 = vpop.f32.mrb[0].mxu0
  %v3459 = vpop.f32.mrb[0].mxu0
  %v3460 = vadd.f32 0.0, %v3459
  %v3461 = vpop.f32.mrb[0].mxu0
  %3462 = vmatprep.mubr.bf16.mxu0 0
  %3463 = vmatmul.mubr.bf16.gmra.mrb[0].mxu0 %v3285
  %v3464 = vpop.f32.mrb[0].mxu0
  %v3465 = vadd.f32 0.0, %v3464
  %v3466 = vpop.f32.mrb[0].mxu0
  %v3467 = vpop.f32.mrb[0].mxu0
  %v3468 = vadd.f32 0.0, %v3467
  %v3469 = vpop.f32.mrb[0].mxu0
  %3470 = vmatprep.mubr.bf16.mxu0 0
  %3471 = vmatmul.mubr.bf16.gmra.mrb[0].mxu0 %v3288
  %v3472 = vpop.f32.mrb[0].mxu0
  %v3473 = vadd.f32 0.0, %v3472
  %v3474 = vpop.f32.mrb[0].mxu0
  %v3475 = vpop.f32.mrb[0].mxu0
  %v3476 = vadd.f32 0.0, %v3475
  %v3477 = vpop.f32.mrb[0].mxu0
  %3478 = vmatprep.mubr.bf16.mxu0 0
  %3479 = vmatmul.mubr.bf16.gmra.mrb[0].mxu0 %v3291
  %v3480 = vpop.f32.mrb[0].mxu0
  %v3481 = vadd.f32 0.0, %v3480
  %v3482 = vpop.f32.mrb[0].mxu0
  %v3483 = vpop.f32.mrb[0].mxu0
  %v3484 = vadd.f32 0.0, %v3483
  %v3485 = vpop.f32.mrb[0].mxu0
  %3486 = vmatprep.mubr.bf16.mxu0 0
  %3487 = vmatmul.mubr.bf16.gmra.mrb[0].mxu0 %v3294
  %v3488 = vpop.f32.mrb[0].mxu0
  %v3489 = vadd.f32 0.0, %v3488
  %v3490 = vpop.f32.mrb[0].mxu0
  %v3491 = vpop.f32.mrb[0].mxu0
  %v3492 = vadd.f32 0.0, %v3491
  %v3493 = vpop.f32.mrb[0].mxu0
  %3494 = vmatprep.mubr.bf16.mxu0 0
  %3495 = vmatmul.mubr.bf16.gmra.mrb[0].mxu0 %v3297
  %v3496 = vpop.f32.mrb[0].mxu0
  %v3497 = vadd.f32 0.0, %v3496
  %v3498 = vpop.f32.mrb[0].mxu0
  %v3499 = vpop.f32.mrb[0].mxu0
  %v3500 = vadd.f32 0.0, %v3499
  %v3501 = vpop.f32.mrb[0].mxu0
  %3502 = vmatprep.mubr.bf16.mxu0 0
  %3503 = vmatmul.mubr.bf16.gmra.mrb[0].mxu0 %v3300
  %v3504 = vpop.f32.mrb[0].mxu0
  %v3505 = vadd.f32 0.0, %v3504
  %v3506 = vpop.f32.mrb[0].mxu0
  %v3507 = vpop.f32.mrb[0].mxu0
  %v3508 = vadd.f32 0.0, %v3507
  %v3509 = vpop.f32.mrb[0].mxu0
  %3510 = vmatprep.mubr.bf16.mxu0 0
  %3511 = vmatmul.mubr.bf16.gmra.mrb[0].mxu0 %v3303
  %v3512 = vpop.f32.mrb[0].mxu0
  %v3513 = vadd.f32 0.0, %v3512
  %v3514 = vpop.f32.mrb[0].mxu0
  %v3515 = vpop.f32.mrb[0].mxu0
  %v3516 = vadd.f32 0.0, %v3515
  %v3517 = vpop.f32.mrb[0].mxu0
  %3518 = vmatprep.mubr.bf16.mxu0 0
  %3519 = vmatmul.mubr.bf16.gmra.mrb[0].mxu0 %v3306
  %v3520 = vpop.f32.mrb[0].mxu0
  %v3521 = vadd.f32 0.0, %v3520
  %v3522 = vpop.f32.mrb[0].mxu0
  %v3523 = vpop.f32.mrb[0].mxu0
  %v3524 = vadd.f32 0.0, %v3523
  %v3525 = vpop.f32.mrb[0].mxu0
  %3526 = vmatprep.mubr.bf16.mxu0 0
  %3527 = vmatmul.mubr.bf16.gmra.mrb[0].mxu0 %v3309
  %v3528 = vpop.f32.mrb[0].mxu0
  %v3529 = vadd.f32 0.0, %v3528
  %v3530 = vpop.f32.mrb[0].mxu0
  %v3531 = vpop.f32.mrb[0].mxu0
  %v3532 = vadd.f32 0.0, %v3531
  %v3533 = vpop.f32.mrb[0].mxu0
  %3534 = vmatprep.mubr.bf16.mxu0 0
  %3535 = vmatmul.mubr.bf16.gmra.mrb[0].mxu0 %v3312
  %v3536 = vpop.f32.mrb[0].mxu0
  %v3537 = vadd.f32 0.0, %v3536
  %v3538 = vpop.f32.mrb[0].mxu0
  %v3539 = vpop.f32.mrb[0].mxu0
  %v3540 = vadd.f32 0.0, %v3539
  %v3541 = vpop.f32.mrb[0].mxu0
  %3542 = vmatprep.mubr.bf16.mxu0 0
  %3543 = vmatmul.mubr.bf16.gmra.mrb[0].mxu0 %v3315
  %v3544 = vpop.f32.mrb[0].mxu0
  %v3545 = vadd.f32 0.0, %v3544
  %v3546 = vpop.f32.mrb[0].mxu0
  %v3547 = vpop.f32.mrb[0].mxu0
  %v3548 = vadd.f32 0.0, %v3547
  %v3549 = vpop.f32.mrb[0].mxu0
  %3550 = vmatprep.mubr.bf16.mxu0 0
  %3551 = vmatmul.mubr.bf16.gmra.mrb[0].mxu0 %v3318
  %v3552 = vpop.f32.mrb[0].mxu0
  %v3553 = vadd.f32 0.0, %v3552
  %v3554 = vpop.f32.mrb[0].mxu0
  %v3555 = vpop.f32.mrb[0].mxu0
  %v3556 = vadd.f32 0.0, %v3555
  %v3557 = vpop.f32.mrb[0].mxu0
  %3558 = vmatprep.mubr.bf16.mxu0 0
  %3559 = vmatmul.mubr.bf16.gmra.mrb[0].mxu0 %v3321
  %v3560 = vpop.f32.mrb[0].mxu0
  %v3561 = vadd.f32 0.0, %v3560
  %v3562 = vpop.f32.mrb[0].mxu0
  %v3563 = vpop.f32.mrb[0].mxu0
  %v3564 = vadd.f32 0.0, %v3563
  %v3565 = vpop.f32.mrb[0].mxu0
  %3566 = vmatprep.mubr.bf16.mxu0 0
  %3567 = vmatmul.mubr.bf16.gmra.mrb[0].mxu0 %v3324
  %v3568 = vpop.f32.mrb[0].mxu0
  %v3569 = vadd.f32 0.0, %v3568
  %v3570 = vpop.f32.mrb[0].mxu0
  %v3571 = vpop.f32.mrb[0].mxu0
  %v3572 = vadd.f32 0.0, %v3571
  %v3573 = vpop.f32.mrb[0].mxu0
  %3574 = vmatprep.mubr.bf16.mxu0 0
  %3575 = vmatmul.mubr.bf16.gmra.mrb[0].mxu0 %v3327
  %v3576 = vpop.f32.mrb[0].mxu0
  %v3577 = vadd.f32 0.0, %v3576
  %v3578 = vpop.f32.mrb[0].mxu0
  %v3579 = vpop.f32.mrb[0].mxu0
  %v3580 = vadd.f32 0.0, %v3579
  %v3581 = vpop.f32.mrb[0].mxu0
  %3582 = vmatprep.mubr.bf16.mxu0 0
  %3583 = vmatmul.mubr.bf16.gmra.mrb[0].mxu0 %v3330
  %v3584 = vpop.f32.mrb[0].mxu0
  %v3585 = vadd.f32 0.0, %v3584
  %v3586 = vpop.f32.mrb[0].mxu0
  %v3587 = vpop.f32.mrb[0].mxu0
  %v3588 = vadd.f32 0.0, %v3587
  %v3589 = vpop.f32.mrb[0].mxu0
  %3590 = vmatprep.mubr.bf16.mxu0 0
  %3591 = vmatmul.mubr.bf16.gmra.mrb[0].mxu0 %v3333
  %v3592 = vpop.f32.mrb[0].mxu0
  %v3593 = vadd.f32 0.0, %v3592
  %v3594 = vpop.f32.mrb[0].mxu0
  %v3595 = vpop.f32.mrb[0].mxu0
  %v3596 = vadd.f32 0.0, %v3595
  %v3597 = vpop.f32.mrb[0].mxu0
  %3598 = vmatprep.mubr.bf16.mxu0 0
  %3599 = vmatmul.mubr.bf16.gmra.mrb[0].mxu0 %v3336
  %v3600 = vpop.f32.mrb[0].mxu0
  %v3601 = vadd.f32 0.0, %v3600
  %v3602 = vpop.f32.mrb[0].mxu0
  %v3603 = vpop.f32.mrb[0].mxu0
  %v3604 = vadd.f32 0.0, %v3603
  %v3605 = vpop.f32.mrb[0].mxu0
  %3606 = vmatprep.mubr.bf16.mxu0 0
  %3607 = vmatmul.mubr.bf16.gmra.mrb[0].mxu0 %v3339
  %v3608 = vpop.f32.mrb[0].mxu0
  %v3609 = vadd.f32 0.0, %v3608
  %v3610 = vpop.f32.mrb[0].mxu0
  %v3611 = vpop.f32.mrb[0].mxu0
  %v3612 = vadd.f32 0.0, %v3611
  %v3613 = vpop.f32.mrb[0].mxu0
  %3614 = vmatprep.mubr.bf16.mxu0 0
  %3615 = vmatmul.mubr.bf16.gmra.mrb[0].mxu0 %v3342
  %v3616 = vpop.f32.mrb[0].mxu0
  %v3617 = vadd.f32 0.0, %v3616
  %v3618 = vpop.f32.mrb[0].mxu0
  %v3619 = vpop.f32.mrb[0].mxu0
  %v3620 = vadd.f32 0.0, %v3619
  %v3621 = vpop.f32.mrb[0].mxu0
  %3622 = vmatprep.mubr.bf16.mxu0 0
  %3623 = vmatmul.mubr.bf16.gmra.mrb[0].mxu0 %v3345
  %v3624 = vpop.f32.mrb[0].mxu0
  %v3625 = vadd.f32 0.0, %v3624
  %v3626 = vpop.f32.mrb[0].mxu0
  %v3627 = vpop.f32.mrb[0].mxu0
  %v3628 = vadd.f32 0.0, %v3627
  %v3629 = vpop.f32.mrb[0].mxu0
  %3630 = vmatprep.mubr.bf16.mxu0 0
  %3631 = vmatmul.mubr.bf16.gmra.mrb[0].mxu0 %v3348
  %v3632 = vpop.f32.mrb[0].mxu0
  %v3633 = vadd.f32 0.0, %v3632
  %v3634 = vpop.f32.mrb[0].mxu0
  %v3635 = vpop.f32.mrb[0].mxu0
  %v3636 = vadd.f32 0.0, %v3635
  %v3637 = vpop.f32.mrb[0].mxu0
  %3638 = vdwg.mxu0
  %v3639 = vmul.f32 %v225, %v3385
  %v3640 = vmul.f32 %v230, %v3388
  %v3641 = vmul.f32 %v235, %v3393
  %v3642 = vmul.f32 %v240, %v3396
  %v3643 = vmul.f32 %v245, %v3401
  %v3644 = vmul.f32 %v250, %v3404
  %v3645 = vmul.f32 %v255, %v3409
  %v3646 = vmul.f32 %v260, %v3412
  %v3647 = vmul.f32 %v265, %v3417
  %v3648 = vmul.f32 %v270, %v3420
  %v3649 = vmul.f32 %v275, %v3425
  %v3650 = vmul.f32 %v280, %v3428
  %v3651 = vmul.f32 %v285, %v3433
  %v3652 = vmul.f32 %v290, %v3436
  %v3653 = vmul.f32 %v295, %v3441
  %v3654 = vmul.f32 %v300, %v3444
  %v3655 = vmul.f32 %v305, %v3449
  %v3656 = vmul.f32 %v310, %v3452
  %v3657 = vmul.f32 %v315, %v3457
  %v3658 = vmul.f32 %v320, %v3460
  %v3659 = vmul.f32 %v325, %v3465
  %v3660 = vmul.f32 %v330, %v3468
  %v3661 = vmul.f32 %v335, %v3473
  %v3662 = vmul.f32 %v340, %v3476
  %v3663 = vmul.f32 %v345, %v3481
  %v3664 = vmul.f32 %v350, %v3484
  %v3665 = vmul.f32 %v355, %v3489
  %v3666 = vmul.f32 %v360, %v3492
  %v3667 = vmul.f32 %v365, %v3497
  %v3668 = vmul.f32 %v370, %v3500
  %v3669 = vmul.f32 %v375, %v3505
  %v3670 = vmul.f32 %v380, %v3508
  %v3671 = vmul.f32 %v385, %v3513
  %v3672 = vmul.f32 %v390, %v3516
  %v3673 = vmul.f32 %v395, %v3521
  %v3674 = vmul.f32 %v400, %v3524
  %v3675 = vmul.f32 %v405, %v3529
  %v3676 = vmul.f32 %v410, %v3532
  %v3677 = vmul.f32 %v415, %v3537
  %v3678 = vmul.f32 %v420, %v3540
  %v3679 = vmul.f32 %v425, %v3545
  %v3680 = vmul.f32 %v430, %v3548
  %v3681 = vmul.f32 %v435, %v3553
  %v3682 = vmul.f32 %v440, %v3556
  %v3683 = vmul.f32 %v445, %v3561
  %v3684 = vmul.f32 %v450, %v3564
  %v3685 = vmul.f32 %v455, %v3569
  %v3686 = vmul.f32 %v460, %v3572
  %v3687 = vmul.f32 %v465, %v3577
  %v3688 = vmul.f32 %v470, %v3580
  %v3689 = vmul.f32 %v475, %v3585
  %v3690 = vmul.f32 %v480, %v3588
  %v3691 = vmul.f32 %v485, %v3593
  %v3692 = vmul.f32 %v490, %v3596
  %v3693 = vmul.f32 %v495, %v3601
  %v3694 = vmul.f32 %v500, %v3604
  %v3695 = vmul.f32 %v505, %v3609
  %v3696 = vmul.f32 %v510, %v3612
  %v3697 = vmul.f32 %v515, %v3617
  %v3698 = vmul.f32 %v520, %v3620
  %v3699 = vmul.f32 %v525, %v3625
  %v3700 = vmul.f32 %v530, %v3628
  %v3701 = vmul.f32 %v535, %v3633
  %v3702 = vmul.f32 %v540, %v3636
  %v3703 = vpack.c.bf16 %v3640, %v3639
  %v3704 = vpack.c.bf16 %v3642, %v3641
  %v3705 = vpack.c.bf16 %v3644, %v3643
  %v3706 = vpack.c.bf16 %v3646, %v3645
  %v3707 = vpack.c.bf16 %v3648, %v3647
  %v3708 = vpack.c.bf16 %v3650, %v3649
  %v3709 = vpack.c.bf16 %v3652, %v3651
  %v3710 = vpack.c.bf16 %v3654, %v3653
  %v3711 = vpack.c.bf16 %v3656, %v3655
  %v3712 = vpack.c.bf16 %v3658, %v3657
  %v3713 = vpack.c.bf16 %v3660, %v3659
  %v3714 = vpack.c.bf16 %v3662, %v3661
  %v3715 = vpack.c.bf16 %v3664, %v3663
  %v3716 = vpack.c.bf16 %v3666, %v3665
  %v3717 = vpack.c.bf16 %v3668, %v3667
  %v3718 = vpack.c.bf16 %v3670, %v3669
  %v3719 = vpack.c.bf16 %v3672, %v3671
  %v3720 = vpack.c.bf16 %v3674, %v3673
  %v3721 = vpack.c.bf16 %v3676, %v3675
  %v3722 = vpack.c.bf16 %v3678, %v3677
  %v3723 = vpack.c.bf16 %v3680, %v3679
  %v3724 = vpack.c.bf16 %v3682, %v3681
  %v3725 = vpack.c.bf16 %v3684, %v3683
  %v3726 = vpack.c.bf16 %v3686, %v3685
  %v3727 = vpack.c.bf16 %v3688, %v3687
  %v3728 = vpack.c.bf16 %v3690, %v3689
  %v3729 = vpack.c.bf16 %v3692, %v3691
  %v3730 = vpack.c.bf16 %v3694, %v3693
  %v3731 = vpack.c.bf16 %v3696, %v3695
  %v3732 = vpack.c.bf16 %v3698, %v3697
  %v3733 = vpack.c.bf16 %v3700, %v3699
  %v3734 = vpack.c.bf16 %v3702, %v3701
  %3735 = vmatprep.subr.bf16.mxu0 0
  %3736 = vmatpush1.bf16.msra.mxu0 %v3703
  %3737 = vmatprep.subr.bf16.mxu0 0
  %3738 = vmatpush1.bf16.msra.mxu0 %v3704
  %3739 = vmatprep.subr.bf16.mxu0 0
  %3740 = vmatpush1.bf16.msra.mxu0 %v3705
  %3741 = vmatprep.subr.bf16.mxu0 0
  %3742 = vmatpush1.bf16.msra.mxu0 %v3706
  %3743 = vmatprep.subr.bf16.mxu0 0
  %3744 = vmatpush1.bf16.msra.mxu0 0
  %3745 = vmatprep.subr.bf16.mxu0 0
  %3746 = vmatpush1.bf16.msra.mxu0 0
  %3747 = vmatprep.subr.bf16.mxu0 0
  %3748 = vmatpush1.bf16.msra.mxu0 0
  %3749 = vmatprep.subr.bf16.mxu0 0
  %3750 = vmatpush1.bf16.msra.mxu0 0
  %3751 = vmatprep.subr.bf16.mxu0 0
  %3752 = vmatpush1.bf16.msra.mxu0 0
  %3753 = vmatprep.subr.bf16.mxu0 0
  %3754 = vmatpush1.bf16.msra.mxu0 0
  %3755 = vmatprep.subr.bf16.mxu0 0
  %3756 = vmatpush1.bf16.msra.mxu0 0
  %3757 = vmatprep.subr.bf16.mxu0 0
  %3758 = vmatpush1.bf16.msra.mxu0 0
  %3759 = vmatprep.subr.bf16.mxu0 0
  %3760 = vmatpush1.bf16.msra.mxu0 0
  %3761 = vmatprep.subr.bf16.mxu0 0
  %3762 = vmatpush1.bf16.msra.mxu0 0
  %3763 = vmatprep.subr.bf16.mxu0 0
  %3764 = vmatpush1.bf16.msra.mxu0 0
  %3765 = vmatprep.subr.bf16.mxu0 0
  %3766 = vmatpush1.bf16.msra.mxu0 0
  %3767 = vmatprep.mubr.bf16.mxu0 0
  %3768 = vmatmul.mubr.bf16.gmra.mrb[0].mxu0 %v1094
  %v3769 = vpop.f32.mrb[0].mxu0
  %v3770 = vadd.f32 0.0, %v3769
  %v3771 = vpop.f32.mrb[0].mxu0
  %v3772 = vpop.f32.mrb[0].mxu0
  %v3773 = vadd.f32 0.0, %v3772
  %v3774 = vpop.f32.mrb[0].mxu0
  %3775 = vmatprep.mubr.bf16.mxu0 0
  %3776 = vmatmul.mubr.bf16.gmra.mrb[0].mxu0 %v1097
  %v3777 = vpop.f32.mrb[0].mxu0
  %v3778 = vadd.f32 0.0, %v3777
  %v3779 = vpop.f32.mrb[0].mxu0
  %v3780 = vpop.f32.mrb[0].mxu0
  %v3781 = vadd.f32 0.0, %v3780
  %v3782 = vpop.f32.mrb[0].mxu0
  %3783 = vmatprep.mubr.bf16.mxu0 0
  %3784 = vmatmul.mubr.bf16.gmra.mrb[0].mxu0 %v1100
  %v3785 = vpop.f32.mrb[0].mxu0
  %v3786 = vadd.f32 0.0, %v3785
  %v3787 = vpop.f32.mrb[0].mxu0
  %v3788 = vpop.f32.mrb[0].mxu0
  %v3789 = vadd.f32 0.0, %v3788
  %v3790 = vpop.f32.mrb[0].mxu0
  %3791 = vmatprep.mubr.bf16.mxu0 0
  %3792 = vmatmul.mubr.bf16.gmra.mrb[0].mxu0 %v1103
  %v3793 = vpop.f32.mrb[0].mxu0
  %v3794 = vadd.f32 0.0, %v3793
  %v3795 = vpop.f32.mrb[0].mxu0
  %v3796 = vpop.f32.mrb[0].mxu0
  %v3797 = vadd.f32 0.0, %v3796
  %v3798 = vpop.f32.mrb[0].mxu0
  %3799 = vdwg.mxu0
  %3800 = vmatprep.subr.bf16.mxu0 0
  %3801 = vmatpush1.bf16.msra.mxu0 %v3707
  %3802 = vmatprep.subr.bf16.mxu0 0
  %3803 = vmatpush1.bf16.msra.mxu0 %v3708
  %3804 = vmatprep.subr.bf16.mxu0 0
  %3805 = vmatpush1.bf16.msra.mxu0 %v3709
  %3806 = vmatprep.subr.bf16.mxu0 0
  %3807 = vmatpush1.bf16.msra.mxu0 %v3710
  %3808 = vmatprep.subr.bf16.mxu0 0
  %3809 = vmatpush1.bf16.msra.mxu0 0
  %3810 = vmatprep.subr.bf16.mxu0 0
  %3811 = vmatpush1.bf16.msra.mxu0 0
  %3812 = vmatprep.subr.bf16.mxu0 0
  %3813 = vmatpush1.bf16.msra.mxu0 0
  %3814 = vmatprep.subr.bf16.mxu0 0
  %3815 = vmatpush1.bf16.msra.mxu0 0
  %3816 = vmatprep.subr.bf16.mxu0 0
  %3817 = vmatpush1.bf16.msra.mxu0 0
  %3818 = vmatprep.subr.bf16.mxu0 0
  %3819 = vmatpush1.bf16.msra.mxu0 0
  %3820 = vmatprep.subr.bf16.mxu0 0
  %3821 = vmatpush1.bf16.msra.mxu0 0
  %3822 = vmatprep.subr.bf16.mxu0 0
  %3823 = vmatpush1.bf16.msra.mxu0 0
  %3824 = vmatprep.subr.bf16.mxu0 0
  %3825 = vmatpush1.bf16.msra.mxu0 0
  %3826 = vmatprep.subr.bf16.mxu0 0
  %3827 = vmatpush1.bf16.msra.mxu0 0
  %3828 = vmatprep.subr.bf16.mxu0 0
  %3829 = vmatpush1.bf16.msra.mxu0 0
  %3830 = vmatprep.subr.bf16.mxu0 0
  %3831 = vmatpush1.bf16.msra.mxu0 0
  %3832 = vmatprep.mubr.bf16.mxu0 0
  %3833 = vmatmul.mubr.bf16.gmra.mrb[0].mxu0 %v1191
  %v3834 = vpop.f32.mrb[0].mxu0
  %v3835 = vadd.f32 0.0, %v3834
  %v3836 = vpop.f32.mrb[0].mxu0
  %v3837 = vpop.f32.mrb[0].mxu0
  %v3838 = vadd.f32 0.0, %v3837
  %v3839 = vpop.f32.mrb[0].mxu0
  %3840 = vmatprep.mubr.bf16.mxu0 0
  %3841 = vmatmul.mubr.bf16.gmra.mrb[0].mxu0 %v1194
  %v3842 = vpop.f32.mrb[0].mxu0
  %v3843 = vadd.f32 0.0, %v3842
  %v3844 = vpop.f32.mrb[0].mxu0
  %v3845 = vpop.f32.mrb[0].mxu0
  %v3846 = vadd.f32 0.0, %v3845
  %v3847 = vpop.f32.mrb[0].mxu0
  %3848 = vmatprep.mubr.bf16.mxu0 0
  %3849 = vmatmul.mubr.bf16.gmra.mrb[0].mxu0 %v1197
  %v3850 = vpop.f32.mrb[0].mxu0
  %v3851 = vadd.f32 0.0, %v3850
  %v3852 = vpop.f32.mrb[0].mxu0
  %v3853 = vpop.f32.mrb[0].mxu0
  %v3854 = vadd.f32 0.0, %v3853
  %v3855 = vpop.f32.mrb[0].mxu0
  %3856 = vmatprep.mubr.bf16.mxu0 0
  %3857 = vmatmul.mubr.bf16.gmra.mrb[0].mxu0 %v1200
  %v3858 = vpop.f32.mrb[0].mxu0
  %v3859 = vadd.f32 0.0, %v3858
  %v3860 = vpop.f32.mrb[0].mxu0
  %v3861 = vpop.f32.mrb[0].mxu0
  %v3862 = vadd.f32 0.0, %v3861
  %v3863 = vpop.f32.mrb[0].mxu0
  %3864 = vdwg.mxu0
  %3865 = vmatprep.subr.bf16.mxu0 0
  %3866 = vmatpush1.bf16.msra.mxu0 %v3711
  %3867 = vmatprep.subr.bf16.mxu0 0
  %3868 = vmatpush1.bf16.msra.mxu0 %v3712
  %3869 = vmatprep.subr.bf16.mxu0 0
  %3870 = vmatpush1.bf16.msra.mxu0 %v3713
  %3871 = vmatprep.subr.bf16.mxu0 0
  %3872 = vmatpush1.bf16.msra.mxu0 %v3714
  %3873 = vmatprep.subr.bf16.mxu0 0
  %3874 = vmatpush1.bf16.msra.mxu0 0
  %3875 = vmatprep.subr.bf16.mxu0 0
  %3876 = vmatpush1.bf16.msra.mxu0 0
  %3877 = vmatprep.subr.bf16.mxu0 0
  %3878 = vmatpush1.bf16.msra.mxu0 0
  %3879 = vmatprep.subr.bf16.mxu0 0
  %3880 = vmatpush1.bf16.msra.mxu0 0
  %3881 = vmatprep.subr.bf16.mxu0 0
  %3882 = vmatpush1.bf16.msra.mxu0 0
  %3883 = vmatprep.subr.bf16.mxu0 0
  %3884 = vmatpush1.bf16.msra.mxu0 0
  %3885 = vmatprep.subr.bf16.mxu0 0
  %3886 = vmatpush1.bf16.msra.mxu0 0
  %3887 = vmatprep.subr.bf16.mxu0 0
  %3888 = vmatpush1.bf16.msra.mxu0 0
  %3889 = vmatprep.subr.bf16.mxu0 0
  %3890 = vmatpush1.bf16.msra.mxu0 0
  %3891 = vmatprep.subr.bf16.mxu0 0
  %3892 = vmatpush1.bf16.msra.mxu0 0
  %3893 = vmatprep.subr.bf16.mxu0 0
  %3894 = vmatpush1.bf16.msra.mxu0 0
  %3895 = vmatprep.subr.bf16.mxu0 0
  %3896 = vmatpush1.bf16.msra.mxu0 0
  %3897 = vmatprep.mubr.bf16.mxu0 0
  %3898 = vmatmul.mubr.bf16.gmra.mrb[0].mxu0 %v1288
  %v3899 = vpop.f32.mrb[0].mxu0
  %v3900 = vadd.f32 0.0, %v3899
  %v3901 = vpop.f32.mrb[0].mxu0
  %v3902 = vpop.f32.mrb[0].mxu0
  %v3903 = vadd.f32 0.0, %v3902
  %v3904 = vpop.f32.mrb[0].mxu0
  %3905 = vmatprep.mubr.bf16.mxu0 0
  %3906 = vmatmul.mubr.bf16.gmra.mrb[0].mxu0 %v1291
  %v3907 = vpop.f32.mrb[0].mxu0
  %v3908 = vadd.f32 0.0, %v3907
  %v3909 = vpop.f32.mrb[0].mxu0
  %v3910 = vpop.f32.mrb[0].mxu0
  %v3911 = vadd.f32 0.0, %v3910
  %v3912 = vpop.f32.mrb[0].mxu0
  %3913 = vmatprep.mubr.bf16.mxu0 0
  %3914 = vmatmul.mubr.bf16.gmra.mrb[0].mxu0 %v1294
  %v3915 = vpop.f32.mrb[0].mxu0
  %v3916 = vadd.f32 0.0, %v3915
  %v3917 = vpop.f32.mrb[0].mxu0
  %v3918 = vpop.f32.mrb[0].mxu0
  %v3919 = vadd.f32 0.0, %v3918
  %v3920 = vpop.f32.mrb[0].mxu0
  %3921 = vmatprep.mubr.bf16.mxu0 0
  %3922 = vmatmul.mubr.bf16.gmra.mrb[0].mxu0 %v1297
  %v3923 = vpop.f32.mrb[0].mxu0
  %v3924 = vadd.f32 0.0, %v3923
  %v3925 = vpop.f32.mrb[0].mxu0
  %v3926 = vpop.f32.mrb[0].mxu0
  %v3927 = vadd.f32 0.0, %v3926
  %v3928 = vpop.f32.mrb[0].mxu0
  %3929 = vdwg.mxu0
  %3930 = vmatprep.subr.bf16.mxu0 0
  %3931 = vmatpush1.bf16.msra.mxu0 %v3715
  %3932 = vmatprep.subr.bf16.mxu0 0
  %3933 = vmatpush1.bf16.msra.mxu0 %v3716
  %3934 = vmatprep.subr.bf16.mxu0 0
  %3935 = vmatpush1.bf16.msra.mxu0 %v3717
  %3936 = vmatprep.subr.bf16.mxu0 0
  %3937 = vmatpush1.bf16.msra.mxu0 %v3718
  %3938 = vmatprep.subr.bf16.mxu0 0
  %3939 = vmatpush1.bf16.msra.mxu0 0
  %3940 = vmatprep.subr.bf16.mxu0 0
  %3941 = vmatpush1.bf16.msra.mxu0 0
  %3942 = vmatprep.subr.bf16.mxu0 0
  %3943 = vmatpush1.bf16.msra.mxu0 0
  %3944 = vmatprep.subr.bf16.mxu0 0
  %3945 = vmatpush1.bf16.msra.mxu0 0
  %3946 = vmatprep.subr.bf16.mxu0 0
  %3947 = vmatpush1.bf16.msra.mxu0 0
  %3948 = vmatprep.subr.bf16.mxu0 0
  %3949 = vmatpush1.bf16.msra.mxu0 0
  %3950 = vmatprep.subr.bf16.mxu0 0
  %3951 = vmatpush1.bf16.msra.mxu0 0
  %3952 = vmatprep.subr.bf16.mxu0 0
  %3953 = vmatpush1.bf16.msra.mxu0 0
  %3954 = vmatprep.subr.bf16.mxu0 0
  %3955 = vmatpush1.bf16.msra.mxu0 0
  %3956 = vmatprep.subr.bf16.mxu0 0
  %3957 = vmatpush1.bf16.msra.mxu0 0
  %3958 = vmatprep.subr.bf16.mxu0 0
  %3959 = vmatpush1.bf16.msra.mxu0 0
  %3960 = vmatprep.subr.bf16.mxu0 0
  %3961 = vmatpush1.bf16.msra.mxu0 0
  %3962 = vmatprep.mubr.bf16.mxu0 0
  %3963 = vmatmul.mubr.bf16.gmra.mrb[0].mxu0 %v1385
  %v3964 = vpop.f32.mrb[0].mxu0
  %v3965 = vadd.f32 0.0, %v3964
  %v3966 = vpop.f32.mrb[0].mxu0
  %v3967 = vpop.f32.mrb[0].mxu0
  %v3968 = vadd.f32 0.0, %v3967
  %v3969 = vpop.f32.mrb[0].mxu0
  %3970 = vmatprep.mubr.bf16.mxu0 0
  %3971 = vmatmul.mubr.bf16.gmra.mrb[0].mxu0 %v1388
  %v3972 = vpop.f32.mrb[0].mxu0
  %v3973 = vadd.f32 0.0, %v3972
  %v3974 = vpop.f32.mrb[0].mxu0
  %v3975 = vpop.f32.mrb[0].mxu0
  %v3976 = vadd.f32 0.0, %v3975
  %v3977 = vpop.f32.mrb[0].mxu0
  %3978 = vmatprep.mubr.bf16.mxu0 0
  %3979 = vmatmul.mubr.bf16.gmra.mrb[0].mxu0 %v1391
  %v3980 = vpop.f32.mrb[0].mxu0
  %v3981 = vadd.f32 0.0, %v3980
  %v3982 = vpop.f32.mrb[0].mxu0
  %v3983 = vpop.f32.mrb[0].mxu0
  %v3984 = vadd.f32 0.0, %v3983
  %v3985 = vpop.f32.mrb[0].mxu0
  %3986 = vmatprep.mubr.bf16.mxu0 0
  %3987 = vmatmul.mubr.bf16.gmra.mrb[0].mxu0 %v1394
  %v3988 = vpop.f32.mrb[0].mxu0
  %v3989 = vadd.f32 0.0, %v3988
  %v3990 = vpop.f32.mrb[0].mxu0
  %v3991 = vpop.f32.mrb[0].mxu0
  %v3992 = vadd.f32 0.0, %v3991
  %v3993 = vpop.f32.mrb[0].mxu0
  %3994 = vdwg.mxu0
  %3995 = vmatprep.subr.bf16.mxu0 0
  %3996 = vmatpush1.bf16.msra.mxu0 %v3719
  %3997 = vmatprep.subr.bf16.mxu0 0
  %3998 = vmatpush1.bf16.msra.mxu0 %v3720
  %3999 = vmatprep.subr.bf16.mxu0 0
  %4000 = vmatpush1.bf16.msra.mxu0 %v3721
  %4001 = vmatprep.subr.bf16.mxu0 0
  %4002 = vmatpush1.bf16.msra.mxu0 %v3722
  %4003 = vmatprep.subr.bf16.mxu0 0
  %4004 = vmatpush1.bf16.msra.mxu0 0
  %4005 = vmatprep.subr.bf16.mxu0 0
  %4006 = vmatpush1.bf16.msra.mxu0 0
  %4007 = vmatprep.subr.bf16.mxu0 0
  %4008 = vmatpush1.bf16.msra.mxu0 0
  %4009 = vmatprep.subr.bf16.mxu0 0
  %4010 = vmatpush1.bf16.msra.mxu0 0
  %4011 = vmatprep.subr.bf16.mxu0 0
  %4012 = vmatpush1.bf16.msra.mxu0 0
  %4013 = vmatprep.subr.bf16.mxu0 0
  %4014 = vmatpush1.bf16.msra.mxu0 0
  %4015 = vmatprep.subr.bf16.mxu0 0
  %4016 = vmatpush1.bf16.msra.mxu0 0
  %4017 = vmatprep.subr.bf16.mxu0 0
  %4018 = vmatpush1.bf16.msra.mxu0 0
  %4019 = vmatprep.subr.bf16.mxu0 0
  %4020 = vmatpush1.bf16.msra.mxu0 0
  %4021 = vmatprep.subr.bf16.mxu0 0
  %4022 = vmatpush1.bf16.msra.mxu0 0
  %4023 = vmatprep.subr.bf16.mxu0 0
  %4024 = vmatpush1.bf16.msra.mxu0 0
  %4025 = vmatprep.subr.bf16.mxu0 0
  %4026 = vmatpush1.bf16.msra.mxu0 0
  %4027 = vmatprep.mubr.bf16.mxu0 0
  %4028 = vmatmul.mubr.bf16.gmra.mrb[0].mxu0 %v1482
  %v4029 = vpop.f32.mrb[0].mxu0
  %v4030 = vadd.f32 0.0, %v4029
  %v4031 = vpop.f32.mrb[0].mxu0
  %v4032 = vpop.f32.mrb[0].mxu0
  %v4033 = vadd.f32 0.0, %v4032
  %v4034 = vpop.f32.mrb[0].mxu0
  %4035 = vmatprep.mubr.bf16.mxu0 0
  %4036 = vmatmul.mubr.bf16.gmra.mrb[0].mxu0 %v1485
  %v4037 = vpop.f32.mrb[0].mxu0
  %v4038 = vadd.f32 0.0, %v4037
  %v4039 = vpop.f32.mrb[0].mxu0
  %v4040 = vpop.f32.mrb[0].mxu0
  %v4041 = vadd.f32 0.0, %v4040
  %v4042 = vpop.f32.mrb[0].mxu0
  %4043 = vmatprep.mubr.bf16.mxu0 0
  %4044 = vmatmul.mubr.bf16.gmra.mrb[0].mxu0 %v1488
  %v4045 = vpop.f32.mrb[0].mxu0
  %v4046 = vadd.f32 0.0, %v4045
  %v4047 = vpop.f32.mrb[0].mxu0
  %v4048 = vpop.f32.mrb[0].mxu0
  %v4049 = vadd.f32 0.0, %v4048
  %v4050 = vpop.f32.mrb[0].mxu0
  %4051 = vmatprep.mubr.bf16.mxu0 0
  %4052 = vmatmul.mubr.bf16.gmra.mrb[0].mxu0 %v1491
  %v4053 = vpop.f32.mrb[0].mxu0
  %v4054 = vadd.f32 0.0, %v4053
  %v4055 = vpop.f32.mrb[0].mxu0
  %v4056 = vpop.f32.mrb[0].mxu0
  %v4057 = vadd.f32 0.0, %v4056
  %v4058 = vpop.f32.mrb[0].mxu0
  %4059 = vdwg.mxu0
  %4060 = vmatprep.subr.bf16.mxu0 0
  %4061 = vmatpush1.bf16.msra.mxu0 %v3723
  %4062 = vmatprep.subr.bf16.mxu0 0
  %4063 = vmatpush1.bf16.msra.mxu0 %v3724
  %4064 = vmatprep.subr.bf16.mxu0 0
  %4065 = vmatpush1.bf16.msra.mxu0 %v3725
  %4066 = vmatprep.subr.bf16.mxu0 0
  %4067 = vmatpush1.bf16.msra.mxu0 %v3726
  %4068 = vmatprep.subr.bf16.mxu0 0
  %4069 = vmatpush1.bf16.msra.mxu0 0
  %4070 = vmatprep.subr.bf16.mxu0 0
  %4071 = vmatpush1.bf16.msra.mxu0 0
  %4072 = vmatprep.subr.bf16.mxu0 0
  %4073 = vmatpush1.bf16.msra.mxu0 0
  %4074 = vmatprep.subr.bf16.mxu0 0
  %4075 = vmatpush1.bf16.msra.mxu0 0
  %4076 = vmatprep.subr.bf16.mxu0 0
  %4077 = vmatpush1.bf16.msra.mxu0 0
  %4078 = vmatprep.subr.bf16.mxu0 0
  %4079 = vmatpush1.bf16.msra.mxu0 0
  %4080 = vmatprep.subr.bf16.mxu0 0
  %4081 = vmatpush1.bf16.msra.mxu0 0
  %4082 = vmatprep.subr.bf16.mxu0 0
  %4083 = vmatpush1.bf16.msra.mxu0 0
  %4084 = vmatprep.subr.bf16.mxu0 0
  %4085 = vmatpush1.bf16.msra.mxu0 0
  %4086 = vmatprep.subr.bf16.mxu0 0
  %4087 = vmatpush1.bf16.msra.mxu0 0
  %4088 = vmatprep.subr.bf16.mxu0 0
  %4089 = vmatpush1.bf16.msra.mxu0 0
  %4090 = vmatprep.subr.bf16.mxu0 0
  %4091 = vmatpush1.bf16.msra.mxu0 0
  %4092 = vmatprep.mubr.bf16.mxu0 0
  %4093 = vmatmul.mubr.bf16.gmra.mrb[0].mxu0 %v1579
  %v4094 = vpop.f32.mrb[0].mxu0
  %v4095 = vadd.f32 0.0, %v4094
  %v4096 = vpop.f32.mrb[0].mxu0
  %v4097 = vpop.f32.mrb[0].mxu0
  %v4098 = vadd.f32 0.0, %v4097
  %v4099 = vpop.f32.mrb[0].mxu0
  %4100 = vmatprep.mubr.bf16.mxu0 0
  %4101 = vmatmul.mubr.bf16.gmra.mrb[0].mxu0 %v1582
  %v4102 = vpop.f32.mrb[0].mxu0
  %v4103 = vadd.f32 0.0, %v4102
  %v4104 = vpop.f32.mrb[0].mxu0
  %v4105 = vpop.f32.mrb[0].mxu0
  %v4106 = vadd.f32 0.0, %v4105
  %v4107 = vpop.f32.mrb[0].mxu0
  %4108 = vmatprep.mubr.bf16.mxu0 0
  %4109 = vmatmul.mubr.bf16.gmra.mrb[0].mxu0 %v1585
  %v4110 = vpop.f32.mrb[0].mxu0
  %v4111 = vadd.f32 0.0, %v4110
  %v4112 = vpop.f32.mrb[0].mxu0
  %v4113 = vpop.f32.mrb[0].mxu0
  %v4114 = vadd.f32 0.0, %v4113
  %v4115 = vpop.f32.mrb[0].mxu0
  %4116 = vmatprep.mubr.bf16.mxu0 0
  %4117 = vmatmul.mubr.bf16.gmra.mrb[0].mxu0 %v1588
  %v4118 = vpop.f32.mrb[0].mxu0
  %v4119 = vadd.f32 0.0, %v4118
  %v4120 = vpop.f32.mrb[0].mxu0
  %v4121 = vpop.f32.mrb[0].mxu0
  %v4122 = vadd.f32 0.0, %v4121
  %v4123 = vpop.f32.mrb[0].mxu0
  %4124 = vdwg.mxu0
  %4125 = vmatprep.subr.bf16.mxu0 0
  %4126 = vmatpush1.bf16.msra.mxu0 %v3727
  %4127 = vmatprep.subr.bf16.mxu0 0
  %4128 = vmatpush1.bf16.msra.mxu0 %v3728
  %4129 = vmatprep.subr.bf16.mxu0 0
  %4130 = vmatpush1.bf16.msra.mxu0 %v3729
  %4131 = vmatprep.subr.bf16.mxu0 0
  %4132 = vmatpush1.bf16.msra.mxu0 %v3730
  %4133 = vmatprep.subr.bf16.mxu0 0
  %4134 = vmatpush1.bf16.msra.mxu0 0
  %4135 = vmatprep.subr.bf16.mxu0 0
  %4136 = vmatpush1.bf16.msra.mxu0 0
  %4137 = vmatprep.subr.bf16.mxu0 0
  %4138 = vmatpush1.bf16.msra.mxu0 0
  %4139 = vmatprep.subr.bf16.mxu0 0
  %4140 = vmatpush1.bf16.msra.mxu0 0
  %4141 = vmatprep.subr.bf16.mxu0 0
  %4142 = vmatpush1.bf16.msra.mxu0 0
  %4143 = vmatprep.subr.bf16.mxu0 0
  %4144 = vmatpush1.bf16.msra.mxu0 0
  %4145 = vmatprep.subr.bf16.mxu0 0
  %4146 = vmatpush1.bf16.msra.mxu0 0
  %4147 = vmatprep.subr.bf16.mxu0 0
  %4148 = vmatpush1.bf16.msra.mxu0 0
  %4149 = vmatprep.subr.bf16.mxu0 0
  %4150 = vmatpush1.bf16.msra.mxu0 0
  %4151 = vmatprep.subr.bf16.mxu0 0
  %4152 = vmatpush1.bf16.msra.mxu0 0
  %4153 = vmatprep.subr.bf16.mxu0 0
  %4154 = vmatpush1.bf16.msra.mxu0 0
  %4155 = vmatprep.subr.bf16.mxu0 0
  %4156 = vmatpush1.bf16.msra.mxu0 0
  %4157 = vmatprep.mubr.bf16.mxu0 0
  %4158 = vmatmul.mubr.bf16.gmra.mrb[0].mxu0 %v1676
  %v4159 = vpop.f32.mrb[0].mxu0
  %v4160 = vadd.f32 0.0, %v4159
  %v4161 = vpop.f32.mrb[0].mxu0
  %v4162 = vpop.f32.mrb[0].mxu0
  %v4163 = vadd.f32 0.0, %v4162
  %v4164 = vpop.f32.mrb[0].mxu0
  %4165 = vmatprep.mubr.bf16.mxu0 0
  %4166 = vmatmul.mubr.bf16.gmra.mrb[0].mxu0 %v1679
  %v4167 = vpop.f32.mrb[0].mxu0
  %v4168 = vadd.f32 0.0, %v4167
  %v4169 = vpop.f32.mrb[0].mxu0
  %v4170 = vpop.f32.mrb[0].mxu0
  %v4171 = vadd.f32 0.0, %v4170
  %v4172 = vpop.f32.mrb[0].mxu0
  %4173 = vmatprep.mubr.bf16.mxu0 0
  %4174 = vmatmul.mubr.bf16.gmra.mrb[0].mxu0 %v1682
  %v4175 = vpop.f32.mrb[0].mxu0
  %v4176 = vadd.f32 0.0, %v4175
  %v4177 = vpop.f32.mrb[0].mxu0
  %v4178 = vpop.f32.mrb[0].mxu0
  %v4179 = vadd.f32 0.0, %v4178
  %v4180 = vpop.f32.mrb[0].mxu0
  %4181 = vmatprep.mubr.bf16.mxu0 0
  %4182 = vmatmul.mubr.bf16.gmra.mrb[0].mxu0 %v1685
  %v4183 = vpop.f32.mrb[0].mxu0
  %v4184 = vadd.f32 0.0, %v4183
  %v4185 = vpop.f32.mrb[0].mxu0
  %v4186 = vpop.f32.mrb[0].mxu0
  %v4187 = vadd.f32 0.0, %v4186
  %v4188 = vpop.f32.mrb[0].mxu0
  %4189 = vdwg.mxu0
  %4190 = vmatprep.subr.bf16.mxu0 0
  %4191 = vmatpush1.bf16.msra.mxu0 %v3731
  %4192 = vmatprep.subr.bf16.mxu0 0
  %4193 = vmatpush1.bf16.msra.mxu0 %v3732
  %4194 = vmatprep.subr.bf16.mxu0 0
  %4195 = vmatpush1.bf16.msra.mxu0 %v3733
  %4196 = vmatprep.subr.bf16.mxu0 0
  %4197 = vmatpush1.bf16.msra.mxu0 %v3734
  %4198 = vmatprep.subr.bf16.mxu0 0
  %4199 = vmatpush1.bf16.msra.mxu0 0
  %4200 = vmatprep.subr.bf16.mxu0 0
  %4201 = vmatpush1.bf16.msra.mxu0 0
  %4202 = vmatprep.subr.bf16.mxu0 0
  %4203 = vmatpush1.bf16.msra.mxu0 0
  %4204 = vmatprep.subr.bf16.mxu0 0
  %4205 = vmatpush1.bf16.msra.mxu0 0
  %4206 = vmatprep.subr.bf16.mxu0 0
  %4207 = vmatpush1.bf16.msra.mxu0 0
  %4208 = vmatprep.subr.bf16.mxu0 0
  %4209 = vmatpush1.bf16.msra.mxu0 0
  %4210 = vmatprep.subr.bf16.mxu0 0
  %4211 = vmatpush1.bf16.msra.mxu0 0
  %4212 = vmatprep.subr.bf16.mxu0 0
  %4213 = vmatpush1.bf16.msra.mxu0 0
  %4214 = vmatprep.subr.bf16.mxu0 0
  %4215 = vmatpush1.bf16.msra.mxu0 0
  %4216 = vmatprep.subr.bf16.mxu0 0
  %4217 = vmatpush1.bf16.msra.mxu0 0
  %4218 = vmatprep.subr.bf16.mxu0 0
  %4219 = vmatpush1.bf16.msra.mxu0 0
  %4220 = vmatprep.subr.bf16.mxu0 0
  %4221 = vmatpush1.bf16.msra.mxu0 0
  %4222 = vmatprep.mubr.bf16.mxu0 0
  %4223 = vmatmul.mubr.bf16.gmra.mrb[0].mxu0 %v1773
  %v4224 = vpop.f32.mrb[0].mxu0
  %v4225 = vadd.f32 0.0, %v4224
  %v4226 = vpop.f32.mrb[0].mxu0
  %v4227 = vpop.f32.mrb[0].mxu0
  %v4228 = vadd.f32 0.0, %v4227
  %v4229 = vpop.f32.mrb[0].mxu0
  %4230 = vmatprep.mubr.bf16.mxu0 0
  %4231 = vmatmul.mubr.bf16.gmra.mrb[0].mxu0 %v1776
  %v4232 = vpop.f32.mrb[0].mxu0
  %v4233 = vadd.f32 0.0, %v4232
  %v4234 = vpop.f32.mrb[0].mxu0
  %v4235 = vpop.f32.mrb[0].mxu0
  %v4236 = vadd.f32 0.0, %v4235
  %v4237 = vpop.f32.mrb[0].mxu0
  %4238 = vmatprep.mubr.bf16.mxu0 0
  %4239 = vmatmul.mubr.bf16.gmra.mrb[0].mxu0 %v1779
  %v4240 = vpop.f32.mrb[0].mxu0
  %v4241 = vadd.f32 0.0, %v4240
  %v4242 = vpop.f32.mrb[0].mxu0
  %v4243 = vpop.f32.mrb[0].mxu0
  %v4244 = vadd.f32 0.0, %v4243
  %v4245 = vpop.f32.mrb[0].mxu0
  %4246 = vmatprep.mubr.bf16.mxu0 0
  %4247 = vmatmul.mubr.bf16.gmra.mrb[0].mxu0 %v1782
  %v4248 = vpop.f32.mrb[0].mxu0
  %v4249 = vadd.f32 0.0, %v4248
  %v4250 = vpop.f32.mrb[0].mxu0
  %v4251 = vpop.f32.mrb[0].mxu0
  %v4252 = vadd.f32 0.0, %v4251
  %v4253 = vpop.f32.mrb[0].mxu0
  %4254 = vdwg.mxu0
  %v4255 = vmul.f32 %v225, %v3770
  %v4256 = vmul.f32 %v230, %v3773
  %v4257 = vmul.f32 %v235, %v3778
  %v4258 = vmul.f32 %v240, %v3781
  %v4259 = vmul.f32 %v245, %v3786
  %v4260 = vmul.f32 %v250, %v3789
  %v4261 = vmul.f32 %v255, %v3794
  %v4262 = vmul.f32 %v260, %v3797
  %v4263 = vmul.f32 %v265, %v3835
  %v4264 = vmul.f32 %v270, %v3838
  %v4265 = vmul.f32 %v275, %v3843
  %v4266 = vmul.f32 %v280, %v3846
  %v4267 = vmul.f32 %v285, %v3851
  %v4268 = vmul.f32 %v290, %v3854
  %v4269 = vmul.f32 %v295, %v3859
  %v4270 = vmul.f32 %v300, %v3862
  %v4271 = vmul.f32 %v305, %v3900
  %v4272 = vmul.f32 %v310, %v3903
  %v4273 = vmul.f32 %v315, %v3908
  %v4274 = vmul.f32 %v320, %v3911
  %v4275 = vmul.f32 %v325, %v3916
  %v4276 = vmul.f32 %v330, %v3919
  %v4277 = vmul.f32 %v335, %v3924
  %v4278 = vmul.f32 %v340, %v3927
  %v4279 = vmul.f32 %v345, %v3965
  %v4280 = vmul.f32 %v350, %v3968
  %v4281 = vmul.f32 %v355, %v3973
  %v4282 = vmul.f32 %v360, %v3976
  %v4283 = vmul.f32 %v365, %v3981
  %v4284 = vmul.f32 %v370, %v3984
  %v4285 = vmul.f32 %v375, %v3989
  %v4286 = vmul.f32 %v380, %v3992
  %v4287 = vmul.f32 %v385, %v4030
  %v4288 = vmul.f32 %v390, %v4033
  %v4289 = vmul.f32 %v395, %v4038
  %v4290 = vmul.f32 %v400, %v4041
  %v4291 = vmul.f32 %v405, %v4046
  %v4292 = vmul.f32 %v410, %v4049
  %v4293 = vmul.f32 %v415, %v4054
  %v4294 = vmul.f32 %v420, %v4057
  %v4295 = vmul.f32 %v425, %v4095
  %v4296 = vmul.f32 %v430, %v4098
  %v4297 = vmul.f32 %v435, %v4103
  %v4298 = vmul.f32 %v440, %v4106
  %v4299 = vmul.f32 %v445, %v4111
  %v4300 = vmul.f32 %v450, %v4114
  %v4301 = vmul.f32 %v455, %v4119
  %v4302 = vmul.f32 %v460, %v4122
  %v4303 = vmul.f32 %v465, %v4160
  %v4304 = vmul.f32 %v470, %v4163
  %v4305 = vmul.f32 %v475, %v4168
  %v4306 = vmul.f32 %v480, %v4171
  %v4307 = vmul.f32 %v485, %v4176
  %v4308 = vmul.f32 %v490, %v4179
  %v4309 = vmul.f32 %v495, %v4184
  %v4310 = vmul.f32 %v500, %v4187
  %v4311 = vmul.f32 %v505, %v4225
  %v4312 = vmul.f32 %v510, %v4228
  %v4313 = vmul.f32 %v515, %v4233
  %v4314 = vmul.f32 %v520, %v4236
  %v4315 = vmul.f32 %v525, %v4241
  %v4316 = vmul.f32 %v530, %v4244
  %v4317 = vmul.f32 %v535, %v4249
  %v4318 = vmul.f32 %v540, %v4252
  %v4319 = vlaneseq
  %v4320 = vshrl.u32 %v4319, 7
  %v4321 = vsub.s32 0, %v4320
  %v4322 = vrot.slane %v217, %v4321
  %v4323 = vadd.f32 %v4255, %v4322
  %v4324 = vadd.f32 %v4256, %v4322
  %v4325 = vadd.f32 %v4257, %v4322
  %v4326 = vadd.f32 %v4258, %v4322
  %v4327 = vadd.f32 %v4259, %v4322
  %v4328 = vadd.f32 %v4260, %v4322
  %v4329 = vadd.f32 %v4261, %v4322
  %v4330 = vadd.f32 %v4262, %v4322
  %v4331 = vadd.f32 %v4263, %v4322
  %v4332 = vadd.f32 %v4264, %v4322
  %v4333 = vadd.f32 %v4265, %v4322
  %v4334 = vadd.f32 %v4266, %v4322
  %v4335 = vadd.f32 %v4267, %v4322
  %v4336 = vadd.f32 %v4268, %v4322
  %v4337 = vadd.f32 %v4269, %v4322
  %v4338 = vadd.f32 %v4270, %v4322
  %v4339 = vadd.f32 %v4271, %v4322
  %v4340 = vadd.f32 %v4272, %v4322
  %v4341 = vadd.f32 %v4273, %v4322
  %v4342 = vadd.f32 %v4274, %v4322
  %v4343 = vadd.f32 %v4275, %v4322
  %v4344 = vadd.f32 %v4276, %v4322
  %v4345 = vadd.f32 %v4277, %v4322
  %v4346 = vadd.f32 %v4278, %v4322
  %v4347 = vadd.f32 %v4279, %v4322
  %v4348 = vadd.f32 %v4280, %v4322
  %v4349 = vadd.f32 %v4281, %v4322
  %v4350 = vadd.f32 %v4282, %v4322
  %v4351 = vadd.f32 %v4283, %v4322
  %v4352 = vadd.f32 %v4284, %v4322
  %v4353 = vadd.f32 %v4285, %v4322
  %v4354 = vadd.f32 %v4286, %v4322
  %v4355 = vadd.f32 %v4287, %v4322
  %v4356 = vadd.f32 %v4288, %v4322
  %v4357 = vadd.f32 %v4289, %v4322
  %v4358 = vadd.f32 %v4290, %v4322
  %v4359 = vadd.f32 %v4291, %v4322
  %v4360 = vadd.f32 %v4292, %v4322
  %v4361 = vadd.f32 %v4293, %v4322
  %v4362 = vadd.f32 %v4294, %v4322
  %v4363 = vadd.f32 %v4295, %v4322
  %v4364 = vadd.f32 %v4296, %v4322
  %v4365 = vadd.f32 %v4297, %v4322
  %v4366 = vadd.f32 %v4298, %v4322
  %v4367 = vadd.f32 %v4299, %v4322
  %v4368 = vadd.f32 %v4300, %v4322
  %v4369 = vadd.f32 %v4301, %v4322
  %v4370 = vadd.f32 %v4302, %v4322
  %v4371 = vadd.f32 %v4303, %v4322
  %v4372 = vadd.f32 %v4304, %v4322
  %v4373 = vadd.f32 %v4305, %v4322
  %v4374 = vadd.f32 %v4306, %v4322
  %v4375 = vadd.f32 %v4307, %v4322
  %v4376 = vadd.f32 %v4308, %v4322
  %v4377 = vadd.f32 %v4309, %v4322
  %v4378 = vadd.f32 %v4310, %v4322
  %v4379 = vadd.f32 %v4311, %v4322
  %v4380 = vadd.f32 %v4312, %v4322
  %v4381 = vadd.f32 %v4313, %v4322
  %v4382 = vadd.f32 %v4314, %v4322
  %v4383 = vadd.f32 %v4315, %v4322
  %v4384 = vadd.f32 %v4316, %v4322
  %v4385 = vadd.f32 %v4317, %v4322
  %v4386 = vadd.f32 %v4318, %v4322
  %v4387 = vadd.f32 %v4323, %v24
  %v4388 = vadd.f32 %v4324, %v25
  %v4389 = vadd.f32 %v4325, %v26
  %v4390 = vadd.f32 %v4326, %v27
  %v4391 = vadd.f32 %v4327, %v28
  %v4392 = vadd.f32 %v4328, %v29
  %v4393 = vadd.f32 %v4329, %v30
  %v4394 = vadd.f32 %v4330, %v31
  %v4395 = vadd.f32 %v4331, %v32
  %v4396 = vadd.f32 %v4332, %v33
  %v4397 = vadd.f32 %v4333, %v34
  %v4398 = vadd.f32 %v4334, %v35
  %v4399 = vadd.f32 %v4335, %v36
  %v4400 = vadd.f32 %v4336, %v37
  %v4401 = vadd.f32 %v4337, %v38
  %v4402 = vadd.f32 %v4338, %v39
  %v4403 = vadd.f32 %v4339, %v40
  %v4404 = vadd.f32 %v4340, %v41
  %v4405 = vadd.f32 %v4341, %v42
  %v4406 = vadd.f32 %v4342, %v43
  %v4407 = vadd.f32 %v4343, %v44
  %v4408 = vadd.f32 %v4344, %v45
  %v4409 = vadd.f32 %v4345, %v46
  %v4410 = vadd.f32 %v4346, %v47
  %v4411 = vadd.f32 %v4347, %v48
  %v4412 = vadd.f32 %v4348, %v49
  %v4413 = vadd.f32 %v4349, %v50
  %v4414 = vadd.f32 %v4350, %v51
  %v4415 = vadd.f32 %v4351, %v52
  %v4416 = vadd.f32 %v4352, %v53
  %v4417 = vadd.f32 %v4353, %v54
  %v4418 = vadd.f32 %v4354, %v55
  %v4419 = vadd.f32 %v4355, %v56
  %v4420 = vadd.f32 %v4356, %v57
  %v4421 = vadd.f32 %v4357, %v58
  %v4422 = vadd.f32 %v4358, %v59
  %v4423 = vadd.f32 %v4359, %v60
  %v4424 = vadd.f32 %v4360, %v61
  %v4425 = vadd.f32 %v4361, %v62
  %v4426 = vadd.f32 %v4362, %v63
  %v4427 = vadd.f32 %v4363, %v64
  %v4428 = vadd.f32 %v4364, %v65
  %v4429 = vadd.f32 %v4365, %v66
  %v4430 = vadd.f32 %v4366, %v67
  %v4431 = vadd.f32 %v4367, %v68
  %v4432 = vadd.f32 %v4368, %v69
  %v4433 = vadd.f32 %v4369, %v70
  %v4434 = vadd.f32 %v4370, %v71
  %v4435 = vadd.f32 %v4371, %v72
  %v4436 = vadd.f32 %v4372, %v73
  %v4437 = vadd.f32 %v4373, %v74
  %v4438 = vadd.f32 %v4374, %v75
  %v4439 = vadd.f32 %v4375, %v76
  %v4440 = vadd.f32 %v4376, %v77
  %v4441 = vadd.f32 %v4377, %v78
  %v4442 = vadd.f32 %v4378, %v79
  %v4443 = vadd.f32 %v4379, %v80
  %v4444 = vadd.f32 %v4380, %v81
  %v4445 = vadd.f32 %v4381, %v82
  %v4446 = vadd.f32 %v4382, %v83
  %v4447 = vadd.f32 %v4383, %v84
  %v4448 = vadd.f32 %v4384, %v85
  %v4449 = vadd.f32 %v4385, %v86
  %v4450 = vadd.f32 %v4386, %v87
  %v4451 = vsel %vm590, %v4387, 0.0
  %4452 = vadd.xlane.f32.xlu0 %v4451
  %v4453 = vpop.xlane.xlu0 %4452
  %v4454 = vsel %vm590, %v4388, 0.0
  %4455 = vadd.xlane.f32.xlu0 %v4454
  %v4456 = vpop.xlane.xlu0 %4455
  %v4457 = vsel %vm590, %v4389, 0.0
  %4458 = vadd.xlane.f32.xlu0 %v4457
  %v4459 = vpop.xlane.xlu0 %4458
  %v4460 = vsel %vm590, %v4390, 0.0
  %4461 = vadd.xlane.f32.xlu0 %v4460
  %v4462 = vpop.xlane.xlu0 %4461
  %v4463 = vsel %vm590, %v4391, 0.0
  %4464 = vadd.xlane.f32.xlu0 %v4463
  %v4465 = vpop.xlane.xlu0 %4464
  %v4466 = vsel %vm590, %v4392, 0.0
  %4467 = vadd.xlane.f32.xlu0 %v4466
  %v4468 = vpop.xlane.xlu0 %4467
  %v4469 = vsel %vm590, %v4393, 0.0
  %4470 = vadd.xlane.f32.xlu0 %v4469
  %v4471 = vpop.xlane.xlu0 %4470
  %v4472 = vsel %vm590, %v4394, 0.0
  %4473 = vadd.xlane.f32.xlu0 %v4472
  %v4474 = vpop.xlane.xlu0 %4473
  %v4475 = vsel %vm590, %v4395, 0.0
  %4476 = vadd.xlane.f32.xlu0 %v4475
  %v4477 = vpop.xlane.xlu0 %4476
  %v4478 = vsel %vm590, %v4396, 0.0
  %4479 = vadd.xlane.f32.xlu0 %v4478
  %v4480 = vpop.xlane.xlu0 %4479
  %v4481 = vsel %vm590, %v4397, 0.0
  %4482 = vadd.xlane.f32.xlu0 %v4481
  %v4483 = vpop.xlane.xlu0 %4482
  %v4484 = vsel %vm590, %v4398, 0.0
  %4485 = vadd.xlane.f32.xlu0 %v4484
  %v4486 = vpop.xlane.xlu0 %4485
  %v4487 = vsel %vm590, %v4399, 0.0
  %4488 = vadd.xlane.f32.xlu0 %v4487
  %v4489 = vpop.xlane.xlu0 %4488
  %v4490 = vsel %vm590, %v4400, 0.0
  %4491 = vadd.xlane.f32.xlu0 %v4490
  %v4492 = vpop.xlane.xlu0 %4491
  %v4493 = vsel %vm590, %v4401, 0.0
  %4494 = vadd.xlane.f32.xlu0 %v4493
  %v4495 = vpop.xlane.xlu0 %4494
  %v4496 = vsel %vm590, %v4402, 0.0
  %4497 = vadd.xlane.f32.xlu0 %v4496
  %v4498 = vpop.xlane.xlu0 %4497
  %v4499 = vsel %vm590, %v4403, 0.0
  %4500 = vadd.xlane.f32.xlu0 %v4499
  %v4501 = vpop.xlane.xlu0 %4500
  %v4502 = vsel %vm590, %v4404, 0.0
  %4503 = vadd.xlane.f32.xlu0 %v4502
  %v4504 = vpop.xlane.xlu0 %4503
  %v4505 = vsel %vm590, %v4405, 0.0
  %4506 = vadd.xlane.f32.xlu0 %v4505
  %v4507 = vpop.xlane.xlu0 %4506
  %v4508 = vsel %vm590, %v4406, 0.0
  %4509 = vadd.xlane.f32.xlu0 %v4508
  %v4510 = vpop.xlane.xlu0 %4509
  %v4511 = vsel %vm590, %v4407, 0.0
  %4512 = vadd.xlane.f32.xlu0 %v4511
  %v4513 = vpop.xlane.xlu0 %4512
  %v4514 = vsel %vm590, %v4408, 0.0
  %4515 = vadd.xlane.f32.xlu0 %v4514
  %v4516 = vpop.xlane.xlu0 %4515
  %v4517 = vsel %vm590, %v4409, 0.0
  %4518 = vadd.xlane.f32.xlu0 %v4517
  %v4519 = vpop.xlane.xlu0 %4518
  %v4520 = vsel %vm590, %v4410, 0.0
  %4521 = vadd.xlane.f32.xlu0 %v4520
  %v4522 = vpop.xlane.xlu0 %4521
  %v4523 = vsel %vm590, %v4411, 0.0
  %4524 = vadd.xlane.f32.xlu0 %v4523
  %v4525 = vpop.xlane.xlu0 %4524
  %v4526 = vsel %vm590, %v4412, 0.0
  %4527 = vadd.xlane.f32.xlu0 %v4526
  %v4528 = vpop.xlane.xlu0 %4527
  %v4529 = vsel %vm590, %v4413, 0.0
  %4530 = vadd.xlane.f32.xlu0 %v4529
  %v4531 = vpop.xlane.xlu0 %4530
  %v4532 = vsel %vm590, %v4414, 0.0
  %4533 = vadd.xlane.f32.xlu0 %v4532
  %v4534 = vpop.xlane.xlu0 %4533
  %v4535 = vsel %vm590, %v4415, 0.0
  %4536 = vadd.xlane.f32.xlu0 %v4535
  %v4537 = vpop.xlane.xlu0 %4536
  %v4538 = vsel %vm590, %v4416, 0.0
  %4539 = vadd.xlane.f32.xlu0 %v4538
  %v4540 = vpop.xlane.xlu0 %4539
  %v4541 = vsel %vm590, %v4417, 0.0
  %4542 = vadd.xlane.f32.xlu0 %v4541
  %v4543 = vpop.xlane.xlu0 %4542
  %v4544 = vsel %vm590, %v4418, 0.0
  %4545 = vadd.xlane.f32.xlu0 %v4544
  %v4546 = vpop.xlane.xlu0 %4545
  %v4547 = vsel %vm590, %v4419, 0.0
  %4548 = vadd.xlane.f32.xlu0 %v4547
  %v4549 = vpop.xlane.xlu0 %4548
  %v4550 = vsel %vm590, %v4420, 0.0
  %4551 = vadd.xlane.f32.xlu0 %v4550
  %v4552 = vpop.xlane.xlu0 %4551
  %v4553 = vsel %vm590, %v4421, 0.0
  %4554 = vadd.xlane.f32.xlu0 %v4553
  %v4555 = vpop.xlane.xlu0 %4554
  %v4556 = vsel %vm590, %v4422, 0.0
  %4557 = vadd.xlane.f32.xlu0 %v4556
  %v4558 = vpop.xlane.xlu0 %4557
  %v4559 = vsel %vm590, %v4423, 0.0
  %4560 = vadd.xlane.f32.xlu0 %v4559
  %v4561 = vpop.xlane.xlu0 %4560
  %v4562 = vsel %vm590, %v4424, 0.0
  %4563 = vadd.xlane.f32.xlu0 %v4562
  %v4564 = vpop.xlane.xlu0 %4563
  %v4565 = vsel %vm590, %v4425, 0.0
  %4566 = vadd.xlane.f32.xlu0 %v4565
  %v4567 = vpop.xlane.xlu0 %4566
  %v4568 = vsel %vm590, %v4426, 0.0
  %4569 = vadd.xlane.f32.xlu0 %v4568
  %v4570 = vpop.xlane.xlu0 %4569
  %v4571 = vsel %vm590, %v4427, 0.0
  %4572 = vadd.xlane.f32.xlu0 %v4571
  %v4573 = vpop.xlane.xlu0 %4572
  %v4574 = vsel %vm590, %v4428, 0.0
  %4575 = vadd.xlane.f32.xlu0 %v4574
  %v4576 = vpop.xlane.xlu0 %4575
  %v4577 = vsel %vm590, %v4429, 0.0
  %4578 = vadd.xlane.f32.xlu0 %v4577
  %v4579 = vpop.xlane.xlu0 %4578
  %v4580 = vsel %vm590, %v4430, 0.0
  %4581 = vadd.xlane.f32.xlu0 %v4580
  %v4582 = vpop.xlane.xlu0 %4581
  %v4583 = vsel %vm590, %v4431, 0.0
  %4584 = vadd.xlane.f32.xlu0 %v4583
  %v4585 = vpop.xlane.xlu0 %4584
  %v4586 = vsel %vm590, %v4432, 0.0
  %4587 = vadd.xlane.f32.xlu0 %v4586
  %v4588 = vpop.xlane.xlu0 %4587
  %v4589 = vsel %vm590, %v4433, 0.0
  %4590 = vadd.xlane.f32.xlu0 %v4589
  %v4591 = vpop.xlane.xlu0 %4590
  %v4592 = vsel %vm590, %v4434, 0.0
  %4593 = vadd.xlane.f32.xlu0 %v4592
  %v4594 = vpop.xlane.xlu0 %4593
  %v4595 = vsel %vm590, %v4435, 0.0
  %4596 = vadd.xlane.f32.xlu0 %v4595
  %v4597 = vpop.xlane.xlu0 %4596
  %v4598 = vsel %vm590, %v4436, 0.0
  %4599 = vadd.xlane.f32.xlu0 %v4598
  %v4600 = vpop.xlane.xlu0 %4599
  %v4601 = vsel %vm590, %v4437, 0.0
  %4602 = vadd.xlane.f32.xlu0 %v4601
  %v4603 = vpop.xlane.xlu0 %4602
  %v4604 = vsel %vm590, %v4438, 0.0
  %4605 = vadd.xlane.f32.xlu0 %v4604
  %v4606 = vpop.xlane.xlu0 %4605
  %v4607 = vsel %vm590, %v4439, 0.0
  %4608 = vadd.xlane.f32.xlu0 %v4607
  %v4609 = vpop.xlane.xlu0 %4608
  %v4610 = vsel %vm590, %v4440, 0.0
  %4611 = vadd.xlane.f32.xlu0 %v4610
  %v4612 = vpop.xlane.xlu0 %4611
  %v4613 = vsel %vm590, %v4441, 0.0
  %4614 = vadd.xlane.f32.xlu0 %v4613
  %v4615 = vpop.xlane.xlu0 %4614
  %v4616 = vsel %vm590, %v4442, 0.0
  %4617 = vadd.xlane.f32.xlu0 %v4616
  %v4618 = vpop.xlane.xlu0 %4617
  %v4619 = vsel %vm590, %v4443, 0.0
  %4620 = vadd.xlane.f32.xlu0 %v4619
  %v4621 = vpop.xlane.xlu0 %4620
  %v4622 = vsel %vm590, %v4444, 0.0
  %4623 = vadd.xlane.f32.xlu0 %v4622
  %v4624 = vpop.xlane.xlu0 %4623
  %v4625 = vsel %vm590, %v4445, 0.0
  %4626 = vadd.xlane.f32.xlu0 %v4625
  %v4627 = vpop.xlane.xlu0 %4626
  %v4628 = vsel %vm590, %v4446, 0.0
  %4629 = vadd.xlane.f32.xlu0 %v4628
  %v4630 = vpop.xlane.xlu0 %4629
  %v4631 = vsel %vm590, %v4447, 0.0
  %4632 = vadd.xlane.f32.xlu0 %v4631
  %v4633 = vpop.xlane.xlu0 %4632
  %v4634 = vsel %vm590, %v4448, 0.0
  %4635 = vadd.xlane.f32.xlu0 %v4634
  %v4636 = vpop.xlane.xlu0 %4635
  %v4637 = vsel %vm590, %v4449, 0.0
  %4638 = vadd.xlane.f32.xlu0 %v4637
  %v4639 = vpop.xlane.xlu0 %4638
  %v4640 = vsel %vm590, %v4450, 0.0
  %4641 = vadd.xlane.f32.xlu0 %v4640
  %v4642 = vpop.xlane.xlu0 %4641
  %v4643 = vmul.f32 %v4453, %v2429
  %v4644 = vmul.f32 %v4456, %v2429
  %v4645 = vmul.f32 %v4459, %v2429
  %v4646 = vmul.f32 %v4462, %v2429
  %v4647 = vmul.f32 %v4465, %v2429
  %v4648 = vmul.f32 %v4468, %v2429
  %v4649 = vmul.f32 %v4471, %v2429
  %v4650 = vmul.f32 %v4474, %v2429
  %v4651 = vmul.f32 %v4477, %v2429
  %v4652 = vmul.f32 %v4480, %v2429
  %v4653 = vmul.f32 %v4483, %v2429
  %v4654 = vmul.f32 %v4486, %v2429
  %v4655 = vmul.f32 %v4489, %v2429
  %v4656 = vmul.f32 %v4492, %v2429
  %v4657 = vmul.f32 %v4495, %v2429
  %v4658 = vmul.f32 %v4498, %v2429
  %v4659 = vmul.f32 %v4501, %v2429
  %v4660 = vmul.f32 %v4504, %v2429
  %v4661 = vmul.f32 %v4507, %v2429
  %v4662 = vmul.f32 %v4510, %v2429
  %v4663 = vmul.f32 %v4513, %v2429
  %v4664 = vmul.f32 %v4516, %v2429
  %v4665 = vmul.f32 %v4519, %v2429
  %v4666 = vmul.f32 %v4522, %v2429
  %v4667 = vmul.f32 %v4525, %v2429
  %v4668 = vmul.f32 %v4528, %v2429
  %v4669 = vmul.f32 %v4531, %v2429
  %v4670 = vmul.f32 %v4534, %v2429
  %v4671 = vmul.f32 %v4537, %v2429
  %v4672 = vmul.f32 %v4540, %v2429
  %v4673 = vmul.f32 %v4543, %v2429
  %v4674 = vmul.f32 %v4546, %v2429
  %v4675 = vmul.f32 %v4549, %v2429
  %v4676 = vmul.f32 %v4552, %v2429
  %v4677 = vmul.f32 %v4555, %v2429
  %v4678 = vmul.f32 %v4558, %v2429
  %v4679 = vmul.f32 %v4561, %v2429
  %v4680 = vmul.f32 %v4564, %v2429
  %v4681 = vmul.f32 %v4567, %v2429
  %v4682 = vmul.f32 %v4570, %v2429
  %v4683 = vmul.f32 %v4573, %v2429
  %v4684 = vmul.f32 %v4576, %v2429
  %v4685 = vmul.f32 %v4579, %v2429
  %v4686 = vmul.f32 %v4582, %v2429
  %v4687 = vmul.f32 %v4585, %v2429
  %v4688 = vmul.f32 %v4588, %v2429
  %v4689 = vmul.f32 %v4591, %v2429
  %v4690 = vmul.f32 %v4594, %v2429
  %v4691 = vmul.f32 %v4597, %v2429
  %v4692 = vmul.f32 %v4600, %v2429
  %v4693 = vmul.f32 %v4603, %v2429
  %v4694 = vmul.f32 %v4606, %v2429
  %v4695 = vmul.f32 %v4609, %v2429
  %v4696 = vmul.f32 %v4612, %v2429
  %v4697 = vmul.f32 %v4615, %v2429
  %v4698 = vmul.f32 %v4618, %v2429
  %v4699 = vmul.f32 %v4621, %v2429
  %v4700 = vmul.f32 %v4624, %v2429
  %v4701 = vmul.f32 %v4627, %v2429
  %v4702 = vmul.f32 %v4630, %v2429
  %v4703 = vmul.f32 %v4633, %v2429
  %v4704 = vmul.f32 %v4636, %v2429
  %v4705 = vmul.f32 %v4639, %v2429
  %v4706 = vmul.f32 %v4642, %v2429
  %v4707 = vsub.f32 %v4387, %v4643
  %v4708 = vsub.f32 %v4388, %v4644
  %v4709 = vsub.f32 %v4389, %v4645
  %v4710 = vsub.f32 %v4390, %v4646
  %v4711 = vsub.f32 %v4391, %v4647
  %v4712 = vsub.f32 %v4392, %v4648
  %v4713 = vsub.f32 %v4393, %v4649
  %v4714 = vsub.f32 %v4394, %v4650
  %v4715 = vsub.f32 %v4395, %v4651
  %v4716 = vsub.f32 %v4396, %v4652
  %v4717 = vsub.f32 %v4397, %v4653
  %v4718 = vsub.f32 %v4398, %v4654
  %v4719 = vsub.f32 %v4399, %v4655
  %v4720 = vsub.f32 %v4400, %v4656
  %v4721 = vsub.f32 %v4401, %v4657
  %v4722 = vsub.f32 %v4402, %v4658
  %v4723 = vsub.f32 %v4403, %v4659
  %v4724 = vsub.f32 %v4404, %v4660
  %v4725 = vsub.f32 %v4405, %v4661
  %v4726 = vsub.f32 %v4406, %v4662
  %v4727 = vsub.f32 %v4407, %v4663
  %v4728 = vsub.f32 %v4408, %v4664
  %v4729 = vsub.f32 %v4409, %v4665
  %v4730 = vsub.f32 %v4410, %v4666
  %v4731 = vsub.f32 %v4411, %v4667
  %v4732 = vsub.f32 %v4412, %v4668
  %v4733 = vsub.f32 %v4413, %v4669
  %v4734 = vsub.f32 %v4414, %v4670
  %v4735 = vsub.f32 %v4415, %v4671
  %v4736 = vsub.f32 %v4416, %v4672
  %v4737 = vsub.f32 %v4417, %v4673
  %v4738 = vsub.f32 %v4418, %v4674
  %v4739 = vsub.f32 %v4419, %v4675
  %v4740 = vsub.f32 %v4420, %v4676
  %v4741 = vsub.f32 %v4421, %v4677
  %v4742 = vsub.f32 %v4422, %v4678
  %v4743 = vsub.f32 %v4423, %v4679
  %v4744 = vsub.f32 %v4424, %v4680
  %v4745 = vsub.f32 %v4425, %v4681
  %v4746 = vsub.f32 %v4426, %v4682
  %v4747 = vsub.f32 %v4427, %v4683
  %v4748 = vsub.f32 %v4428, %v4684
  %v4749 = vsub.f32 %v4429, %v4685
  %v4750 = vsub.f32 %v4430, %v4686
  %v4751 = vsub.f32 %v4431, %v4687
  %v4752 = vsub.f32 %v4432, %v4688
  %v4753 = vsub.f32 %v4433, %v4689
  %v4754 = vsub.f32 %v4434, %v4690
  %v4755 = vsub.f32 %v4435, %v4691
  %v4756 = vsub.f32 %v4436, %v4692
  %v4757 = vsub.f32 %v4437, %v4693
  %v4758 = vsub.f32 %v4438, %v4694
  %v4759 = vsub.f32 %v4439, %v4695
  %v4760 = vsub.f32 %v4440, %v4696
  %v4761 = vsub.f32 %v4441, %v4697
  %v4762 = vsub.f32 %v4442, %v4698
  %v4763 = vsub.f32 %v4443, %v4699
  %v4764 = vsub.f32 %v4444, %v4700
  %v4765 = vsub.f32 %v4445, %v4701
  %v4766 = vsub.f32 %v4446, %v4702
  %v4767 = vsub.f32 %v4447, %v4703
  %v4768 = vsub.f32 %v4448, %v4704
  %v4769 = vsub.f32 %v4449, %v4705
  %v4770 = vsub.f32 %v4450, %v4706
  %v4771 = vmul.f32 %v4707, %v4707
  %v4772 = vmul.f32 %v4708, %v4708
  %v4773 = vmul.f32 %v4709, %v4709
  %v4774 = vmul.f32 %v4710, %v4710
  %v4775 = vmul.f32 %v4711, %v4711
  %v4776 = vmul.f32 %v4712, %v4712
  %v4777 = vmul.f32 %v4713, %v4713
  %v4778 = vmul.f32 %v4714, %v4714
  %v4779 = vmul.f32 %v4715, %v4715
  %v4780 = vmul.f32 %v4716, %v4716
  %v4781 = vmul.f32 %v4717, %v4717
  %v4782 = vmul.f32 %v4718, %v4718
  %v4783 = vmul.f32 %v4719, %v4719
  %v4784 = vmul.f32 %v4720, %v4720
  %v4785 = vmul.f32 %v4721, %v4721
  %v4786 = vmul.f32 %v4722, %v4722
  %v4787 = vmul.f32 %v4723, %v4723
  %v4788 = vmul.f32 %v4724, %v4724
  %v4789 = vmul.f32 %v4725, %v4725
  %v4790 = vmul.f32 %v4726, %v4726
  %v4791 = vmul.f32 %v4727, %v4727
  %v4792 = vmul.f32 %v4728, %v4728
  %v4793 = vmul.f32 %v4729, %v4729
  %v4794 = vmul.f32 %v4730, %v4730
  %v4795 = vmul.f32 %v4731, %v4731
  %v4796 = vmul.f32 %v4732, %v4732
  %v4797 = vmul.f32 %v4733, %v4733
  %v4798 = vmul.f32 %v4734, %v4734
  %v4799 = vmul.f32 %v4735, %v4735
  %v4800 = vmul.f32 %v4736, %v4736
  %v4801 = vmul.f32 %v4737, %v4737
  %v4802 = vmul.f32 %v4738, %v4738
  %v4803 = vmul.f32 %v4739, %v4739
  %v4804 = vmul.f32 %v4740, %v4740
  %v4805 = vmul.f32 %v4741, %v4741
  %v4806 = vmul.f32 %v4742, %v4742
  %v4807 = vmul.f32 %v4743, %v4743
  %v4808 = vmul.f32 %v4744, %v4744
  %v4809 = vmul.f32 %v4745, %v4745
  %v4810 = vmul.f32 %v4746, %v4746
  %v4811 = vmul.f32 %v4747, %v4747
  %v4812 = vmul.f32 %v4748, %v4748
  %v4813 = vmul.f32 %v4749, %v4749
  %v4814 = vmul.f32 %v4750, %v4750
  %v4815 = vmul.f32 %v4751, %v4751
  %v4816 = vmul.f32 %v4752, %v4752
  %v4817 = vmul.f32 %v4753, %v4753
  %v4818 = vmul.f32 %v4754, %v4754
  %v4819 = vmul.f32 %v4755, %v4755
  %v4820 = vmul.f32 %v4756, %v4756
  %v4821 = vmul.f32 %v4757, %v4757
  %v4822 = vmul.f32 %v4758, %v4758
  %v4823 = vmul.f32 %v4759, %v4759
  %v4824 = vmul.f32 %v4760, %v4760
  %v4825 = vmul.f32 %v4761, %v4761
  %v4826 = vmul.f32 %v4762, %v4762
  %v4827 = vmul.f32 %v4763, %v4763
  %v4828 = vmul.f32 %v4764, %v4764
  %v4829 = vmul.f32 %v4765, %v4765
  %v4830 = vmul.f32 %v4766, %v4766
  %v4831 = vmul.f32 %v4767, %v4767
  %v4832 = vmul.f32 %v4768, %v4768
  %v4833 = vmul.f32 %v4769, %v4769
  %v4834 = vmul.f32 %v4770, %v4770
  %v4835 = vsel %vm590, %v4771, 0.0
  %4836 = vadd.xlane.f32.xlu0 %v4835
  %v4837 = vpop.xlane.xlu0 %4836
  %v4838 = vsel %vm590, %v4772, 0.0
  %4839 = vadd.xlane.f32.xlu0 %v4838
  %v4840 = vpop.xlane.xlu0 %4839
  %v4841 = vsel %vm590, %v4773, 0.0
  %4842 = vadd.xlane.f32.xlu0 %v4841
  %v4843 = vpop.xlane.xlu0 %4842
  %v4844 = vsel %vm590, %v4774, 0.0
  %4845 = vadd.xlane.f32.xlu0 %v4844
  %v4846 = vpop.xlane.xlu0 %4845
  %v4847 = vsel %vm590, %v4775, 0.0
  %4848 = vadd.xlane.f32.xlu0 %v4847
  %v4849 = vpop.xlane.xlu0 %4848
  %v4850 = vsel %vm590, %v4776, 0.0
  %4851 = vadd.xlane.f32.xlu0 %v4850
  %v4852 = vpop.xlane.xlu0 %4851
  %v4853 = vsel %vm590, %v4777, 0.0
  %4854 = vadd.xlane.f32.xlu0 %v4853
  %v4855 = vpop.xlane.xlu0 %4854
  %v4856 = vsel %vm590, %v4778, 0.0
  %4857 = vadd.xlane.f32.xlu0 %v4856
  %v4858 = vpop.xlane.xlu0 %4857
  %v4859 = vsel %vm590, %v4779, 0.0
  %4860 = vadd.xlane.f32.xlu0 %v4859
  %v4861 = vpop.xlane.xlu0 %4860
  %v4862 = vsel %vm590, %v4780, 0.0
  %4863 = vadd.xlane.f32.xlu0 %v4862
  %v4864 = vpop.xlane.xlu0 %4863
  %v4865 = vsel %vm590, %v4781, 0.0
  %4866 = vadd.xlane.f32.xlu0 %v4865
  %v4867 = vpop.xlane.xlu0 %4866
  %v4868 = vsel %vm590, %v4782, 0.0
  %4869 = vadd.xlane.f32.xlu0 %v4868
  %v4870 = vpop.xlane.xlu0 %4869
  %v4871 = vsel %vm590, %v4783, 0.0
  %4872 = vadd.xlane.f32.xlu0 %v4871
  %v4873 = vpop.xlane.xlu0 %4872
  %v4874 = vsel %vm590, %v4784, 0.0
  %4875 = vadd.xlane.f32.xlu0 %v4874
  %v4876 = vpop.xlane.xlu0 %4875
  %v4877 = vsel %vm590, %v4785, 0.0
  %4878 = vadd.xlane.f32.xlu0 %v4877
  %v4879 = vpop.xlane.xlu0 %4878
  %v4880 = vsel %vm590, %v4786, 0.0
  %4881 = vadd.xlane.f32.xlu0 %v4880
  %v4882 = vpop.xlane.xlu0 %4881
  %v4883 = vsel %vm590, %v4787, 0.0
  %4884 = vadd.xlane.f32.xlu0 %v4883
  %v4885 = vpop.xlane.xlu0 %4884
  %v4886 = vsel %vm590, %v4788, 0.0
  %4887 = vadd.xlane.f32.xlu0 %v4886
  %v4888 = vpop.xlane.xlu0 %4887
  %v4889 = vsel %vm590, %v4789, 0.0
  %4890 = vadd.xlane.f32.xlu0 %v4889
  %v4891 = vpop.xlane.xlu0 %4890
  %v4892 = vsel %vm590, %v4790, 0.0
  %4893 = vadd.xlane.f32.xlu0 %v4892
  %v4894 = vpop.xlane.xlu0 %4893
  %v4895 = vsel %vm590, %v4791, 0.0
  %4896 = vadd.xlane.f32.xlu0 %v4895
  %v4897 = vpop.xlane.xlu0 %4896
  %v4898 = vsel %vm590, %v4792, 0.0
  %4899 = vadd.xlane.f32.xlu0 %v4898
  %v4900 = vpop.xlane.xlu0 %4899
  %v4901 = vsel %vm590, %v4793, 0.0
  %4902 = vadd.xlane.f32.xlu0 %v4901
  %v4903 = vpop.xlane.xlu0 %4902
  %v4904 = vsel %vm590, %v4794, 0.0
  %4905 = vadd.xlane.f32.xlu0 %v4904
  %v4906 = vpop.xlane.xlu0 %4905
  %v4907 = vsel %vm590, %v4795, 0.0
  %4908 = vadd.xlane.f32.xlu0 %v4907
  %v4909 = vpop.xlane.xlu0 %4908
  %v4910 = vsel %vm590, %v4796, 0.0
  %4911 = vadd.xlane.f32.xlu0 %v4910
  %v4912 = vpop.xlane.xlu0 %4911
  %v4913 = vsel %vm590, %v4797, 0.0
  %4914 = vadd.xlane.f32.xlu0 %v4913
  %v4915 = vpop.xlane.xlu0 %4914
  %v4916 = vsel %vm590, %v4798, 0.0
  %4917 = vadd.xlane.f32.xlu0 %v4916
  %v4918 = vpop.xlane.xlu0 %4917
  %v4919 = vsel %vm590, %v4799, 0.0
  %4920 = vadd.xlane.f32.xlu0 %v4919
  %v4921 = vpop.xlane.xlu0 %4920
  %v4922 = vsel %vm590, %v4800, 0.0
  %4923 = vadd.xlane.f32.xlu0 %v4922
  %v4924 = vpop.xlane.xlu0 %4923
  %v4925 = vsel %vm590, %v4801, 0.0
  %4926 = vadd.xlane.f32.xlu0 %v4925
  %v4927 = vpop.xlane.xlu0 %4926
  %v4928 = vsel %vm590, %v4802, 0.0
  %4929 = vadd.xlane.f32.xlu0 %v4928
  %v4930 = vpop.xlane.xlu0 %4929
  %v4931 = vsel %vm590, %v4803, 0.0
  %4932 = vadd.xlane.f32.xlu0 %v4931
  %v4933 = vpop.xlane.xlu0 %4932
  %v4934 = vsel %vm590, %v4804, 0.0
  %4935 = vadd.xlane.f32.xlu0 %v4934
  %v4936 = vpop.xlane.xlu0 %4935
  %v4937 = vsel %vm590, %v4805, 0.0
  %4938 = vadd.xlane.f32.xlu0 %v4937
  %v4939 = vpop.xlane.xlu0 %4938
  %v4940 = vsel %vm590, %v4806, 0.0
  %4941 = vadd.xlane.f32.xlu0 %v4940
  %v4942 = vpop.xlane.xlu0 %4941
  %v4943 = vsel %vm590, %v4807, 0.0
  %4944 = vadd.xlane.f32.xlu0 %v4943
  %v4945 = vpop.xlane.xlu0 %4944
  %v4946 = vsel %vm590, %v4808, 0.0
  %4947 = vadd.xlane.f32.xlu0 %v4946
  %v4948 = vpop.xlane.xlu0 %4947
  %v4949 = vsel %vm590, %v4809, 0.0
  %4950 = vadd.xlane.f32.xlu0 %v4949
  %v4951 = vpop.xlane.xlu0 %4950
  %v4952 = vsel %vm590, %v4810, 0.0
  %4953 = vadd.xlane.f32.xlu0 %v4952
  %v4954 = vpop.xlane.xlu0 %4953
  %v4955 = vsel %vm590, %v4811, 0.0
  %4956 = vadd.xlane.f32.xlu0 %v4955
  %v4957 = vpop.xlane.xlu0 %4956
  %v4958 = vsel %vm590, %v4812, 0.0
  %4959 = vadd.xlane.f32.xlu0 %v4958
  %v4960 = vpop.xlane.xlu0 %4959
  %v4961 = vsel %vm590, %v4813, 0.0
  %4962 = vadd.xlane.f32.xlu0 %v4961
  %v4963 = vpop.xlane.xlu0 %4962
  %v4964 = vsel %vm590, %v4814, 0.0
  %4965 = vadd.xlane.f32.xlu0 %v4964
  %v4966 = vpop.xlane.xlu0 %4965
  %v4967 = vsel %vm590, %v4815, 0.0
  %4968 = vadd.xlane.f32.xlu0 %v4967
  %v4969 = vpop.xlane.xlu0 %4968
  %v4970 = vsel %vm590, %v4816, 0.0
  %4971 = vadd.xlane.f32.xlu0 %v4970
  %v4972 = vpop.xlane.xlu0 %4971
  %v4973 = vsel %vm590, %v4817, 0.0
  %4974 = vadd.xlane.f32.xlu0 %v4973
  %v4975 = vpop.xlane.xlu0 %4974
  %v4976 = vsel %vm590, %v4818, 0.0
  %4977 = vadd.xlane.f32.xlu0 %v4976
  %v4978 = vpop.xlane.xlu0 %4977
  %v4979 = vsel %vm590, %v4819, 0.0
  %4980 = vadd.xlane.f32.xlu0 %v4979
  %v4981 = vpop.xlane.xlu0 %4980
  %v4982 = vsel %vm590, %v4820, 0.0
  %4983 = vadd.xlane.f32.xlu0 %v4982
  %v4984 = vpop.xlane.xlu0 %4983
  %v4985 = vsel %vm590, %v4821, 0.0
  %4986 = vadd.xlane.f32.xlu0 %v4985
  %v4987 = vpop.xlane.xlu0 %4986
  %v4988 = vsel %vm590, %v4822, 0.0
  %4989 = vadd.xlane.f32.xlu0 %v4988
  %v4990 = vpop.xlane.xlu0 %4989
  %v4991 = vsel %vm590, %v4823, 0.0
  %4992 = vadd.xlane.f32.xlu0 %v4991
  %v4993 = vpop.xlane.xlu0 %4992
  %v4994 = vsel %vm590, %v4824, 0.0
  %4995 = vadd.xlane.f32.xlu0 %v4994
  %v4996 = vpop.xlane.xlu0 %4995
  %v4997 = vsel %vm590, %v4825, 0.0
  %4998 = vadd.xlane.f32.xlu0 %v4997
  %v4999 = vpop.xlane.xlu0 %4998
  %v5000 = vsel %vm590, %v4826, 0.0
  %5001 = vadd.xlane.f32.xlu0 %v5000
  %v5002 = vpop.xlane.xlu0 %5001
  %v5003 = vsel %vm590, %v4827, 0.0
  %5004 = vadd.xlane.f32.xlu0 %v5003
  %v5005 = vpop.xlane.xlu0 %5004
  %v5006 = vsel %vm590, %v4828, 0.0
  %5007 = vadd.xlane.f32.xlu0 %v5006
  %v5008 = vpop.xlane.xlu0 %5007
  %v5009 = vsel %vm590, %v4829, 0.0
  %5010 = vadd.xlane.f32.xlu0 %v5009
  %v5011 = vpop.xlane.xlu0 %5010
  %v5012 = vsel %vm590, %v4830, 0.0
  %5013 = vadd.xlane.f32.xlu0 %v5012
  %v5014 = vpop.xlane.xlu0 %5013
  %v5015 = vsel %vm590, %v4831, 0.0
  %5016 = vadd.xlane.f32.xlu0 %v5015
  %v5017 = vpop.xlane.xlu0 %5016
  %v5018 = vsel %vm590, %v4832, 0.0
  %5019 = vadd.xlane.f32.xlu0 %v5018
  %v5020 = vpop.xlane.xlu0 %5019
  %v5021 = vsel %vm590, %v4833, 0.0
  %5022 = vadd.xlane.f32.xlu0 %v5021
  %v5023 = vpop.xlane.xlu0 %5022
  %v5024 = vsel %vm590, %v4834, 0.0
  %5025 = vadd.xlane.f32.xlu0 %v5024
  %v5026 = vpop.xlane.xlu0 %5025
  %v5027 = vmul.f32 %v4837, %v2429
  %v5028 = vmul.f32 %v4840, %v2429
  %v5029 = vmul.f32 %v4843, %v2429
  %v5030 = vmul.f32 %v4846, %v2429
  %v5031 = vmul.f32 %v4849, %v2429
  %v5032 = vmul.f32 %v4852, %v2429
  %v5033 = vmul.f32 %v4855, %v2429
  %v5034 = vmul.f32 %v4858, %v2429
  %v5035 = vmul.f32 %v4861, %v2429
  %v5036 = vmul.f32 %v4864, %v2429
  %v5037 = vmul.f32 %v4867, %v2429
  %v5038 = vmul.f32 %v4870, %v2429
  %v5039 = vmul.f32 %v4873, %v2429
  %v5040 = vmul.f32 %v4876, %v2429
  %v5041 = vmul.f32 %v4879, %v2429
  %v5042 = vmul.f32 %v4882, %v2429
  %v5043 = vmul.f32 %v4885, %v2429
  %v5044 = vmul.f32 %v4888, %v2429
  %v5045 = vmul.f32 %v4891, %v2429
  %v5046 = vmul.f32 %v4894, %v2429
  %v5047 = vmul.f32 %v4897, %v2429
  %v5048 = vmul.f32 %v4900, %v2429
  %v5049 = vmul.f32 %v4903, %v2429
  %v5050 = vmul.f32 %v4906, %v2429
  %v5051 = vmul.f32 %v4909, %v2429
  %v5052 = vmul.f32 %v4912, %v2429
  %v5053 = vmul.f32 %v4915, %v2429
  %v5054 = vmul.f32 %v4918, %v2429
  %v5055 = vmul.f32 %v4921, %v2429
  %v5056 = vmul.f32 %v4924, %v2429
  %v5057 = vmul.f32 %v4927, %v2429
  %v5058 = vmul.f32 %v4930, %v2429
  %v5059 = vmul.f32 %v4933, %v2429
  %v5060 = vmul.f32 %v4936, %v2429
  %v5061 = vmul.f32 %v4939, %v2429
  %v5062 = vmul.f32 %v4942, %v2429
  %v5063 = vmul.f32 %v4945, %v2429
  %v5064 = vmul.f32 %v4948, %v2429
  %v5065 = vmul.f32 %v4951, %v2429
  %v5066 = vmul.f32 %v4954, %v2429
  %v5067 = vmul.f32 %v4957, %v2429
  %v5068 = vmul.f32 %v4960, %v2429
  %v5069 = vmul.f32 %v4963, %v2429
  %v5070 = vmul.f32 %v4966, %v2429
  %v5071 = vmul.f32 %v4969, %v2429
  %v5072 = vmul.f32 %v4972, %v2429
  %v5073 = vmul.f32 %v4975, %v2429
  %v5074 = vmul.f32 %v4978, %v2429
  %v5075 = vmul.f32 %v4981, %v2429
  %v5076 = vmul.f32 %v4984, %v2429
  %v5077 = vmul.f32 %v4987, %v2429
  %v5078 = vmul.f32 %v4990, %v2429
  %v5079 = vmul.f32 %v4993, %v2429
  %v5080 = vmul.f32 %v4996, %v2429
  %v5081 = vmul.f32 %v4999, %v2429
  %v5082 = vmul.f32 %v5002, %v2429
  %v5083 = vmul.f32 %v5005, %v2429
  %v5084 = vmul.f32 %v5008, %v2429
  %v5085 = vmul.f32 %v5011, %v2429
  %v5086 = vmul.f32 %v5014, %v2429
  %v5087 = vmul.f32 %v5017, %v2429
  %v5088 = vmul.f32 %v5020, %v2429
  %v5089 = vmul.f32 %v5023, %v2429
  %v5090 = vmul.f32 %v5026, %v2429
  %v5091 = vadd.f32 %v5027, 1e-05
  %v5092 = vadd.f32 %v5028, 1e-05
  %v5093 = vadd.f32 %v5029, 1e-05
  %v5094 = vadd.f32 %v5030, 1e-05
  %v5095 = vadd.f32 %v5031, 1e-05
  %v5096 = vadd.f32 %v5032, 1e-05
  %v5097 = vadd.f32 %v5033, 1e-05
  %v5098 = vadd.f32 %v5034, 1e-05
  %v5099 = vadd.f32 %v5035, 1e-05
  %v5100 = vadd.f32 %v5036, 1e-05
  %v5101 = vadd.f32 %v5037, 1e-05
  %v5102 = vadd.f32 %v5038, 1e-05
  %v5103 = vadd.f32 %v5039, 1e-05
  %v5104 = vadd.f32 %v5040, 1e-05
  %v5105 = vadd.f32 %v5041, 1e-05
  %v5106 = vadd.f32 %v5042, 1e-05
  %v5107 = vadd.f32 %v5043, 1e-05
  %v5108 = vadd.f32 %v5044, 1e-05
  %v5109 = vadd.f32 %v5045, 1e-05
  %v5110 = vadd.f32 %v5046, 1e-05
  %v5111 = vadd.f32 %v5047, 1e-05
  %v5112 = vadd.f32 %v5048, 1e-05
  %v5113 = vadd.f32 %v5049, 1e-05
  %v5114 = vadd.f32 %v5050, 1e-05
  %v5115 = vadd.f32 %v5051, 1e-05
  %v5116 = vadd.f32 %v5052, 1e-05
  %v5117 = vadd.f32 %v5053, 1e-05
  %v5118 = vadd.f32 %v5054, 1e-05
  %v5119 = vadd.f32 %v5055, 1e-05
  %v5120 = vadd.f32 %v5056, 1e-05
  %v5121 = vadd.f32 %v5057, 1e-05
  %v5122 = vadd.f32 %v5058, 1e-05
  %v5123 = vadd.f32 %v5059, 1e-05
  %v5124 = vadd.f32 %v5060, 1e-05
  %v5125 = vadd.f32 %v5061, 1e-05
  %v5126 = vadd.f32 %v5062, 1e-05
  %v5127 = vadd.f32 %v5063, 1e-05
  %v5128 = vadd.f32 %v5064, 1e-05
  %v5129 = vadd.f32 %v5065, 1e-05
  %v5130 = vadd.f32 %v5066, 1e-05
  %v5131 = vadd.f32 %v5067, 1e-05
  %v5132 = vadd.f32 %v5068, 1e-05
  %v5133 = vadd.f32 %v5069, 1e-05
  %v5134 = vadd.f32 %v5070, 1e-05
  %v5135 = vadd.f32 %v5071, 1e-05
  %v5136 = vadd.f32 %v5072, 1e-05
  %v5137 = vadd.f32 %v5073, 1e-05
  %v5138 = vadd.f32 %v5074, 1e-05
  %v5139 = vadd.f32 %v5075, 1e-05
  %v5140 = vadd.f32 %v5076, 1e-05
  %v5141 = vadd.f32 %v5077, 1e-05
  %v5142 = vadd.f32 %v5078, 1e-05
  %v5143 = vadd.f32 %v5079, 1e-05
  %v5144 = vadd.f32 %v5080, 1e-05
  %v5145 = vadd.f32 %v5081, 1e-05
  %v5146 = vadd.f32 %v5082, 1e-05
  %v5147 = vadd.f32 %v5083, 1e-05
  %v5148 = vadd.f32 %v5084, 1e-05
  %v5149 = vadd.f32 %v5085, 1e-05
  %v5150 = vadd.f32 %v5086, 1e-05
  %v5151 = vadd.f32 %v5087, 1e-05
  %v5152 = vadd.f32 %v5088, 1e-05
  %v5153 = vadd.f32 %v5089, 1e-05
  %v5154 = vadd.f32 %v5090, 1e-05
  %v5155 = vrsqrt.pop %v5091
  %v5156 = vrsqrt.pop %v5092
  %v5157 = vrsqrt.pop %v5093
  %v5158 = vrsqrt.pop %v5094
  %v5159 = vrsqrt.pop %v5095
  %v5160 = vrsqrt.pop %v5096
  %v5161 = vrsqrt.pop %v5097
  %v5162 = vrsqrt.pop %v5098
  %v5163 = vrsqrt.pop %v5099
  %v5164 = vrsqrt.pop %v5100
  %v5165 = vrsqrt.pop %v5101
  %v5166 = vrsqrt.pop %v5102
  %v5167 = vrsqrt.pop %v5103
  %v5168 = vrsqrt.pop %v5104
  %v5169 = vrsqrt.pop %v5105
  %v5170 = vrsqrt.pop %v5106
  %v5171 = vrsqrt.pop %v5107
  %v5172 = vrsqrt.pop %v5108
  %v5173 = vrsqrt.pop %v5109
  %v5174 = vrsqrt.pop %v5110
  %v5175 = vrsqrt.pop %v5111
  %v5176 = vrsqrt.pop %v5112
  %v5177 = vrsqrt.pop %v5113
  %v5178 = vrsqrt.pop %v5114
  %v5179 = vrsqrt.pop %v5115
  %v5180 = vrsqrt.pop %v5116
  %v5181 = vrsqrt.pop %v5117
  %v5182 = vrsqrt.pop %v5118
  %v5183 = vrsqrt.pop %v5119
  %v5184 = vrsqrt.pop %v5120
  %v5185 = vrsqrt.pop %v5121
  %v5186 = vrsqrt.pop %v5122
  %v5187 = vrsqrt.pop %v5123
  %v5188 = vrsqrt.pop %v5124
  %v5189 = vrsqrt.pop %v5125
  %v5190 = vrsqrt.pop %v5126
  %v5191 = vrsqrt.pop %v5127
  %v5192 = vrsqrt.pop %v5128
  %v5193 = vrsqrt.pop %v5129
  %v5194 = vrsqrt.pop %v5130
  %v5195 = vrsqrt.pop %v5131
  %v5196 = vrsqrt.pop %v5132
  %v5197 = vrsqrt.pop %v5133
  %v5198 = vrsqrt.pop %v5134
  %v5199 = vrsqrt.pop %v5135
  %v5200 = vrsqrt.pop %v5136
  %v5201 = vrsqrt.pop %v5137
  %v5202 = vrsqrt.pop %v5138
  %v5203 = vrsqrt.pop %v5139
  %v5204 = vrsqrt.pop %v5140
  %v5205 = vrsqrt.pop %v5141
  %v5206 = vrsqrt.pop %v5142
  %v5207 = vrsqrt.pop %v5143
  %v5208 = vrsqrt.pop %v5144
  %v5209 = vrsqrt.pop %v5145
  %v5210 = vrsqrt.pop %v5146
  %v5211 = vrsqrt.pop %v5147
  %v5212 = vrsqrt.pop %v5148
  %v5213 = vrsqrt.pop %v5149
  %v5214 = vrsqrt.pop %v5150
  %v5215 = vrsqrt.pop %v5151
  %v5216 = vrsqrt.pop %v5152
  %v5217 = vrsqrt.pop %v5153
  %v5218 = vrsqrt.pop %v5154
  %v5219 = vmul.f32 %v4707, %v5155
  %v5220 = vmul.f32 %v4708, %v5156
  %v5221 = vmul.f32 %v4709, %v5157
  %v5222 = vmul.f32 %v4710, %v5158
  %v5223 = vmul.f32 %v4711, %v5159
  %v5224 = vmul.f32 %v4712, %v5160
  %v5225 = vmul.f32 %v4713, %v5161
  %v5226 = vmul.f32 %v4714, %v5162
  %v5227 = vmul.f32 %v4715, %v5163
  %v5228 = vmul.f32 %v4716, %v5164
  %v5229 = vmul.f32 %v4717, %v5165
  %v5230 = vmul.f32 %v4718, %v5166
  %v5231 = vmul.f32 %v4719, %v5167
  %v5232 = vmul.f32 %v4720, %v5168
  %v5233 = vmul.f32 %v4721, %v5169
  %v5234 = vmul.f32 %v4722, %v5170
  %v5235 = vmul.f32 %v4723, %v5171
  %v5236 = vmul.f32 %v4724, %v5172
  %v5237 = vmul.f32 %v4725, %v5173
  %v5238 = vmul.f32 %v4726, %v5174
  %v5239 = vmul.f32 %v4727, %v5175
  %v5240 = vmul.f32 %v4728, %v5176
  %v5241 = vmul.f32 %v4729, %v5177
  %v5242 = vmul.f32 %v4730, %v5178
  %v5243 = vmul.f32 %v4731, %v5179
  %v5244 = vmul.f32 %v4732, %v5180
  %v5245 = vmul.f32 %v4733, %v5181
  %v5246 = vmul.f32 %v4734, %v5182
  %v5247 = vmul.f32 %v4735, %v5183
  %v5248 = vmul.f32 %v4736, %v5184
  %v5249 = vmul.f32 %v4737, %v5185
  %v5250 = vmul.f32 %v4738, %v5186
  %v5251 = vmul.f32 %v4739, %v5187
  %v5252 = vmul.f32 %v4740, %v5188
  %v5253 = vmul.f32 %v4741, %v5189
  %v5254 = vmul.f32 %v4742, %v5190
  %v5255 = vmul.f32 %v4743, %v5191
  %v5256 = vmul.f32 %v4744, %v5192
  %v5257 = vmul.f32 %v4745, %v5193
  %v5258 = vmul.f32 %v4746, %v5194
  %v5259 = vmul.f32 %v4747, %v5195
  %v5260 = vmul.f32 %v4748, %v5196
  %v5261 = vmul.f32 %v4749, %v5197
  %v5262 = vmul.f32 %v4750, %v5198
  %v5263 = vmul.f32 %v4751, %v5199
  %v5264 = vmul.f32 %v4752, %v5200
  %v5265 = vmul.f32 %v4753, %v5201
  %v5266 = vmul.f32 %v4754, %v5202
  %v5267 = vmul.f32 %v4755, %v5203
  %v5268 = vmul.f32 %v4756, %v5204
  %v5269 = vmul.f32 %v4757, %v5205
  %v5270 = vmul.f32 %v4758, %v5206
  %v5271 = vmul.f32 %v4759, %v5207
  %v5272 = vmul.f32 %v4760, %v5208
  %v5273 = vmul.f32 %v4761, %v5209
  %v5274 = vmul.f32 %v4762, %v5210
  %v5275 = vmul.f32 %v4763, %v5211
  %v5276 = vmul.f32 %v4764, %v5212
  %v5277 = vmul.f32 %v4765, %v5213
  %v5278 = vmul.f32 %v4766, %v5214
  %v5279 = vmul.f32 %v4767, %v5215
  %v5280 = vmul.f32 %v4768, %v5216
  %v5281 = vmul.f32 %v4769, %v5217
  %v5282 = vmul.f32 %v4770, %v5218
  %v5283 = vlaneseq
  %v5284 = vshrl.u32 %v5283, 7
  %v5285 = vsub.s32 0, %v5284
  %v5286 = vrot.slane %v220, %v5285
  %v5287 = vmul.f32 %v5219, %v5286
  %v5288 = vmul.f32 %v5220, %v5286
  %v5289 = vmul.f32 %v5221, %v5286
  %v5290 = vmul.f32 %v5222, %v5286
  %v5291 = vmul.f32 %v5223, %v5286
  %v5292 = vmul.f32 %v5224, %v5286
  %v5293 = vmul.f32 %v5225, %v5286
  %v5294 = vmul.f32 %v5226, %v5286
  %v5295 = vmul.f32 %v5227, %v5286
  %v5296 = vmul.f32 %v5228, %v5286
  %v5297 = vmul.f32 %v5229, %v5286
  %v5298 = vmul.f32 %v5230, %v5286
  %v5299 = vmul.f32 %v5231, %v5286
  %v5300 = vmul.f32 %v5232, %v5286
  %v5301 = vmul.f32 %v5233, %v5286
  %v5302 = vmul.f32 %v5234, %v5286
  %v5303 = vmul.f32 %v5235, %v5286
  %v5304 = vmul.f32 %v5236, %v5286
  %v5305 = vmul.f32 %v5237, %v5286
  %v5306 = vmul.f32 %v5238, %v5286
  %v5307 = vmul.f32 %v5239, %v5286
  %v5308 = vmul.f32 %v5240, %v5286
  %v5309 = vmul.f32 %v5241, %v5286
  %v5310 = vmul.f32 %v5242, %v5286
  %v5311 = vmul.f32 %v5243, %v5286
  %v5312 = vmul.f32 %v5244, %v5286
  %v5313 = vmul.f32 %v5245, %v5286
  %v5314 = vmul.f32 %v5246, %v5286
  %v5315 = vmul.f32 %v5247, %v5286
  %v5316 = vmul.f32 %v5248, %v5286
  %v5317 = vmul.f32 %v5249, %v5286
  %v5318 = vmul.f32 %v5250, %v5286
  %v5319 = vmul.f32 %v5251, %v5286
  %v5320 = vmul.f32 %v5252, %v5286
  %v5321 = vmul.f32 %v5253, %v5286
  %v5322 = vmul.f32 %v5254, %v5286
  %v5323 = vmul.f32 %v5255, %v5286
  %v5324 = vmul.f32 %v5256, %v5286
  %v5325 = vmul.f32 %v5257, %v5286
  %v5326 = vmul.f32 %v5258, %v5286
  %v5327 = vmul.f32 %v5259, %v5286
  %v5328 = vmul.f32 %v5260, %v5286
  %v5329 = vmul.f32 %v5261, %v5286
  %v5330 = vmul.f32 %v5262, %v5286
  %v5331 = vmul.f32 %v5263, %v5286
  %v5332 = vmul.f32 %v5264, %v5286
  %v5333 = vmul.f32 %v5265, %v5286
  %v5334 = vmul.f32 %v5266, %v5286
  %v5335 = vmul.f32 %v5267, %v5286
  %v5336 = vmul.f32 %v5268, %v5286
  %v5337 = vmul.f32 %v5269, %v5286
  %v5338 = vmul.f32 %v5270, %v5286
  %v5339 = vmul.f32 %v5271, %v5286
  %v5340 = vmul.f32 %v5272, %v5286
  %v5341 = vmul.f32 %v5273, %v5286
  %v5342 = vmul.f32 %v5274, %v5286
  %v5343 = vmul.f32 %v5275, %v5286
  %v5344 = vmul.f32 %v5276, %v5286
  %v5345 = vmul.f32 %v5277, %v5286
  %v5346 = vmul.f32 %v5278, %v5286
  %v5347 = vmul.f32 %v5279, %v5286
  %v5348 = vmul.f32 %v5280, %v5286
  %v5349 = vmul.f32 %v5281, %v5286
  %v5350 = vmul.f32 %v5282, %v5286
  %v5351 = vlaneseq
  %v5352 = vshrl.u32 %v5351, 7
  %v5353 = vsub.s32 0, %v5352
  %v5354 = vrot.slane %v221, %v5353
  %v5355 = vadd.f32 %v5287, %v5354
  %v5356 = vadd.f32 %v5288, %v5354
  %v5357 = vadd.f32 %v5289, %v5354
  %v5358 = vadd.f32 %v5290, %v5354
  %v5359 = vadd.f32 %v5291, %v5354
  %v5360 = vadd.f32 %v5292, %v5354
  %v5361 = vadd.f32 %v5293, %v5354
  %v5362 = vadd.f32 %v5294, %v5354
  %v5363 = vadd.f32 %v5295, %v5354
  %v5364 = vadd.f32 %v5296, %v5354
  %v5365 = vadd.f32 %v5297, %v5354
  %v5366 = vadd.f32 %v5298, %v5354
  %v5367 = vadd.f32 %v5299, %v5354
  %v5368 = vadd.f32 %v5300, %v5354
  %v5369 = vadd.f32 %v5301, %v5354
  %v5370 = vadd.f32 %v5302, %v5354
  %v5371 = vadd.f32 %v5303, %v5354
  %v5372 = vadd.f32 %v5304, %v5354
  %v5373 = vadd.f32 %v5305, %v5354
  %v5374 = vadd.f32 %v5306, %v5354
  %v5375 = vadd.f32 %v5307, %v5354
  %v5376 = vadd.f32 %v5308, %v5354
  %v5377 = vadd.f32 %v5309, %v5354
  %v5378 = vadd.f32 %v5310, %v5354
  %v5379 = vadd.f32 %v5311, %v5354
  %v5380 = vadd.f32 %v5312, %v5354
  %v5381 = vadd.f32 %v5313, %v5354
  %v5382 = vadd.f32 %v5314, %v5354
  %v5383 = vadd.f32 %v5315, %v5354
  %v5384 = vadd.f32 %v5316, %v5354
  %v5385 = vadd.f32 %v5317, %v5354
  %v5386 = vadd.f32 %v5318, %v5354
  %v5387 = vadd.f32 %v5319, %v5354
  %v5388 = vadd.f32 %v5320, %v5354
  %v5389 = vadd.f32 %v5321, %v5354
  %v5390 = vadd.f32 %v5322, %v5354
  %v5391 = vadd.f32 %v5323, %v5354
  %v5392 = vadd.f32 %v5324, %v5354
  %v5393 = vadd.f32 %v5325, %v5354
  %v5394 = vadd.f32 %v5326, %v5354
  %v5395 = vadd.f32 %v5327, %v5354
  %v5396 = vadd.f32 %v5328, %v5354
  %v5397 = vadd.f32 %v5329, %v5354
  %v5398 = vadd.f32 %v5330, %v5354
  %v5399 = vadd.f32 %v5331, %v5354
  %v5400 = vadd.f32 %v5332, %v5354
  %v5401 = vadd.f32 %v5333, %v5354
  %v5402 = vadd.f32 %v5334, %v5354
  %v5403 = vadd.f32 %v5335, %v5354
  %v5404 = vadd.f32 %v5336, %v5354
  %v5405 = vadd.f32 %v5337, %v5354
  %v5406 = vadd.f32 %v5338, %v5354
  %v5407 = vadd.f32 %v5339, %v5354
  %v5408 = vadd.f32 %v5340, %v5354
  %v5409 = vadd.f32 %v5341, %v5354
  %v5410 = vadd.f32 %v5342, %v5354
  %v5411 = vadd.f32 %v5343, %v5354
  %v5412 = vadd.f32 %v5344, %v5354
  %v5413 = vadd.f32 %v5345, %v5354
  %v5414 = vadd.f32 %v5346, %v5354
  %v5415 = vadd.f32 %v5347, %v5354
  %v5416 = vadd.f32 %v5348, %v5354
  %v5417 = vadd.f32 %v5349, %v5354
  %v5418 = vadd.f32 %v5350, %v5354
  %vm5419 = vcmp.ge.f32.partialorder %v5355, 0.0
  %vm5420 = vcmp.ge.f32.partialorder %v5356, 0.0
  %vm5421 = vcmp.ge.f32.partialorder %v5357, 0.0
  %vm5422 = vcmp.ge.f32.partialorder %v5358, 0.0
  %vm5423 = vcmp.ge.f32.partialorder %v5359, 0.0
  %vm5424 = vcmp.ge.f32.partialorder %v5360, 0.0
  %vm5425 = vcmp.ge.f32.partialorder %v5361, 0.0
  %vm5426 = vcmp.ge.f32.partialorder %v5362, 0.0
  %vm5427 = vcmp.ge.f32.partialorder %v5363, 0.0
  %vm5428 = vcmp.ge.f32.partialorder %v5364, 0.0
  %vm5429 = vcmp.ge.f32.partialorder %v5365, 0.0
  %vm5430 = vcmp.ge.f32.partialorder %v5366, 0.0
  %vm5431 = vcmp.ge.f32.partialorder %v5367, 0.0
  %vm5432 = vcmp.ge.f32.partialorder %v5368, 0.0
  %vm5433 = vcmp.ge.f32.partialorder %v5369, 0.0
  %vm5434 = vcmp.ge.f32.partialorder %v5370, 0.0
  %vm5435 = vcmp.ge.f32.partialorder %v5371, 0.0
  %vm5436 = vcmp.ge.f32.partialorder %v5372, 0.0
  %vm5437 = vcmp.ge.f32.partialorder %v5373, 0.0
  %vm5438 = vcmp.ge.f32.partialorder %v5374, 0.0
  %vm5439 = vcmp.ge.f32.partialorder %v5375, 0.0
  %vm5440 = vcmp.ge.f32.partialorder %v5376, 0.0
  %vm5441 = vcmp.ge.f32.partialorder %v5377, 0.0
  %vm5442 = vcmp.ge.f32.partialorder %v5378, 0.0
  %vm5443 = vcmp.ge.f32.partialorder %v5379, 0.0
  %vm5444 = vcmp.ge.f32.partialorder %v5380, 0.0
  %vm5445 = vcmp.ge.f32.partialorder %v5381, 0.0
  %vm5446 = vcmp.ge.f32.partialorder %v5382, 0.0
  %vm5447 = vcmp.ge.f32.partialorder %v5383, 0.0
  %vm5448 = vcmp.ge.f32.partialorder %v5384, 0.0
  %vm5449 = vcmp.ge.f32.partialorder %v5385, 0.0
  %vm5450 = vcmp.ge.f32.partialorder %v5386, 0.0
  %vm5451 = vcmp.ge.f32.partialorder %v5387, 0.0
  %vm5452 = vcmp.ge.f32.partialorder %v5388, 0.0
  %vm5453 = vcmp.ge.f32.partialorder %v5389, 0.0
  %vm5454 = vcmp.ge.f32.partialorder %v5390, 0.0
  %vm5455 = vcmp.ge.f32.partialorder %v5391, 0.0
  %vm5456 = vcmp.ge.f32.partialorder %v5392, 0.0
  %vm5457 = vcmp.ge.f32.partialorder %v5393, 0.0
  %vm5458 = vcmp.ge.f32.partialorder %v5394, 0.0
  %vm5459 = vcmp.ge.f32.partialorder %v5395, 0.0
  %vm5460 = vcmp.ge.f32.partialorder %v5396, 0.0
  %vm5461 = vcmp.ge.f32.partialorder %v5397, 0.0
  %vm5462 = vcmp.ge.f32.partialorder %v5398, 0.0
  %vm5463 = vcmp.ge.f32.partialorder %v5399, 0.0
  %vm5464 = vcmp.ge.f32.partialorder %v5400, 0.0
  %vm5465 = vcmp.ge.f32.partialorder %v5401, 0.0
  %vm5466 = vcmp.ge.f32.partialorder %v5402, 0.0
  %vm5467 = vcmp.ge.f32.partialorder %v5403, 0.0
  %vm5468 = vcmp.ge.f32.partialorder %v5404, 0.0
  %vm5469 = vcmp.ge.f32.partialorder %v5405, 0.0
  %vm5470 = vcmp.ge.f32.partialorder %v5406, 0.0
  %vm5471 = vcmp.ge.f32.partialorder %v5407, 0.0
  %vm5472 = vcmp.ge.f32.partialorder %v5408, 0.0
  %vm5473 = vcmp.ge.f32.partialorder %v5409, 0.0
  %vm5474 = vcmp.ge.f32.partialorder %v5410, 0.0
  %vm5475 = vcmp.ge.f32.partialorder %v5411, 0.0
  %vm5476 = vcmp.ge.f32.partialorder %v5412, 0.0
  %vm5477 = vcmp.ge.f32.partialorder %v5413, 0.0
  %vm5478 = vcmp.ge.f32.partialorder %v5414, 0.0
  %vm5479 = vcmp.ge.f32.partialorder %v5415, 0.0
  %vm5480 = vcmp.ge.f32.partialorder %v5416, 0.0
  %vm5481 = vcmp.ge.f32.partialorder %v5417, 0.0
  %vm5482 = vcmp.ge.f32.partialorder %v5418, 0.0
  %v5483 = vmul.f32 %v5355, 0.01
  %v5484 = vmul.f32 %v5356, 0.01
  %v5485 = vmul.f32 %v5357, 0.01
  %v5486 = vmul.f32 %v5358, 0.01
  %v5487 = vmul.f32 %v5359, 0.01
  %v5488 = vmul.f32 %v5360, 0.01
  %v5489 = vmul.f32 %v5361, 0.01
  %v5490 = vmul.f32 %v5362, 0.01
  %v5491 = vmul.f32 %v5363, 0.01
  %v5492 = vmul.f32 %v5364, 0.01
  %v5493 = vmul.f32 %v5365, 0.01
  %v5494 = vmul.f32 %v5366, 0.01
  %v5495 = vmul.f32 %v5367, 0.01
  %v5496 = vmul.f32 %v5368, 0.01
  %v5497 = vmul.f32 %v5369, 0.01
  %v5498 = vmul.f32 %v5370, 0.01
  %v5499 = vmul.f32 %v5371, 0.01
  %v5500 = vmul.f32 %v5372, 0.01
  %v5501 = vmul.f32 %v5373, 0.01
  %v5502 = vmul.f32 %v5374, 0.01
  %v5503 = vmul.f32 %v5375, 0.01
  %v5504 = vmul.f32 %v5376, 0.01
  %v5505 = vmul.f32 %v5377, 0.01
  %v5506 = vmul.f32 %v5378, 0.01
  %v5507 = vmul.f32 %v5379, 0.01
  %v5508 = vmul.f32 %v5380, 0.01
  %v5509 = vmul.f32 %v5381, 0.01
  %v5510 = vmul.f32 %v5382, 0.01
  %v5511 = vmul.f32 %v5383, 0.01
  %v5512 = vmul.f32 %v5384, 0.01
  %v5513 = vmul.f32 %v5385, 0.01
  %v5514 = vmul.f32 %v5386, 0.01
  %v5515 = vmul.f32 %v5387, 0.01
  %v5516 = vmul.f32 %v5388, 0.01
  %v5517 = vmul.f32 %v5389, 0.01
  %v5518 = vmul.f32 %v5390, 0.01
  %v5519 = vmul.f32 %v5391, 0.01
  %v5520 = vmul.f32 %v5392, 0.01
  %v5521 = vmul.f32 %v5393, 0.01
  %v5522 = vmul.f32 %v5394, 0.01
  %v5523 = vmul.f32 %v5395, 0.01
  %v5524 = vmul.f32 %v5396, 0.01
  %v5525 = vmul.f32 %v5397, 0.01
  %v5526 = vmul.f32 %v5398, 0.01
  %v5527 = vmul.f32 %v5399, 0.01
  %v5528 = vmul.f32 %v5400, 0.01
  %v5529 = vmul.f32 %v5401, 0.01
  %v5530 = vmul.f32 %v5402, 0.01
  %v5531 = vmul.f32 %v5403, 0.01
  %v5532 = vmul.f32 %v5404, 0.01
  %v5533 = vmul.f32 %v5405, 0.01
  %v5534 = vmul.f32 %v5406, 0.01
  %v5535 = vmul.f32 %v5407, 0.01
  %v5536 = vmul.f32 %v5408, 0.01
  %v5537 = vmul.f32 %v5409, 0.01
  %v5538 = vmul.f32 %v5410, 0.01
  %v5539 = vmul.f32 %v5411, 0.01
  %v5540 = vmul.f32 %v5412, 0.01
  %v5541 = vmul.f32 %v5413, 0.01
  %v5542 = vmul.f32 %v5414, 0.01
  %v5543 = vmul.f32 %v5415, 0.01
  %v5544 = vmul.f32 %v5416, 0.01
  %v5545 = vmul.f32 %v5417, 0.01
  %v5546 = vmul.f32 %v5418, 0.01
  %v5547 = vsel %vm5419, %v5355, %v5483
  %v5548 = vsel %vm5420, %v5356, %v5484
  %v5549 = vsel %vm5421, %v5357, %v5485
  %v5550 = vsel %vm5422, %v5358, %v5486
  %v5551 = vsel %vm5423, %v5359, %v5487
  %v5552 = vsel %vm5424, %v5360, %v5488
  %v5553 = vsel %vm5425, %v5361, %v5489
  %v5554 = vsel %vm5426, %v5362, %v5490
  %v5555 = vsel %vm5427, %v5363, %v5491
  %v5556 = vsel %vm5428, %v5364, %v5492
  %v5557 = vsel %vm5429, %v5365, %v5493
  %v5558 = vsel %vm5430, %v5366, %v5494
  %v5559 = vsel %vm5431, %v5367, %v5495
  %v5560 = vsel %vm5432, %v5368, %v5496
  %v5561 = vsel %vm5433, %v5369, %v5497
  %v5562 = vsel %vm5434, %v5370, %v5498
  %v5563 = vsel %vm5435, %v5371, %v5499
  %v5564 = vsel %vm5436, %v5372, %v5500
  %v5565 = vsel %vm5437, %v5373, %v5501
  %v5566 = vsel %vm5438, %v5374, %v5502
  %v5567 = vsel %vm5439, %v5375, %v5503
  %v5568 = vsel %vm5440, %v5376, %v5504
  %v5569 = vsel %vm5441, %v5377, %v5505
  %v5570 = vsel %vm5442, %v5378, %v5506
  %v5571 = vsel %vm5443, %v5379, %v5507
  %v5572 = vsel %vm5444, %v5380, %v5508
  %v5573 = vsel %vm5445, %v5381, %v5509
  %v5574 = vsel %vm5446, %v5382, %v5510
  %v5575 = vsel %vm5447, %v5383, %v5511
  %v5576 = vsel %vm5448, %v5384, %v5512
  %v5577 = vsel %vm5449, %v5385, %v5513
  %v5578 = vsel %vm5450, %v5386, %v5514
  %v5579 = vsel %vm5451, %v5387, %v5515
  %v5580 = vsel %vm5452, %v5388, %v5516
  %v5581 = vsel %vm5453, %v5389, %v5517
  %v5582 = vsel %vm5454, %v5390, %v5518
  %v5583 = vsel %vm5455, %v5391, %v5519
  %v5584 = vsel %vm5456, %v5392, %v5520
  %v5585 = vsel %vm5457, %v5393, %v5521
  %v5586 = vsel %vm5458, %v5394, %v5522
  %v5587 = vsel %vm5459, %v5395, %v5523
  %v5588 = vsel %vm5460, %v5396, %v5524
  %v5589 = vsel %vm5461, %v5397, %v5525
  %v5590 = vsel %vm5462, %v5398, %v5526
  %v5591 = vsel %vm5463, %v5399, %v5527
  %v5592 = vsel %vm5464, %v5400, %v5528
  %v5593 = vsel %vm5465, %v5401, %v5529
  %v5594 = vsel %vm5466, %v5402, %v5530
  %v5595 = vsel %vm5467, %v5403, %v5531
  %v5596 = vsel %vm5468, %v5404, %v5532
  %v5597 = vsel %vm5469, %v5405, %v5533
  %v5598 = vsel %vm5470, %v5406, %v5534
  %v5599 = vsel %vm5471, %v5407, %v5535
  %v5600 = vsel %vm5472, %v5408, %v5536
  %v5601 = vsel %vm5473, %v5409, %v5537
  %v5602 = vsel %vm5474, %v5410, %v5538
  %v5603 = vsel %vm5475, %v5411, %v5539
  %v5604 = vsel %vm5476, %v5412, %v5540
  %v5605 = vsel %vm5477, %v5413, %v5541
  %v5606 = vsel %vm5478, %v5414, %v5542
  %v5607 = vsel %vm5479, %v5415, %v5543
  %v5608 = vsel %vm5480, %v5416, %v5544
  %v5609 = vsel %vm5481, %v5417, %v5545
  %v5610 = vsel %vm5482, %v5418, %v5546
  %5611 = vst.msk [vmem:[%s6] sm:$0xff] %vm590, %v5547
  %5612 = vst.msk [vmem:[%s6 + $0x8] sm:$0xff] %vm590, %v5548
  %5613 = vst.msk [vmem:[%s6 + $0x10] sm:$0xff] %vm590, %v5549
  %5614 = vst.msk [vmem:[%s6 + $0x18] sm:$0xff] %vm590, %v5550
  %5615 = vst.msk [vmem:[%s6 + $0x20] sm:$0xff] %vm590, %v5551
  %5616 = vst.msk [vmem:[%s6 + $0x28] sm:$0xff] %vm590, %v5552
  %5617 = vst.msk [vmem:[%s6 + $0x30] sm:$0xff] %vm590, %v5553
  %5618 = vst.msk [vmem:[%s6 + $0x38] sm:$0xff] %vm590, %v5554
  %5619 = vst.msk [vmem:[%s6 + $0x40] sm:$0xff] %vm590, %v5555
  %5620 = vst.msk [vmem:[%s6 + $0x48] sm:$0xff] %vm590, %v5556
  %5621 = vst.msk [vmem:[%s6 + $0x50] sm:$0xff] %vm590, %v5557
  %5622 = vst.msk [vmem:[%s6 + $0x58] sm:$0xff] %vm590, %v5558
  %5623 = vst.msk [vmem:[%s6 + $0x60] sm:$0xff] %vm590, %v5559
  %5624 = vst.msk [vmem:[%s6 + $0x68] sm:$0xff] %vm590, %v5560
  %5625 = vst.msk [vmem:[%s6 + $0x70] sm:$0xff] %vm590, %v5561
  %5626 = vst.msk [vmem:[%s6 + $0x78] sm:$0xff] %vm590, %v5562
  %5627 = vst.msk [vmem:[%s6 + $0x80] sm:$0xff] %vm590, %v5563
  %5628 = vst.msk [vmem:[%s6 + $0x88] sm:$0xff] %vm590, %v5564
  %5629 = vst.msk [vmem:[%s6 + $0x90] sm:$0xff] %vm590, %v5565
  %5630 = vst.msk [vmem:[%s6 + $0x98] sm:$0xff] %vm590, %v5566
  %5631 = vst.msk [vmem:[%s6 + $0xa0] sm:$0xff] %vm590, %v5567
  %5632 = vst.msk [vmem:[%s6 + $0xa8] sm:$0xff] %vm590, %v5568
  %5633 = vst.msk [vmem:[%s6 + $0xb0] sm:$0xff] %vm590, %v5569
  %5634 = vst.msk [vmem:[%s6 + $0xb8] sm:$0xff] %vm590, %v5570
  %5635 = vst.msk [vmem:[%s6 + $0xc0] sm:$0xff] %vm590, %v5571
  %5636 = vst.msk [vmem:[%s6 + $0xc8] sm:$0xff] %vm590, %v5572
  %5637 = vst.msk [vmem:[%s6 + $0xd0] sm:$0xff] %vm590, %v5573
  %5638 = vst.msk [vmem:[%s6 + $0xd8] sm:$0xff] %vm590, %v5574
  %5639 = vst.msk [vmem:[%s6 + $0xe0] sm:$0xff] %vm590, %v5575
  %5640 = vst.msk [vmem:[%s6 + $0xe8] sm:$0xff] %vm590, %v5576
  %5641 = vst.msk [vmem:[%s6 + $0xf0] sm:$0xff] %vm590, %v5577
  %5642 = vst.msk [vmem:[%s6 + $0xf8] sm:$0xff] %vm590, %v5578
  %5643 = vst.msk [vmem:[%s6 + $0x100] sm:$0xff] %vm590, %v5579
  %5644 = vst.msk [vmem:[%s6 + $0x108] sm:$0xff] %vm590, %v5580
  %5645 = vst.msk [vmem:[%s6 + $0x110] sm:$0xff] %vm590, %v5581
  %5646 = vst.msk [vmem:[%s6 + $0x118] sm:$0xff] %vm590, %v5582
  %5647 = vst.msk [vmem:[%s6 + $0x120] sm:$0xff] %vm590, %v5583
  %5648 = vst.msk [vmem:[%s6 + $0x128] sm:$0xff] %vm590, %v5584
  %5649 = vst.msk [vmem:[%s6 + $0x130] sm:$0xff] %vm590, %v5585
  %5650 = vst.msk [vmem:[%s6 + $0x138] sm:$0xff] %vm590, %v5586
  %5651 = vst.msk [vmem:[%s6 + $0x140] sm:$0xff] %vm590, %v5587
  %5652 = vst.msk [vmem:[%s6 + $0x148] sm:$0xff] %vm590, %v5588
  %5653 = vst.msk [vmem:[%s6 + $0x150] sm:$0xff] %vm590, %v5589
  %5654 = vst.msk [vmem:[%s6 + $0x158] sm:$0xff] %vm590, %v5590
  %5655 = vst.msk [vmem:[%s6 + $0x160] sm:$0xff] %vm590, %v5591
  %5656 = vst.msk [vmem:[%s6 + $0x168] sm:$0xff] %vm590, %v5592
  %5657 = vst.msk [vmem:[%s6 + $0x170] sm:$0xff] %vm590, %v5593
  %5658 = vst.msk [vmem:[%s6 + $0x178] sm:$0xff] %vm590, %v5594
  %5659 = vst.msk [vmem:[%s6 + $0x180] sm:$0xff] %vm590, %v5595
  %5660 = vst.msk [vmem:[%s6 + $0x188] sm:$0xff] %vm590, %v5596
  %5661 = vst.msk [vmem:[%s6 + $0x190] sm:$0xff] %vm590, %v5597
  %5662 = vst.msk [vmem:[%s6 + $0x198] sm:$0xff] %vm590, %v5598
  %5663 = vst.msk [vmem:[%s6 + $0x1a0] sm:$0xff] %vm590, %v5599
  %5664 = vst.msk [vmem:[%s6 + $0x1a8] sm:$0xff] %vm590, %v5600
  %5665 = vst.msk [vmem:[%s6 + $0x1b0] sm:$0xff] %vm590, %v5601
  %5666 = vst.msk [vmem:[%s6 + $0x1b8] sm:$0xff] %vm590, %v5602
  %5667 = vst.msk [vmem:[%s6 + $0x1c0] sm:$0xff] %vm590, %v5603
  %5668 = vst.msk [vmem:[%s6 + $0x1c8] sm:$0xff] %vm590, %v5604
  %5669 = vst.msk [vmem:[%s6 + $0x1d0] sm:$0xff] %vm590, %v5605
  %5670 = vst.msk [vmem:[%s6 + $0x1d8] sm:$0xff] %vm590, %v5606
  %5671 = vst.msk [vmem:[%s6 + $0x1e0] sm:$0xff] %vm590, %v5607
  %5672 = vst.msk [vmem:[%s6 + $0x1e8] sm:$0xff] %vm590, %v5608
  %5673 = vst.msk [vmem:[%s6 + $0x1f0] sm:$0xff] %vm590, %v5609
  %5674 = vst.msk [vmem:[%s6 + $0x1f8] sm:$0xff] %vm590, %v5610
  // Predicated region
  $region26: #{tpu_custom_call.1} parent=0 // pred_check
    _
  $region27: #{tpu_custom_call.1} parent=0 // pred_check_branch
    %5676 = sbr.rel (0) target = $region29
  $region28: #{tpu_custom_call.1} parent=0 // pred_region
    _
  $region29: #{tpu_custom_call.1} parent=0 // pred_fallthru
    _
  // Predicated region
  $region30: #{tpu_custom_call.1} parent=0 // pred_check
    _
  $region31: #{tpu_custom_call.1} parent=0 // pred_check_branch
    %5678 = sbr.rel (0) target = $region33
  $region32: #{tpu_custom_call.1} parent=0 // pred_region
    _
  $region33: #{tpu_custom_call.1} parent=0 // pred_fallthru
    _

</llo_original>
